<compile_context>
chip_gen: v7x
topology: tpu7x:2x2x1
jax: 0.10.0
libtpu: 0.0.40
codegen_flags: <defaults>
</compile_context>

<pallas_src>
import math

import jax
import jax.numpy as jnp
from jax.experimental import pallas as pl
from jax.experimental.pallas import tpu as pltpu

LEAKY_SLOPE = 0.01
BN_EPS = 1e-5


def _leaky(x):
    return jnp.where(x > 0, x, LEAKY_SLOPE * x)


def _vmem_capacity_bytes():
    try:
        return int(pltpu.get_tpu_info().vmem_capacity_bytes)
    except Exception:
        return 64 * 1024 * 1024          # conservative default (v7x per-core VMEM)


def make_gin_kernel(num_layers, n_real, n_pad, d_pad, tm, tk, adj_resident):
    num_i = n_pad // tm
    num_k = 1 if adj_resident else n_pad // tk

    # Row offsets inside the packed per-layer parameter slab (slab_rows = 2*d_pad + 8).
    R_W1 = 0
    R_W2 = d_pad
    R_B1 = 2 * d_pad
    R_B2 = 2 * d_pad + 1
    R_GAMMA = 2 * d_pad + 2
    R_BETA = 2 * d_pad + 3
    R_EPS = 2 * d_pad + 4                # row filled with (1 + eps_l) in every lane

    def body(x0_hbm, adj_in, adj_vmem, pool_ref, lay_ref, cls_ref, out_ref,
             h32, h16, agg, stats, sem):
        l = pl.program_id(0)
        i = pl.program_id(1)
        k = pl.program_id(2)

        # One-time setup: DMA x0 (and, on the resident path, the whole adjacency) into VMEM.
        @pl.when((l == 0) & (i == 0) & (k == 0))
        def _():
            cp = pltpu.make_async_copy(x0_hbm, h32, sem.at[0])
            cp.start()
            cp.wait()
            h16[...] = h32[...].astype(jnp.bfloat16)
            if adj_resident:
                cpa = pltpu.make_async_copy(adj_in, adj_vmem, sem.at[0])
                cpa.start()
                cpa.wait()

        # Per-(layer, row-block): reset the aggregation accumulator.
        @pl.when(k == 0)
        def _():
            agg[...] = jnp.zeros_like(agg)

        # Per-layer: reset the BatchNorm statistics accumulators.
        @pl.when((i == 0) & (k == 0))
        def _():
            stats[...] = jnp.zeros_like(stats)

        # GINConv aggregation: agg[i-block] += A[i-block, k-block] @ h[k-block]
        # (int8 adjacency cast to bf16 right before the MXU; f32 accumulation).
        irow = pl.multiple_of(i * tm, tm)
        if adj_resident:
            a_tile = adj_vmem[pl.ds(irow, tm), :].astype(jnp.bfloat16)     # (tm, n_pad)
            h_src = h16[...]                                               # (n_pad, d_pad)
        else:
            krow = pl.multiple_of(k * tk, tk)
            a_tile = adj_in[...].astype(jnp.bfloat16)                      # (tm, tk)
            h_src = h16[pl.ds(krow, tk), :]                                # (tk, d_pad)
        agg[...] += jnp.dot(a_tile, h_src, preferred_element_type=jnp.float32)

        # Contraction for this row block done: GIN MLP + BN partial sums.
        @pl.when(k == num_k - 1)
        def _():
            h_blk = h32[pl.ds(irow, tm), :]                    # (tm, d_pad) f32
            one_plus_eps = lay_ref[R_EPS:R_EPS + 1, :]         # (1, d_pad)
            pre = one_plus_eps * h_blk + agg[...]              # (1+eps)*x_i + sum_j x_j

            w1 = lay_ref[R_W1:R_W1 + d_pad, :]
            b1 = lay_ref[R_B1:R_B1 + 1, :]
            w2 = lay_ref[R_W2:R_W2 + d_pad, :]
            b2 = lay_ref[R_B2:R_B2 + 1, :]

            # gin_mlp_type == 'lin_lrelu_lin'
            t = _leaky(jnp.dot(pre, w1, preferred_element_type=jnp.float32) + b1)
            x = jnp.dot(t, w2, preferred_element_type=jnp.float32) + b2
            # h32[i-block] is dead once `pre` is formed -> store pre-BN output in place
            # (replaces the dedicated x32 scratch of v1).
            h32[pl.ds(irow, tm), :] = x

            # BN partial sums; mask padded rows so statistics cover the real N nodes only.
            row_ids = jax.lax.broadcasted_iota(jnp.int32, (tm, d_pad), 0) + irow
            xm = jnp.where(row_ids < n_real, x, 0.0)
            stats[0:1, :] += jnp.sum(xm, axis=0, keepdims=True)
            stats[1:2, :] += jnp.sum(xm * xm, axis=0, keepdims=True)

        # All row blocks of this layer done: BN folded into a per-channel affine + LeakyReLU.
        @pl.when((i == num_i - 1) & (k == num_k - 1))
        def _():
            inv_n = 1.0 / float(n_real)
            mean = stats[0:1, :] * inv_n
            ex2 = stats[1:2, :] * inv_n
            var = ex2 - mean * mean                    # biased variance (training-mode BN)
            gamma = lay_ref[R_GAMMA:R_GAMMA + 1, :]
            beta = lay_ref[R_BETA:R_BETA + 1, :]
            scale = gamma * jax.lax.rsqrt(var + BN_EPS)
            shift = beta - mean * scale
            h_new = _leaky(h32[...] * scale + shift)   # self.act
            h32[...] = h_new
            h16[...] = h_new.astype(jnp.bfloat16)

        # Very last grid step: global_add_pool + classifier head (lane-dense store).
        @pl.when((l == num_layers - 1) & (i == num_i - 1) & (k == num_k - 1))
        def _():
            pooled = jnp.dot(pool_ref[...], h16[...],
                             preferred_element_type=jnp.float32)           # (b_pad, d_pad)
            wc1 = cls_ref[0:d_pad, :]
            wc2 = cls_ref[d_pad:2 * d_pad, :]
            bc1 = cls_ref[2 * d_pad:2 * d_pad + 1, :]
            bc2 = cls_ref[2 * d_pad + 1:2 * d_pad + 2, :]
            c = _leaky(jnp.dot(pooled, wc1, preferred_element_type=jnp.float32) + bc1)
            out_ref[...] = jnp.dot(c, wc2, preferred_element_type=jnp.float32) + bc2

    if adj_resident:
        def kernel(x0_hbm, adj_hbm, pool_ref, lay_ref, cls_ref, out_ref,
                   h32, h16, agg, stats, sem, adj_vmem):
            body(x0_hbm, adj_hbm, adj_vmem, pool_ref, lay_ref, cls_ref, out_ref,
                 h32, h16, agg, stats, sem)
    else:
        def kernel(x0_hbm, adj_tile, pool_ref, lay_ref, cls_ref, out_ref,
                   h32, h16, agg, stats, sem):
            body(x0_hbm, adj_tile, None, pool_ref, lay_ref, cls_ref, out_ref,
                 h32, h16, agg, stats, sem)

    return kernel


def gin_forward_pallas(x0, adj, pool, eps_arr, layer_params, cls_params, *,
                       d_pad=128, tm=256, tk=512, force_streamed=False):
    """layer_params: list of (W1, b1, W2, b2, gamma, beta); cls_params: (Wc1, bc1, Wc2, bc2).

    adj[i, j] = #edges j -> i ("source_to_target" flow); pool[g, i] = 1 iff node i in graph g.
    """
    assert tm % 128 == 0 and tk % 128 == 0
    num_layers = len(layer_params)
    n_real = x0.shape[0]
    b_real = pool.shape[0]
    num_classes = cls_params[2].shape[1]
    slab_rows = 2 * d_pad + 8
    b_pad = max(8, -(-b_real // 8) * 8)

    # ---- per-chip VMEM budget & adjacency placement (resident vs streamed) ----
    cap = (_vmem_capacity_bytes() * 3) // 4        # ~96 MiB on v5e/v6e, ~48 MiB on v7x

    def round_up(v, m):
        return -(-v // m) * m

    n_pad_res = max(tm, round_up(n_real, tm))                       # resident-path padding
    lcm = (tm * tk) // math.gcd(tm, tk)
    n_pad_str = max(lcm, round_up(n_real, lcm))                     # streamed-path padding

    def fixed_bytes(n_pad):
        return (n_pad * d_pad * 4                  # h32 (resident node features, f32)
                + n_pad * d_pad * 2                # h16 (bf16 copy for the MXU)
                + tm * d_pad * 4                   # agg accumulator
                + 8 * d_pad * 4                    # BN stats
                + 2 * b_pad * n_pad * 2            # pool (double-buffered bf16)
                + 4 * slab_rows * d_pad * 4        # layer + classifier slabs
                + 2 * b_pad * d_pad * 4)           # output block

    resident_need = fixed_bytes(n_pad_res) + n_pad_res * n_pad_res  # + int8 adj scratch
    adj_resident = (not force_streamed) and (resident_need + (4 << 20) <= cap)
    if adj_resident:
        n_pad = n_pad_res
        need = resident_need
    else:
        n_pad = n_pad_str
        need = fixed_bytes(n_pad_str) + 2 * tm * tk                 # double-buffered int8 tiles
    vmem_limit = int(min(cap, max(need + (16 << 20), 32 << 20)))

    num_i = n_pad // tm
    num_k = 1 if adj_resident else n_pad // tk

    # ---- pad / pack operands (layout plumbing only) ----
    x0_p = jnp.zeros((n_pad, d_pad), jnp.float32).at[:n_real, :x0.shape[1]].set(x0)
    # int8 adjacency: exact for integer edge multiplicities <= 127 (plain 0/1 adjacency safe).
    adj_p = jnp.zeros((n_pad, n_pad), jnp.float32).at[:n_real, :n_real].set(adj)
    adj_p = adj_p.astype(jnp.int8)
    pool_p = jnp.zeros((b_pad, n_pad), jnp.float32).at[:b_real, :n_real].set(pool)
    pool_p = pool_p.astype(jnp.bfloat16)           # 0/1 membership: exact in bf16

    slabs = []
    for (w1, b1, w2, b2, gamma, beta), eps in zip(layer_params, eps_arr):
        s = jnp.zeros((slab_rows, d_pad), jnp.float32)
        s = s.at[:w1.shape[0], :w1.shape[1]].set(w1)
        s = s.at[d_pad:d_pad + w2.shape[0], :w2.shape[1]].set(w2)
        s = s.at[2 * d_pad, :b1.shape[1]].set(b1[0])
        s = s.at[2 * d_pad + 1, :b2.shape[1]].set(b2[0])
        s = s.at[2 * d_pad + 2, :gamma.shape[1]].set(gamma[0])      # padded gamma stays 0
        s = s.at[2 * d_pad + 3, :beta.shape[1]].set(beta[0])
        s = s.at[2 * d_pad + 4, :].set(1.0 + eps)                   # (1 + eps) broadcast row
        slabs.append(s)
    layer_slab = jnp.stack(slabs)                                   # (L, slab_rows, d_pad)

    wc1, bc1, wc2, bc2 = cls_params
    cls_slab = jnp.zeros((slab_rows, d_pad), jnp.float32)
    cls_slab = cls_slab.at[:wc1.shape[0], :wc1.shape[1]].set(wc1)
    cls_slab = cls_slab.at[d_pad:d_pad + wc2.shape[0], :wc2.shape[1]].set(wc2)
    cls_slab = cls_slab.at[2 * d_pad, :bc1.shape[1]].set(bc1[0])
    cls_slab = cls_slab.at[2 * d_pad + 1, :bc2.shape[1]].set(bc2[0])

    # ---- specs / scratch ----
    if adj_resident:
        adj_spec = pl.BlockSpec(memory_space=pl.ANY)    # one manual DMA into VMEM scratch
    else:
        adj_spec = pl.BlockSpec((tm, tk), lambda l, i, k: (i, k))

    scratch = [
        pltpu.VMEM((n_pad, d_pad), jnp.float32),    # h32: resident node features (f32)
        pltpu.VMEM((n_pad, d_pad), jnp.bfloat16),   # h16: bf16 copy for the MXU
        pltpu.VMEM((tm, d_pad), jnp.float32),       # agg: A @ h accumulator (row block)
        pltpu.VMEM((8, d_pad), jnp.float32),        # stats: BN sum / sum-of-squares
        pltpu.SemaphoreType.DMA((1,)),              # semaphore for the one-time copies
    ]
    if adj_resident:
        scratch.append(pltpu.VMEM((n_pad, n_pad), jnp.int8))        # resident adjacency

    # ---- cost hint for XLA's scheduler ----
    flops = (num_layers * (2 * n_pad * n_pad * d_pad + 4 * n_pad * d_pad * d_pad)
             + 2 * b_pad * n_pad * d_pad + 4 * b_pad * d_pad * d_pad)
    adj_bytes = n_pad * n_pad * (1 if adj_resident else num_layers)
    bytes_accessed = (adj_bytes + n_pad * d_pad * 4 + b_pad * n_pad * 2
                      + int(layer_slab.size) * 4 + int(cls_slab.size) * 4
                      + b_pad * d_pad * 4)

    out_p = pl.pallas_call(
        make_gin_kernel(num_layers, n_real, n_pad, d_pad, tm, tk, adj_resident),
        out_shape=jax.ShapeDtypeStruct((b_pad, d_pad), jnp.float32),
        grid_spec=pltpu.PrefetchScalarGridSpec(
            num_scalar_prefetch=0,
            grid=(num_layers, num_i, num_k),
            in_specs=[
                pl.BlockSpec(memory_space=pl.ANY),                          # x0 (copied once)
                adj_spec,                                                   # adjacency (int8)
                pl.BlockSpec((b_pad, n_pad), lambda l, i, k: (0, 0)),       # pooling matrix
                pl.BlockSpec((pl.Squeezed(), slab_rows, d_pad),
                             lambda l, i, k: (l, 0, 0)),                    # per-layer params
                pl.BlockSpec((slab_rows, d_pad), lambda l, i, k: (0, 0)),   # classifier params
            ],
            out_specs=pl.BlockSpec((b_pad, d_pad), lambda l, i, k: (0, 0)),
            scratch_shapes=scratch),
        compiler_params=pltpu.CompilerParams(
            dimension_semantics=("arbitrary", "arbitrary", "arbitrary"),
            vmem_limit_bytes=vmem_limit),
        cost_estimate=pl.CostEstimate(flops=int(flops),
                                      transcendentals=int(num_layers * d_pad),
                                      bytes_accessed=int(bytes_accessed)),
    )(x0_p, adj_p, pool_p, layer_slab, cls_slab)

    return out_p[:b_real, :num_classes]


def gin_forward_reference(x0, adj, pool, eps_arr, layer_params, cls_params):
    """Plain-JAX reference mirroring the kernel's numerics (bf16 MXU operands, f32 math)."""
    h = x0
    adj16 = adj.astype(jnp.bfloat16)
    for l, (w1, b1, w2, b2, gamma, beta) in enumerate(layer_params):
        agg = jnp.dot(adj16, h.astype(jnp.bfloat16), preferred_element_type=jnp.float32)
        pre = (1.0 + eps_arr[l]) * h + agg
        t = _leaky(pre @ w1 + b1)
        x = t @ w2 + b2
        mean = jnp.mean(x, axis=0, keepdims=True)
        var = jnp.mean(x * x, axis=0, keepdims=True) - mean * mean
        scale = gamma * jax.lax.rsqrt(var + BN_EPS)
        h = _leaky(x * scale + (beta - mean * scale))
    pooled = jnp.dot(pool.astype(jnp.bfloat16), h.astype(jnp.bfloat16),
                     preferred_element_type=jnp.float32)
    wc1, bc1, wc2, bc2 = cls_params
    c = _leaky(pooled @ wc1 + bc1)
    return c @ wc2 + bc2


if __name__ == "__main__":
    # ----- synthetic dataset / config (small, but big enough to exercise multi-block tiling) -----
    MAX_NODE_DEG = 5          # -> one-hot degree embedding dim = 6
    NUM_NODE_LAB = 3          # -> one-hot label embedding dim = 3
    GIN_NUMBER = 2
    GIN_DIM = 32
    CLS_HIDDEN = 16
    NUM_CLASSES = 3
    N = 300                   # total nodes in the batch (resident path: pad 512 -> 2 row blocks)
    E = 900                   # number of directed edges
    B = 3                     # graphs in the batch

    dim_input = (MAX_NODE_DEG + 1) + NUM_NODE_LAB   # 9
    dims = [dim_input] + GIN_NUMBER * [GIN_DIM]

    key = jax.random.PRNGKey(0)
    keys = iter(jax.random.split(key, 64))

    # graph data
    node_deg = jax.random.randint(next(keys), (N,), 0, MAX_NODE_DEG + 1)
    node_lab = jax.random.randint(next(keys), (N,), 0, NUM_NODE_LAB)
    src = jax.random.randint(next(keys), (E,), 0, N)
    dst = jax.random.randint(next(keys), (E,), 0, N)
    batch_vec = jnp.sort(jax.random.randint(next(keys), (N,), 0, B))

    # glue: one-hot embeddings (OneHotEmbedding.forward == eye.index_select) + concat
    emb_deg = jnp.eye(MAX_NODE_DEG + 1, dtype=jnp.float32)[node_deg]
    emb_lab = jnp.eye(NUM_NODE_LAB, dtype=jnp.float32)[node_lab]
    x0 = jnp.concatenate([emb_deg, emb_lab], axis=1)                          # (N, 9)

    # glue: dense adjacency (A[i, j] = #edges j -> i) and pooling matrix
    adj = jnp.zeros((N, N), jnp.float32).at[dst, src].add(1.0)                # (N, N)
    pool = (batch_vec[None, :] == jnp.arange(B)[:, None]).astype(jnp.float32)  # (B, N)

    # ----- deterministic parameter init -----
    def lin_init(k, d_in, d_out, scale=0.1):
        kw, kb = jax.random.split(k)
        w = scale * jax.random.normal(kw, (d_in, d_out), jnp.float32)
        b = scale * jax.random.normal(kb, (1, d_out), jnp.float32)
        return w, b

    layer_params = []
    for d_in, d_out in zip(dims[:-1], dims[1:]):
        w1, b1 = lin_init(next(keys), d_in, d_in)
        w2, b2 = lin_init(next(keys), d_in, d_out)
        gamma = jnp.ones((1, d_out), jnp.float32)
        beta = jnp.zeros((1, d_out), jnp.float32)
        layer_params.append((w1, b1, w2, b2, gamma, beta))

    eps_arr = jnp.zeros((GIN_NUMBER,), jnp.float32)   # GINConv train_eps init = 0

    wc1, bc1 = lin_init(next(keys), GIN_DIM, CLS_HIDDEN)
    wc2, bc2 = lin_init(next(keys), CLS_HIDDEN, NUM_CLASSES)
    cls_params = (wc1, bc1, wc2, bc2)

    ref = gin_forward_reference(x0, adj, pool, eps_arr, layer_params, cls_params)

    # Primary path: VMEM-resident int8 adjacency (one HBM fetch), tm=256 row blocks.
    out = gin_forward_pallas(x0, adj, pool, eps_arr, layer_params, cls_params)
    out = jax.block_until_ready(out)
    assert out.shape == (B, NUM_CLASSES)
    assert jnp.allclose(out, ref, rtol=2e-3, atol=2e-3), (out, ref)

    # Fallback path: streamed int8 adjacency tiles; exercised with small tiles so the
    # (layer, row-block, k-block) accumulation logic is covered on this tiny graph.
    out_s = gin_forward_pallas(x0, adj, pool, eps_arr, layer_params, cls_params,
                               tm=128, tk=128, force_streamed=True)
    out_s = jax.block_until_ready(out_s)
    assert jnp.allclose(out_s, ref, rtol=2e-3, atol=2e-3), (out_s, ref)

    print("KERNEL_OK")
</pallas_src>

<mosaic_0001>
module attributes {stable_mosaic.version = 11 : i64} {
  func.func @kernel(%arg0: i32, %arg1: i32, %arg2: i32, %arg3: memref<512x128xf32, #tpu.memory_space<any>>, %arg4: memref<512x512xi8, #tpu.memory_space<any>>, %arg5: memref<8x512xbf16, #tpu.memory_space<vmem>>, %arg6: memref<1x264x128xf32, #tpu.memory_space<vmem>>, %arg7: memref<264x128xf32, #tpu.memory_space<vmem>>, %arg8: memref<8x128xf32, #tpu.memory_space<vmem>>, %arg9: memref<512x128xf32, #tpu.memory_space<vmem>>, %arg10: memref<512x128xbf16, #tpu.memory_space<vmem>>, %arg11: memref<256x128xf32, #tpu.memory_space<vmem>>, %arg12: memref<8x128xf32, #tpu.memory_space<vmem>>, %arg13: memref<1x!tpu.dma_semaphore, #tpu.memory_space<semaphore_mem>>, %arg14: memref<512x512xi8, #tpu.memory_space<vmem>>) attributes {dimension_semantics = [#tpu.dimension_semantics<arbitrary>, #tpu.dimension_semantics<arbitrary>, #tpu.dimension_semantics<arbitrary>], iteration_bounds = array<i64: 2, 2, 1>, scalar_prefetch = 0 : i64, scratch_operands = 6 : i64, tpu.core_type = #tpu.core_type<tc>, window_params = [{}, {}, {pipeline_mode = #tpu.pipeline_mode<synchronous>, transform_indices = @transform_2, window_bounds = array<i64: 8, 512>}, {transform_indices = @transform_3, window_bounds = array<i64: 1, 264, 128>}, {pipeline_mode = #tpu.pipeline_mode<synchronous>, transform_indices = @transform_4, window_bounds = array<i64: 264, 128>}, {pipeline_mode = #tpu.pipeline_mode<synchronous>, transform_indices = @transform_5, window_bounds = array<i64: 8, 128>}]} {
    %c0_i32 = arith.constant 0 : i32
    %0 = arith.cmpi eq, %arg0, %c0_i32 : i32
    %c0_i32_0 = arith.constant 0 : i32
    %1 = arith.cmpi eq, %arg1, %c0_i32_0 : i32
    %2 = arith.andi %0, %1 : i1
    %c0_i32_1 = arith.constant 0 : i32
    %3 = arith.cmpi eq, %arg2, %c0_i32_1 : i32
    %4 = arith.andi %2, %3 : i1
    %5 = arith.extui %4 : i1 to i32
    %c0_i32_2 = arith.constant 0 : i32
    %6 = arith.cmpi ne, %5, %c0_i32_2 : i32
    scf.if %6 {
      %c0_i32_22 = arith.constant 0 : i32
      %40 = tpu.memref_slice %arg13[%c0_i32_22] : memref<1x!tpu.dma_semaphore, #tpu.memory_space<semaphore_mem>> -> memref<1x!tpu.dma_semaphore, #tpu.memory_space<semaphore_mem>>
      %41 = tpu.memref_squeeze %40 : memref<1x!tpu.dma_semaphore, #tpu.memory_space<semaphore_mem>> -> memref<!tpu.dma_semaphore, #tpu.memory_space<semaphore_mem>>
      tpu.enqueue_dma source(%arg3 : memref<512x128xf32, #tpu.memory_space<any>>) target(%arg9 : memref<512x128xf32, #tpu.memory_space<vmem>>) target_semaphore(%41 : memref<!tpu.dma_semaphore, #tpu.memory_space<semaphore_mem>>)
      %c0_i32_23 = arith.constant 0 : i32
      %42 = tpu.memref_slice %arg13[%c0_i32_23] : memref<1x!tpu.dma_semaphore, #tpu.memory_space<semaphore_mem>> -> memref<1x!tpu.dma_semaphore, #tpu.memory_space<semaphore_mem>>
      %43 = tpu.memref_squeeze %42 : memref<1x!tpu.dma_semaphore, #tpu.memory_space<semaphore_mem>> -> memref<!tpu.dma_semaphore, #tpu.memory_space<semaphore_mem>>
      tpu.wait_dma2 semaphore(%43 : memref<!tpu.dma_semaphore, #tpu.memory_space<semaphore_mem>>) src(%arg3 : memref<512x128xf32, #tpu.memory_space<any>>) dst(%arg9 : memref<512x128xf32, #tpu.memory_space<vmem>>)
      %c0_24 = arith.constant 0 : index
      %c0_25 = arith.constant 0 : index
      %44 = vector.load %arg9[%c0_24, %c0_25] : memref<512x128xf32, #tpu.memory_space<vmem>>, vector<512x128xf32>
      %45 = arith.truncf %44 : vector<512x128xf32> to vector<512x128xbf16>
      %c0_26 = arith.constant 0 : index
      %c0_27 = arith.constant 0 : index
      %46 = vector.load %arg10[%c0_26, %c0_27] : memref<512x128xbf16, #tpu.memory_space<vmem>>, vector<512x128xbf16>
      tpu.vector_store %arg10[%c0_26, %c0_27], %45 {strides = array<i32>} : memref<512x128xbf16, #tpu.memory_space<vmem>>, vector<512x128xbf16>,
      %c0_i32_28 = arith.constant 0 : i32
      %47 = tpu.memref_slice %arg13[%c0_i32_28] : memref<1x!tpu.dma_semaphore, #tpu.memory_space<semaphore_mem>> -> memref<1x!tpu.dma_semaphore, #tpu.memory_space<semaphore_mem>>
      %48 = tpu.memref_squeeze %47 : memref<1x!tpu.dma_semaphore, #tpu.memory_space<semaphore_mem>> -> memref<!tpu.dma_semaphore, #tpu.memory_space<semaphore_mem>>
      tpu.enqueue_dma source(%arg4 : memref<512x512xi8, #tpu.memory_space<any>>) target(%arg14 : memref<512x512xi8, #tpu.memory_space<vmem>>) target_semaphore(%48 : memref<!tpu.dma_semaphore, #tpu.memory_space<semaphore_mem>>)
      %c0_i32_29 = arith.constant 0 : i32
      %49 = tpu.memref_slice %arg13[%c0_i32_29] : memref<1x!tpu.dma_semaphore, #tpu.memory_space<semaphore_mem>> -> memref<1x!tpu.dma_semaphore, #tpu.memory_space<semaphore_mem>>
      %50 = tpu.memref_squeeze %49 : memref<1x!tpu.dma_semaphore, #tpu.memory_space<semaphore_mem>> -> memref<!tpu.dma_semaphore, #tpu.memory_space<semaphore_mem>>
      tpu.wait_dma2 semaphore(%50 : memref<!tpu.dma_semaphore, #tpu.memory_space<semaphore_mem>>) src(%arg4 : memref<512x512xi8, #tpu.memory_space<any>>) dst(%arg14 : memref<512x512xi8, #tpu.memory_space<vmem>>)
    } else {
    }
    %c0_i32_3 = arith.constant 0 : i32
    %7 = arith.cmpi eq, %arg2, %c0_i32_3 : i32
    %8 = arith.extui %7 : i1 to i32
    %c0_i32_4 = arith.constant 0 : i32
    %9 = arith.cmpi ne, %8, %c0_i32_4 : i32
    scf.if %9 {
      %cst_22 = arith.constant 0.000000e+00 : f32
      %40 = vector.broadcast %cst_22 : f32 to vector<256x128xf32>
      %c0_23 = arith.constant 0 : index
      %c0_24 = arith.constant 0 : index
      %41 = vector.load %arg11[%c0_23, %c0_24] : memref<256x128xf32, #tpu.memory_space<vmem>>, vector<256x128xf32>
      tpu.vector_store %arg11[%c0_23, %c0_24], %40 {strides = array<i32>} : memref<256x128xf32, #tpu.memory_space<vmem>>, vector<256x128xf32>,
    } else {
    }
    %c0_i32_5 = arith.constant 0 : i32
    %10 = arith.cmpi eq, %arg1, %c0_i32_5 : i32
    %c0_i32_6 = arith.constant 0 : i32
    %11 = arith.cmpi eq, %arg2, %c0_i32_6 : i32
    %12 = arith.andi %10, %11 : i1
    %13 = arith.extui %12 : i1 to i32
    %c0_i32_7 = arith.constant 0 : i32
    %14 = arith.cmpi ne, %13, %c0_i32_7 : i32
    scf.if %14 {
      %cst_22 = arith.constant 0.000000e+00 : f32
      %40 = vector.broadcast %cst_22 : f32 to vector<8x128xf32>
      %c0_23 = arith.constant 0 : index
      %c0_24 = arith.constant 0 : index
      %41 = vector.load %arg12[%c0_23, %c0_24] : memref<8x128xf32, #tpu.memory_space<vmem>>, vector<8x128xf32>
      tpu.vector_store %arg12[%c0_23, %c0_24], %40 {strides = array<i32>} : memref<8x128xf32, #tpu.memory_space<vmem>>, vector<8x128xf32>,
    } else {
    }
    %c256_i32 = arith.constant 256 : i32
    %15 = arith.muli %arg1, %c256_i32 : i32
    %16 = tpu.assume_multiple %15, 256 : i32
    %17 = arith.index_cast %16 : i32 to index
    %c0 = arith.constant 0 : index
    %18 = vector.load %arg14[%17, %c0] : memref<512x512xi8, #tpu.memory_space<vmem>>, vector<256x512xi8>
    %19 = arith.sitofp %18 : vector<256x512xi8> to vector<256x512xbf16>
    %c0_8 = arith.constant 0 : index
    %c0_9 = arith.constant 0 : index
    %20 = vector.load %arg10[%c0_8, %c0_9] : memref<512x128xbf16, #tpu.memory_space<vmem>>, vector<512x128xbf16>
    %c0_10 = arith.constant 0 : index
    %c0_11 = arith.constant 0 : index
    %21 = vector.load %arg11[%c0_10, %c0_11] : memref<256x128xf32, #tpu.memory_space<vmem>>, vector<256x128xf32>
    %cst = arith.constant dense<0.000000e+00> : vector<256x128xf32>
    %22 = tpu.matmul %19, %20, %cst {dimension_numbers = #tpu.dot_dimension_numbers<[1], [0], [0], [1], [0, 0, 1, 1], [], []>} : vector<256x512xbf16>, vector<512x128xbf16>, vector<256x128xf32> -> vector<256x128xf32>
    %23 = arith.addf %21, %22 : vector<256x128xf32>
    %c0_12 = arith.constant 0 : index
    %c0_13 = arith.constant 0 : index
    %24 = vector.load %arg11[%c0_12, %c0_13] : memref<256x128xf32, #tpu.memory_space<vmem>>, vector<256x128xf32>
    tpu.vector_store %arg11[%c0_12, %c0_13], %23 {strides = array<i32>} : memref<256x128xf32, #tpu.memory_space<vmem>>, vector<256x128xf32>,
    %c0_i32_14 = arith.constant 0 : i32
    %25 = arith.cmpi eq, %arg2, %c0_i32_14 : i32
    %26 = arith.extui %25 : i1 to i32
    %c0_i32_15 = arith.constant 0 : i32
    %27 = arith.cmpi ne, %26, %c0_i32_15 : i32
    scf.if %27 {
      %40 = arith.index_cast %16 : i32 to index
      %c0_22 = arith.constant 0 : index
      %41 = vector.load %arg9[%40, %c0_22] : memref<512x128xf32, #tpu.memory_space<vmem>>, vector<256x128xf32>
      %c0_23 = arith.constant 0 : index
      %c260 = arith.constant 260 : index
      %c0_24 = arith.constant 0 : index
      %42 = vector.load %arg6[%c0_23, %c260, %c0_24] : memref<1x264x128xf32, #tpu.memory_space<vmem>>, vector<1x1x128xf32>
      %43 = vector.shape_cast %42 : vector<1x1x128xf32> to vector<1x128xf32>
      %44 = vector.broadcast %43 : vector<1x128xf32> to vector<256x128xf32>
      %45 = arith.mulf %44, %41 : vector<256x128xf32>
      %c0_25 = arith.constant 0 : index
      %c0_26 = arith.constant 0 : index
      %46 = vector.load %arg11[%c0_25, %c0_26] : memref<256x128xf32, #tpu.memory_space<vmem>>, vector<256x128xf32>
      %47 = arith.addf %45, %46 : vector<256x128xf32>
      %c0_27 = arith.constant 0 : index
      %c0_28 = arith.constant 0 : index
      %c0_29 = arith.constant 0 : index
      %48 = vector.load %arg6[%c0_27, %c0_28, %c0_29] : memref<1x264x128xf32, #tpu.memory_space<vmem>>, vector<1x128x128xf32>
      %49 = vector.shape_cast %48 : vector<1x128x128xf32> to vector<128x128xf32>
      %c0_30 = arith.constant 0 : index
      %c256 = arith.constant 256 : index
      %c0_31 = arith.constant 0 : index
      %50 = vector.load %arg6[%c0_30, %c256, %c0_31] : memref<1x264x128xf32, #tpu.memory_space<vmem>>, vector<1x1x128xf32>
      %51 = vector.shape_cast %50 : vector<1x1x128xf32> to vector<1x128xf32>
      %c0_32 = arith.constant 0 : index
      %c128 = arith.constant 128 : index
      %c0_33 = arith.constant 0 : index
      %52 = vector.load %arg6[%c0_32, %c128, %c0_33] : memref<1x264x128xf32, #tpu.memory_space<vmem>>, vector<1x128x128xf32>
      %53 = vector.shape_cast %52 : vector<1x128x128xf32> to vector<128x128xf32>
      %c0_34 = arith.constant 0 : index
      %c257 = arith.constant 257 : index
      %c0_35 = arith.constant 0 : index
      %54 = vector.load %arg6[%c0_34, %c257, %c0_35] : memref<1x264x128xf32, #tpu.memory_space<vmem>>, vector<1x1x128xf32>
      %55 = vector.shape_cast %54 : vector<1x1x128xf32> to vector<1x128xf32>
      %cst_36 = arith.constant dense<0.000000e+00> : vector<256x128xf32>
      %56 = tpu.matmul %47, %49, %cst_36 {dimension_numbers = #tpu.dot_dimension_numbers<[1], [0], [0], [1], [0, 0, 1, 1], [], []>} : vector<256x128xf32>, vector<128x128xf32>, vector<256x128xf32> -> vector<256x128xf32>
      %57 = vector.broadcast %51 : vector<1x128xf32> to vector<256x128xf32>
      %58 = arith.addf %56, %57 : vector<256x128xf32>
      %cst_37 = arith.constant 0.000000e+00 : f32
      %59 = vector.broadcast %cst_37 : f32 to vector<256x128xf32>
      %60 = arith.cmpf ogt, %58, %59 : vector<256x128xf32>
      %cst_38 = arith.constant 0.00999999977 : f32
      %61 = vector.broadcast %cst_38 : f32 to vector<256x128xf32>
      %62 = arith.mulf %61, %58 : vector<256x128xf32>
      %63 = arith.select %60, %58, %62 : vector<256x128xi1>, vector<256x128xf32>
      %cst_39 = arith.constant dense<0.000000e+00> : vector<256x128xf32>
      %64 = tpu.matmul %63, %53, %cst_39 {dimension_numbers = #tpu.dot_dimension_numbers<[1], [0], [0], [1], [0, 0, 1, 1], [], []>} : vector<256x128xf32>, vector<128x128xf32>, vector<256x128xf32> -> vector<256x128xf32>
      %65 = vector.broadcast %55 : vector<1x128xf32> to vector<256x128xf32>
      %66 = arith.addf %64, %65 : vector<256x128xf32>
      %67 = arith.index_cast %16 : i32 to index
      %c0_40 = arith.constant 0 : index
      %68 = vector.load %arg9[%67, %c0_40] : memref<512x128xf32, #tpu.memory_space<vmem>>, vector<256x128xf32>
      tpu.vector_store %arg9[%67, %c0_40], %66 {strides = array<i32>} : memref<512x128xf32, #tpu.memory_space<vmem>>, vector<256x128xf32>,
      %69 = tpu.iota {dimensions = array<i32: 0>} : vector<256x128xi32>
      %70 = vector.broadcast %16 : i32 to vector<256x128xi32>
      %71 = arith.addi %69, %70 : vector<256x128xi32>
      %c300_i32 = arith.constant 300 : i32
      %72 = vector.broadcast %c300_i32 : i32 to vector<256x128xi32>
      %73 = arith.cmpi slt, %71, %72 : vector<256x128xi32>
      %cst_41 = arith.constant 0.000000e+00 : f32
      %74 = vector.broadcast %cst_41 : f32 to vector<256x128xf32>
      %75 = arith.select %73, %66, %74 : vector<256x128xi1>, vector<256x128xf32>
      %c0_42 = arith.constant 0 : index
      %c0_43 = arith.constant 0 : index
      %76 = vector.load %arg12[%c0_42, %c0_43] : memref<8x128xf32, #tpu.memory_space<vmem>>, vector<1x128xf32>
      %cst_44 = arith.constant dense<0.000000e+00> : vector<128xf32>
      %77 = vector.multi_reduction <add>, %75, %cst_44 [0] : vector<256x128xf32> to vector<128xf32>
      %78 = vector.shape_cast %77 : vector<128xf32> to vector<1x128xf32>
      %79 = arith.addf %76, %78 : vector<1x128xf32>
      %c0_45 = arith.constant 0 : index
      %c0_46 = arith.constant 0 : index
      %80 = vector.load %arg12[%c0_45, %c0_46] : memref<8x128xf32, #tpu.memory_space<vmem>>, vector<1x128xf32>
      tpu.vector_store %arg12[%c0_45, %c0_46], %79 {strides = array<i32>} : memref<8x128xf32, #tpu.memory_space<vmem>>, vector<1x128xf32>,
      %c1 = arith.constant 1 : index
      %c0_47 = arith.constant 0 : index
      %81 = vector.load %arg12[%c1, %c0_47] : memref<8x128xf32, #tpu.memory_space<vmem>>, vector<1x128xf32>
      %82 = arith.mulf %75, %75 : vector<256x128xf32>
      %cst_48 = arith.constant dense<0.000000e+00> : vector<128xf32>
      %83 = vector.multi_reduction <add>, %82, %cst_48 [0] : vector<256x128xf32> to vector<128xf32>
      %84 = vector.shape_cast %83 : vector<128xf32> to vector<1x128xf32>
      %85 = arith.addf %81, %84 : vector<1x128xf32>
      %c1_49 = arith.constant 1 : index
      %c0_50 = arith.constant 0 : index
      %86 = vector.load %arg12[%c1_49, %c0_50] : memref<8x128xf32, #tpu.memory_space<vmem>>, vector<1x128xf32>
      tpu.vector_store %arg12[%c1_49, %c0_50], %85 {strides = array<i32>} : memref<8x128xf32, #tpu.memory_space<vmem>>, vector<1x128xf32>,
    } else {
    }
    %c1_i32 = arith.constant 1 : i32
    %28 = arith.cmpi eq, %arg1, %c1_i32 : i32
    %c0_i32_16 = arith.constant 0 : i32
    %29 = arith.cmpi eq, %arg2, %c0_i32_16 : i32
    %30 = arith.andi %28, %29 : i1
    %31 = arith.extui %30 : i1 to i32
    %c0_i32_17 = arith.constant 0 : i32
    %32 = arith.cmpi ne, %31, %c0_i32_17 : i32
    scf.if %32 {
      %c0_22 = arith.constant 0 : index
      %c0_23 = arith.constant 0 : index
      %40 = vector.load %arg12[%c0_22, %c0_23] : memref<8x128xf32, #tpu.memory_space<vmem>>, vector<1x128xf32>
      %cst_24 = arith.constant 0.00333333341 : f32
      %41 = vector.broadcast %cst_24 : f32 to vector<1x128xf32>
      %42 = arith.mulf %40, %41 : vector<1x128xf32>
      %c1 = arith.constant 1 : index
      %c0_25 = arith.constant 0 : index
      %43 = vector.load %arg12[%c1, %c0_25] : memref<8x128xf32, #tpu.memory_space<vmem>>, vector<1x128xf32>
      %cst_26 = arith.constant 0.00333333341 : f32
      %44 = vector.broadcast %cst_26 : f32 to vector<1x128xf32>
      %45 = arith.mulf %43, %44 : vector<1x128xf32>
      %46 = arith.mulf %42, %42 : vector<1x128xf32>
      %47 = arith.subf %45, %46 : vector<1x128xf32>
      %c0_27 = arith.constant 0 : index
      %c258 = arith.constant 258 : index
      %c0_28 = arith.constant 0 : index
      %48 = vector.load %arg6[%c0_27, %c258, %c0_28] : memref<1x264x128xf32, #tpu.memory_space<vmem>>, vector<1x1x128xf32>
      %49 = vector.shape_cast %48 : vector<1x1x128xf32> to vector<1x128xf32>
      %c0_29 = arith.constant 0 : index
      %c259 = arith.constant 259 : index
      %c0_30 = arith.constant 0 : index
      %50 = vector.load %arg6[%c0_29, %c259, %c0_30] : memref<1x264x128xf32, #tpu.memory_space<vmem>>, vector<1x1x128xf32>
      %51 = vector.shape_cast %50 : vector<1x1x128xf32> to vector<1x128xf32>
      %cst_31 = arith.constant 9.99999974E-6 : f32
      %52 = vector.broadcast %cst_31 : f32 to vector<1x128xf32>
      %53 = arith.addf %47, %52 : vector<1x128xf32>
      %54 = math.rsqrt %53 : vector<1x128xf32>
      %55 = arith.mulf %49, %54 : vector<1x128xf32>
      %56 = arith.mulf %42, %55 : vector<1x128xf32>
      %57 = arith.subf %51, %56 : vector<1x128xf32>
      %c0_32 = arith.constant 0 : index
      %c0_33 = arith.constant 0 : index
      %58 = vector.load %arg9[%c0_32, %c0_33] : memref<512x128xf32, #tpu.memory_space<vmem>>, vector<512x128xf32>
      %59 = vector.broadcast %55 : vector<1x128xf32> to vector<512x128xf32>
      %60 = arith.mulf %58, %59 : vector<512x128xf32>
      %61 = vector.broadcast %57 : vector<1x128xf32> to vector<512x128xf32>
      %62 = arith.addf %60, %61 : vector<512x128xf32>
      %cst_34 = arith.constant 0.000000e+00 : f32
      %63 = vector.broadcast %cst_34 : f32 to vector<512x128xf32>
      %64 = arith.cmpf ogt, %62, %63 : vector<512x128xf32>
      %cst_35 = arith.constant 0.00999999977 : f32
      %65 = vector.broadcast %cst_35 : f32 to vector<512x128xf32>
      %66 = arith.mulf %65, %62 : vector<512x128xf32>
      %67 = arith.select %64, %62, %66 : vector<512x128xi1>, vector<512x128xf32>
      %c0_36 = arith.constant 0 : index
      %c0_37 = arith.constant 0 : index
      %68 = vector.load %arg9[%c0_36, %c0_37] : memref<512x128xf32, #tpu.memory_space<vmem>>, vector<512x128xf32>
      tpu.vector_store %arg9[%c0_36, %c0_37], %67 {strides = array<i32>} : memref<512x128xf32, #tpu.memory_space<vmem>>, vector<512x128xf32>,
      %69 = arith.truncf %67 : vector<512x128xf32> to vector<512x128xbf16>
      %c0_38 = arith.constant 0 : index
      %c0_39 = arith.constant 0 : index
      %70 = vector.load %arg10[%c0_38, %c0_39] : memref<512x128xbf16, #tpu.memory_space<vmem>>, vector<512x128xbf16>
      tpu.vector_store %arg10[%c0_38, %c0_39], %69 {strides = array<i32>} : memref<512x128xbf16, #tpu.memory_space<vmem>>, vector<512x128xbf16>,
    } else {
    }
    %c1_i32_18 = arith.constant 1 : i32
    %33 = arith.cmpi eq, %arg0, %c1_i32_18 : i32
    %c1_i32_19 = arith.constant 1 : i32
    %34 = arith.cmpi eq, %arg1, %c1_i32_19 : i32
    %35 = arith.andi %33, %34 : i1
    %c0_i32_20 = arith.constant 0 : i32
    %36 = arith.cmpi eq, %arg2, %c0_i32_20 : i32
    %37 = arith.andi %35, %36 : i1
    %38 = arith.extui %37 : i1 to i32
    %c0_i32_21 = arith.constant 0 : i32
    %39 = arith.cmpi ne, %38, %c0_i32_21 : i32
    scf.if %39 {
      %c0_22 = arith.constant 0 : index
      %c0_23 = arith.constant 0 : index
      %40 = vector.load %arg5[%c0_22, %c0_23] : memref<8x512xbf16, #tpu.memory_space<vmem>>, vector<8x512xbf16>
      %c0_24 = arith.constant 0 : index
      %c0_25 = arith.constant 0 : index
      %41 = vector.load %arg10[%c0_24, %c0_25] : memref<512x128xbf16, #tpu.memory_space<vmem>>, vector<512x128xbf16>
      %cst_26 = arith.constant dense<0.000000e+00> : vector<8x128xf32>
      %42 = tpu.matmul %40, %41, %cst_26 {dimension_numbers = #tpu.dot_dimension_numbers<[1], [0], [0], [1], [0, 0, 1, 1], [], []>} : vector<8x512xbf16>, vector<512x128xbf16>, vector<8x128xf32> -> vector<8x128xf32>
      %c0_27 = arith.constant 0 : index
      %c0_28 = arith.constant 0 : index
      %43 = vector.load %arg7[%c0_27, %c0_28] : memref<264x128xf32, #tpu.memory_space<vmem>>, vector<128x128xf32>
      %c128 = arith.constant 128 : index
      %c0_29 = arith.constant 0 : index
      %44 = vector.load %arg7[%c128, %c0_29] : memref<264x128xf32, #tpu.memory_space<vmem>>, vector<128x128xf32>
      %c256 = arith.constant 256 : index
      %c0_30 = arith.constant 0 : index
      %45 = vector.load %arg7[%c256, %c0_30] : memref<264x128xf32, #tpu.memory_space<vmem>>, vector<1x128xf32>
      %c257 = arith.constant 257 : index
      %c0_31 = arith.constant 0 : index
      %46 = vector.load %arg7[%c257, %c0_31] : memref<264x128xf32, #tpu.memory_space<vmem>>, vector<1x128xf32>
      %cst_32 = arith.constant dense<0.000000e+00> : vector<8x128xf32>
      %47 = tpu.matmul %42, %43, %cst_32 {dimension_numbers = #tpu.dot_dimension_numbers<[1], [0], [0], [1], [0, 0, 1, 1], [], []>} : vector<8x128xf32>, vector<128x128xf32>, vector<8x128xf32> -> vector<8x128xf32>
      %48 = vector.broadcast %45 : vector<1x128xf32> to vector<8x128xf32>
      %49 = arith.addf %47, %48 : vector<8x128xf32>
      %cst_33 = arith.constant 0.000000e+00 : f32
      %50 = vector.broadcast %cst_33 : f32 to vector<8x128xf32>
      %51 = arith.cmpf ogt, %49, %50 : vector<8x128xf32>
      %cst_34 = arith.constant 0.00999999977 : f32
      %52 = vector.broadcast %cst_34 : f32 to vector<8x128xf32>
      %53 = arith.mulf %52, %49 : vector<8x128xf32>
      %54 = arith.select %51, %49, %53 : vector<8x128xi1>, vector<8x128xf32>
      %cst_35 = arith.constant dense<0.000000e+00> : vector<8x128xf32>
      %55 = tpu.matmul %54, %44, %cst_35 {dimension_numbers = #tpu.dot_dimension_numbers<[1], [0], [0], [1], [0, 0, 1, 1], [], []>} : vector<8x128xf32>, vector<128x128xf32>, vector<8x128xf32> -> vector<8x128xf32>
      %56 = vector.broadcast %46 : vector<1x128xf32> to vector<8x128xf32>
      %57 = arith.addf %55, %56 : vector<8x128xf32>
      %c0_36 = arith.constant 0 : index
      %c0_37 = arith.constant 0 : index
      %58 = vector.load %arg8[%c0_36, %c0_37] : memref<8x128xf32, #tpu.memory_space<vmem>>, vector<8x128xf32>
      tpu.vector_store %arg8[%c0_36, %c0_37], %57 {strides = array<i32>} : memref<8x128xf32, #tpu.memory_space<vmem>>, vector<8x128xf32>,
    } else {
    }
    return
  }
  func.func @transform_2(%arg0: i32, %arg1: i32, %arg2: i32) -> (i32, i32) {
    %c0_i32 = arith.constant 0 : i32
    %c0_i32_0 = arith.constant 0 : i32
    %c0_i32_1 = arith.constant 0 : i32
    return %c0_i32, %c0_i32_0 : i32, i32
  }
  func.func @transform_3(%arg0: i32, %arg1: i32, %arg2: i32) -> (i32, i32, i32) {
    %c0_i32 = arith.constant 0 : i32
    %c0_i32_0 = arith.constant 0 : i32
    %c0_i32_1 = arith.constant 0 : i32
    return %arg0, %c0_i32, %c0_i32_0 : i32, i32, i32
  }
  func.func @transform_4(%arg0: i32, %arg1: i32, %arg2: i32) -> (i32, i32) {
    %c0_i32 = arith.constant 0 : i32
    %c0_i32_0 = arith.constant 0 : i32
    %c0_i32_1 = arith.constant 0 : i32
    return %c0_i32, %c0_i32_0 : i32, i32
  }
  func.func @transform_5(%arg0: i32, %arg1: i32, %arg2: i32) -> (i32, i32) {
    %c0_i32 = arith.constant 0 : i32
    %c0_i32_0 = arith.constant 0 : i32
    %c0_i32_1 = arith.constant 0 : i32
    return %c0_i32, %c0_i32_0 : i32, i32
  }
}

</mosaic_0001>

<llo_original>
// kernel: tpu_custom_call.1
$region0: #{tpu_custom_call.1}
  #allocation0 [shape = 'u32[]', space=smem, size = 0x4, offset = 0x4, fixed_abs, tag = 'smem constant byte address 0x4 - core index']
  #allocation1 [shape = 'u32[144,128]{1,0:T(1,128)}', space=vmem, size = 0x12000, scoped, tag = 'internal scratch']
  #allocation2 [shape = 'f32[512,128]{1,0:T(8,128)}', space=vmem, size = 0x40000, scoped, tag = 'scratch operand']
  #allocation3 [shape = 'bf16[512,128]{1,0:T(16,128)(2,1)}', space=vmem, size = 0x20000, scoped, tag = 'scratch operand']
  #allocation4 [shape = 'f32[256,128]{1,0:T(8,128)}', space=vmem, size = 0x20000, scoped, tag = 'scratch operand']
  #allocation5 [shape = 'f32[8,128]{1,0:T(8,128)}', space=vmem, size = 0x1000, scoped, tag = 'scratch operand']
  #allocation6 [shape = 's32[1]{0}', space=sflag, size = 0x4, scoped, tag = 'scratch operand']
  #allocation7 [shape = 's8[512,512]{1,0:T(32,128)(4,1)}', space=vmem, size = 0x40000, scoped, tag = 'scratch operand']
  #allocation15 [shape = 's32[]', space=sflag, size = 0x4, offset = 0, fixed_abs, tag = 'sflag constant byte address 0x0 - dummy sync flag']
  #allocation16 [shape = 's32[]', space=sflag, size = 0x4, offset = 0, fixed_abs, tag = 'sflag constant byte address 0x0 - dummy sync flag']
  #allocation17 [shape = 'u32[]', space=smem, size = 0x4, offset = 0x44, fixed_abs, tag = 'smem constant byte address 0x44 - assertion arg 0']
  #allocation18 [shape = 'u32[]', space=smem, size = 0x4, offset = 0x48, fixed_abs, tag = 'smem constant byte address 0x48 - assertion arg 1']
  #allocation19 [shape = 's32[]', space=sflag, size = 0x4, offset = 0, fixed_abs, tag = 'sflag constant byte address 0x0 - dummy sync flag']
  #allocation20 [shape = 's32[]', space=sflag, size = 0x4, offset = 0, fixed_abs, tag = 'sflag constant byte address 0x0 - dummy sync flag']
  %s0 = inlined_call_operand.hbm [shape: f32[512,128], index: 0, kind: input, shape index: {}]
  %s1 = inlined_call_operand.hbm [shape: s8[512,512], index: 1, kind: input, shape index: {}]
  %s2 = inlined_call_operand.hbm [shape: bf16[8,512], index: 2, kind: input, shape index: {}]
  %s3 = inlined_call_operand.hbm [shape: f32[2,264,128], index: 3, kind: input, shape index: {}]
  %s4 = inlined_call_operand.hbm [shape: f32[264,128], index: 4, kind: input, shape index: {}]
  %s5 = inlined_call_operand.hbm [shape: f32[8,128], index: 5, kind: output, shape index: {}]
  %s6 = sld [smem:[#allocation0]]
  $region89: #{tpu_custom_call.1} parent=0
    _
  %s8 = ssub.s32 1, %s6
  %s9 = scalar_select 0, %s8, %s6
  $region1: #{tpu_custom_call.1} parent=0
    #allocation8 [shape = 'u8[8192]{0}', space=vmem, size = 0x2000, scoped, tag = 'input window, operand 2, single buffered']
    #allocation9 [shape = 's32[2]{0}', space=sflag, size = 0x8, scoped, tag = 'scoped memory for tpu_custom_call.1']
    #allocation10 [shape = 's32[2]{0}', space=sflag, size = 0x8, scoped, tag = 'scoped memory for tpu_custom_call.1']
    #allocation11 [shape = 'u8[270336]{0}', space=vmem, size = 0x42000, scoped, tag = 'input window, operand 3']
    #allocation12 [shape = 's32[2]{0}', space=sflag, size = 0x8, scoped, tag = 'scoped memory for tpu_custom_call.1']
    #allocation13 [shape = 'u8[135168]{0}', space=vmem, size = 0x21000, scoped, tag = 'input window, operand 4, single buffered']
    #allocation14 [shape = 'u8[4096]{0}', space=vmem, size = 0x1000, scoped, tag = 'output window, operand 0, single buffered']
    %10 = vsyncpa [#allocation9], 0
    %11 = vsyncpa [#allocation12], 0
    %s12 = scalar_lea.sflag [#allocation12], 1
    %13 = vsyncpa %s12, 0
    %14 = vsyncpa [#allocation10], 0
    loop: start=0, step=1, limit=6
    $region2: #{tpu_custom_call.1} parent=1 // loop_pre_header
      _
    $region3: #{tpu_custom_call.1} parent=1 // loop_header
      %s16 = sphi 0, %s20
      %p17 = scmp.ge.s32.totalorder %s16, 6
      %s23 = sphi 0, %s42
      %s24 = sphi 0, %s38
      %s25 = sphi 0, %s34
      %s26 = sphi 0, %s23
      %s27 = sphi 0, %s24
      %s28 = sphi 0, %s25
      %s29 = sphi 0, %s26
      %s30 = sphi 0, %s27
      %s31 = sphi 0, %s28
      %s43 = sphi 0, %s43
      %s45 = sphi 0, %s43
      %s46 = sphi 0, %s45
      %s60 = sphi 0, %s46
      %s66 = sphi 0, %s68
      %s69 = sphi 0, %s66
      %s70 = sphi 0, %s69
      %s86 = sphi 0, %s70
      %s90 = sphi 0, %s90
      %s92 = sphi 0, %s90
      %s93 = sphi 0, %s92
      %s107 = sphi 0, %s93
      %s111 = sphi 0, %s111
      %s113 = sphi 0, %s111
      %s114 = sphi 0, %s113
      %s128 = sphi 0, %s114
    $region4: #{tpu_custom_call.1} parent=1 // loop_header_branch
      %19 = sbr.rel (%p17) target = $region8
    $region5: #{tpu_custom_call.1} parent=1 // loop_body
      %s21 = ssub.s32 %s16, 1
      %s22 = ssub.s32 %s16, 2
      %s32 = sadd.s32 1, %s25
      %p33 = scmp.ge.s32.totalorder %s32, 1
      %s34 = scalar_select %p33, 0, %s32
      %s35 = sadd.s32 1, %s24
      %s36 = scalar_select %p33, %s35, %s24
      %p37 = scmp.ge.s32.totalorder %s36, 2
      %s38 = scalar_select %p37, 0, %s36
      %s39 = sadd.s32 1, %s23
      %s40 = scalar_select %p37, %s39, %s23
      %p41 = scmp.ge.s32.totalorder %s40, 2
      %s42 = scalar_select %p41, 0, %s40
      %s44 = sadd.s32 %s43, 1
      %p47 = scmp.eq.s32.totalorder %s16, 3
      %p48 = scmp.ne.s32.totalorder %s43, %s45
      %p49 = scmp.eq.s32.totalorder %s16, 0
      %p50 = por %p48, %p49
      %p51 = scmp.ne.s32.totalorder %s43, %s45
      %p52 = scmp.eq.s32.totalorder %s21, 3
      %p53 = por %p51, %p52
      %p54 = scmp.ne.s32.totalorder %s45, %s46
      %p55 = scmp.eq.s32.totalorder %s21, 0
      %p56 = por %p54, %p55
      %p57 = scmp.ne.s32.totalorder %s45, %s46
      %p58 = scmp.eq.s32.totalorder %s22, 3
      %p59 = por %p57, %p58
      %p61 = scmp.ne.s32.totalorder %s46, %s60
      %p62 = scmp.eq.s32.totalorder %s22, 0
      %p63 = por %p61, %p62
      %s64 = ssub.s32 %s23, %s42
      %p65 = scmp.eq.s32.totalorder %s64, 0
      %s67 = sadd.s32 %s66, 1
      %s68 = scalar_select %p65, %s66, %s67
      %p71 = pneg %p65
      %p72 = scmp.eq.s32.totalorder %s16, 3
      %p73 = por %p71, %p72
      %p74 = scmp.ne.s32.totalorder %s66, %s69
      %p75 = scmp.eq.s32.totalorder %s16, 0
      %p76 = por %p74, %p75
      %p77 = scmp.ne.s32.totalorder %s66, %s69
      %p78 = scmp.eq.s32.totalorder %s21, 3
      %p79 = por %p77, %p78
      %p80 = scmp.ne.s32.totalorder %s69, %s70
      %p81 = scmp.eq.s32.totalorder %s21, 0
      %p82 = por %p80, %p81
      %p83 = scmp.ne.s32.totalorder %s69, %s70
      %p84 = scmp.eq.s32.totalorder %s22, 3
      %p85 = por %p83, %p84
      %p87 = scmp.ne.s32.totalorder %s70, %s86
      %p88 = scmp.eq.s32.totalorder %s22, 0
      %p89 = por %p87, %p88
      %s91 = sadd.s32 %s90, 1
      %p94 = scmp.eq.s32.totalorder %s16, 3
      %p95 = scmp.ne.s32.totalorder %s90, %s92
      %p96 = scmp.eq.s32.totalorder %s16, 0
      %p97 = por %p95, %p96
      %p98 = scmp.ne.s32.totalorder %s90, %s92
      %p99 = scmp.eq.s32.totalorder %s21, 3
      %p100 = por %p98, %p99
      %p101 = scmp.ne.s32.totalorder %s92, %s93
      %p102 = scmp.eq.s32.totalorder %s21, 0
      %p103 = por %p101, %p102
      %p104 = scmp.ne.s32.totalorder %s92, %s93
      %p105 = scmp.eq.s32.totalorder %s22, 3
      %p106 = por %p104, %p105
      %p108 = scmp.ne.s32.totalorder %s93, %s107
      %p109 = scmp.eq.s32.totalorder %s22, 0
      %p110 = por %p108, %p109
      %s112 = sadd.s32 %s111, 1
      %p115 = scmp.eq.s32.totalorder %s16, 3
      %p116 = scmp.ne.s32.totalorder %s111, %s113
      %p117 = scmp.eq.s32.totalorder %s16, 0
      %p118 = por %p116, %p117
      %p119 = scmp.ne.s32.totalorder %s111, %s113
      %p120 = scmp.eq.s32.totalorder %s21, 3
      %p121 = por %p119, %p120
      %p122 = scmp.ne.s32.totalorder %s113, %s114
      %p123 = scmp.eq.s32.totalorder %s21, 0
      %p124 = por %p122, %p123
      %p125 = scmp.ne.s32.totalorder %s113, %s114
      %p126 = scmp.eq.s32.totalorder %s22, 3
      %p127 = por %p125, %p126
      %p129 = scmp.ne.s32.totalorder %s114, %s128
      %p130 = scmp.eq.s32.totalorder %s22, 0
      %p131 = por %p129, %p130
      %p132 = scmp.le.s32.totalorder 1, %s16
      %p133 = scmp.lt.s32.totalorder %s16, 5
      %p134 = pnand %p132, %p133
      %p135 = pneg %p134
      // Predicated region
      $region9: #{tpu_custom_call.1} parent=5 // pred_check
        _
      $region10: #{tpu_custom_call.1} parent=5 // pred_check_branch
        %137 = sbr.rel (%p134) target = $region12
      $region11: #{tpu_custom_call.1} parent=5 // pred_region
        %s138 = ssub.s32 %s16, 1
        // Predicated region
        $region13: #{tpu_custom_call.1} parent=11 // pred_check
          %p139 = pneg %p56
        $region14: #{tpu_custom_call.1} parent=11 // pred_check_branch
          %141 = sbr.rel (%p139) target = $region16
        $region15: #{tpu_custom_call.1} parent=11 // pred_region
          %s143 = ssub.s32 256, 256
          %144 = vsyncadd [#allocation9], %s143
          %s146 = sshll.u32 [#allocation8], 4
          %s147 = int_to_ptr.vmem [resolvable:$true] %s146
          %149 = dma.hbm_to_vmem [thread:$0]  %s2, 256, %s147, [#allocation9]
        $region16: #{tpu_custom_call.1} parent=11 // pred_fallthru
          _
        // Predicated region
        $region17: #{tpu_custom_call.1} parent=11 // pred_check
          %p150 = pneg %p103
        $region18: #{tpu_custom_call.1} parent=11 // pred_check_branch
          %152 = sbr.rel (%p150) target = $region20
        $region19: #{tpu_custom_call.1} parent=11 // pred_region
          %s154 = ssub.s32 4224, 4224
          %155 = vsyncadd [#allocation12], %s154
          %s156 = sshll.u32 [#allocation13], 4
          %s157 = int_to_ptr.vmem [resolvable:$true] %s156
          %162 = dma.hbm_to_vmem [thread:$0]  %s4, 4224, %s157, [#allocation12], 128, 128, 8
        $region20: #{tpu_custom_call.1} parent=11 // pred_fallthru
          _
      $region12: #{tpu_custom_call.1} parent=5 // pred_fallthru
        _
      %p163 = scmp.lt.s32.totalorder %s16, 4
      // Predicated region
      $region21: #{tpu_custom_call.1} parent=5 // pred_check
        %p164 = pneg %p163
      $region22: #{tpu_custom_call.1} parent=5 // pred_check_branch
        %166 = sbr.rel (%p164) target = $region24
      $region23: #{tpu_custom_call.1} parent=5 // pred_region
        // Predicated region
        $region25: #{tpu_custom_call.1} parent=23 // pred_check
          %p167 = pneg %p76
        $region26: #{tpu_custom_call.1} parent=23 // pred_check_branch
          %169 = sbr.rel (%p167) target = $region28
        $region27: #{tpu_custom_call.1} parent=23 // pred_region
          %s170 = sand.u32 %s16, 1
          %s171 = scalar_lea.sflag [#allocation12], %s170
          %s172 = sand.u32 %s66, 1
          %s173 = smul.addr %s172, 264
          %s174 = scalar_lea.vmem [#allocation11], %s173
          %s176 = ssub.s32 4224, 4224
          %177 = vsyncadd %s171, %s176
          %s178 = smul.addr %s23, 33
          %s179 = smul.addr %s178, 128
          %s180 = scalar_lea.hbm %s3, %s179
          %s181 = sshll.u32 %s174, 4
          %s182 = int_to_ptr.vmem [resolvable:$true] %s181
          %187 = dma.hbm_to_vmem [thread:$0]  %s180, 4224, %s182, %s171, 128, 128, 8
        $region28: #{tpu_custom_call.1} parent=23 // pred_fallthru
          _
      $region24: #{tpu_custom_call.1} parent=5 // pred_fallthru
        _
      %p188 = scmp.le.s32.totalorder 1, %s16
      %p189 = scmp.lt.s32.totalorder %s16, 5
      %p190 = pnand %p188, %p189
      %p191 = pneg %p190
      // Predicated region
      $region29: #{tpu_custom_call.1} parent=5 // pred_check
        _
      $region30: #{tpu_custom_call.1} parent=5 // pred_check_branch
        %193 = sbr.rel (%p190) target = $region32
      $region31: #{tpu_custom_call.1} parent=5 // pred_region
        %s194 = ssub.s32 %s16, 1
        // Predicated region
        $region33: #{tpu_custom_call.1} parent=31 // pred_check
          %p195 = pneg %p56
        $region34: #{tpu_custom_call.1} parent=31 // pred_check_branch
          %197 = sbr.rel (%p195) target = $region36
        $region35: #{tpu_custom_call.1} parent=31 // pred_region
          %198 = dma.done [#allocation9], 256
        $region36: #{tpu_custom_call.1} parent=31 // pred_fallthru
          _
        %s199 = sand.u32 %s21, 1
        %s200 = scalar_lea.sflag [#allocation12], %s199
        %s201 = sand.u32 %s69, 1
        %s202 = smul.addr %s201, 264
        %s203 = scalar_lea.vmem [#allocation11], %s202
        // Predicated region
        $region37: #{tpu_custom_call.1} parent=31 // pred_check
          %p204 = pneg %p82
        $region38: #{tpu_custom_call.1} parent=31 // pred_check_branch
          %206 = sbr.rel (%p204) target = $region40
        $region39: #{tpu_custom_call.1} parent=31 // pred_region
          %207 = dma.done %s200, 4224
        $region40: #{tpu_custom_call.1} parent=31 // pred_fallthru
          _
        // Predicated region
        $region41: #{tpu_custom_call.1} parent=31 // pred_check
          %p208 = pneg %p103
        $region42: #{tpu_custom_call.1} parent=31 // pred_check_branch
          %210 = sbr.rel (%p208) target = $region44
        $region43: #{tpu_custom_call.1} parent=31 // pred_region
          %211 = dma.done [#allocation12], 4224
        $region44: #{tpu_custom_call.1} parent=31 // pred_fallthru
          _
        %p212 = pneg %p56
        %p213 = pneg %p53
        %s214 = sand.u32 %s21, 1
        %s215 = scalar_lea.sflag [#allocation12], %s214
        %s216 = sand.u32 %s69, 1
        %s217 = smul.addr %s216, 264
        %s218 = scalar_lea.vmem [#allocation11], %s217
        %p219 = pneg %p82
        %p220 = pneg %p79
        %p221 = pneg %p103
        %p222 = pneg %p100
        %p223 = pneg %p124
        %p224 = pneg %p121
        %p226 = scmp.eq.s32.totalorder %s26, 0
        %p227 = scmp.eq.s32.totalorder %s27, 0
        %p228 = pnand %p226, %p227
        %p229 = pneg %p228
        %p230 = scmp.eq.s32.totalorder %s28, 0
        %p231 = pnand %p229, %p230
        %p232 = pneg %p231
        // Predicated region
        $region45: #{tpu_custom_call.1} parent=31 // pred_check
          _
        $region46: #{tpu_custom_call.1} parent=31 // pred_check_branch
          %234 = sbr.rel (%p231) target = $region48
        $region47: #{tpu_custom_call.1} parent=31 // pred_region
          // Predicated region
          $region49: #{tpu_custom_call.1} parent=47 // pred_check
            _
          $region50: #{tpu_custom_call.1} parent=47 // pred_check_branch
            %236 = sbr.rel target = $region52
          $region51: #{tpu_custom_call.1} parent=47 // pred_region
            %237 = sst [smem:[#allocation17]] [#allocation16]
            %238 = sst [smem:[#allocation18]] [#allocation15]
          $region52: #{tpu_custom_call.1} parent=47 // pred_fallthru
            _
          %240 = shalt.err (0)
          %s242 = sshll.u32 [#allocation2], 4
          %s243 = int_to_ptr.vmem [resolvable:$true] %s242
          %245 = dma.hbm_to_vmem [thread:$0]  %s0, 8192, %s243, [#allocation6]
          %s246 = smul.u32 512, 1
          %s247 = sshll.u32 %s246, 4
          %248 = dma.done [#allocation6], %s247
          %v249 = vld [vmem:[#allocation2] sm:$0xff]
          %v250 = vld [vmem:[#allocation2 + $0x8] sm:$0xff]
          %v251 = vld [vmem:[#allocation2 + $0x10] sm:$0xff]
          %v252 = vld [vmem:[#allocation2 + $0x18] sm:$0xff]
          %v253 = vld [vmem:[#allocation2 + $0x20] sm:$0xff]
          %v254 = vld [vmem:[#allocation2 + $0x28] sm:$0xff]
          %v255 = vld [vmem:[#allocation2 + $0x30] sm:$0xff]
          %v256 = vld [vmem:[#allocation2 + $0x38] sm:$0xff]
          %v257 = vld [vmem:[#allocation2 + $0x40] sm:$0xff]
          %v258 = vld [vmem:[#allocation2 + $0x48] sm:$0xff]
          %v259 = vld [vmem:[#allocation2 + $0x50] sm:$0xff]
          %v260 = vld [vmem:[#allocation2 + $0x58] sm:$0xff]
          %v261 = vld [vmem:[#allocation2 + $0x60] sm:$0xff]
          %v262 = vld [vmem:[#allocation2 + $0x68] sm:$0xff]
          %v263 = vld [vmem:[#allocation2 + $0x70] sm:$0xff]
          %v264 = vld [vmem:[#allocation2 + $0x78] sm:$0xff]
          %v265 = vld [vmem:[#allocation2 + $0x80] sm:$0xff]
          %v266 = vld [vmem:[#allocation2 + $0x88] sm:$0xff]
          %v267 = vld [vmem:[#allocation2 + $0x90] sm:$0xff]
          %v268 = vld [vmem:[#allocation2 + $0x98] sm:$0xff]
          %v269 = vld [vmem:[#allocation2 + $0xa0] sm:$0xff]
          %v270 = vld [vmem:[#allocation2 + $0xa8] sm:$0xff]
          %v271 = vld [vmem:[#allocation2 + $0xb0] sm:$0xff]
          %v272 = vld [vmem:[#allocation2 + $0xb8] sm:$0xff]
          %v273 = vld [vmem:[#allocation2 + $0xc0] sm:$0xff]
          %v274 = vld [vmem:[#allocation2 + $0xc8] sm:$0xff]
          %v275 = vld [vmem:[#allocation2 + $0xd0] sm:$0xff]
          %v276 = vld [vmem:[#allocation2 + $0xd8] sm:$0xff]
          %v277 = vld [vmem:[#allocation2 + $0xe0] sm:$0xff]
          %v278 = vld [vmem:[#allocation2 + $0xe8] sm:$0xff]
          %v279 = vld [vmem:[#allocation2 + $0xf0] sm:$0xff]
          %v280 = vld [vmem:[#allocation2 + $0xf8] sm:$0xff]
          %v281 = vld [vmem:[#allocation2 + $0x100] sm:$0xff]
          %v282 = vld [vmem:[#allocation2 + $0x108] sm:$0xff]
          %v283 = vld [vmem:[#allocation2 + $0x110] sm:$0xff]
          %v284 = vld [vmem:[#allocation2 + $0x118] sm:$0xff]
          %v285 = vld [vmem:[#allocation2 + $0x120] sm:$0xff]
          %v286 = vld [vmem:[#allocation2 + $0x128] sm:$0xff]
          %v287 = vld [vmem:[#allocation2 + $0x130] sm:$0xff]
          %v288 = vld [vmem:[#allocation2 + $0x138] sm:$0xff]
          %v289 = vld [vmem:[#allocation2 + $0x140] sm:$0xff]
          %v290 = vld [vmem:[#allocation2 + $0x148] sm:$0xff]
          %v291 = vld [vmem:[#allocation2 + $0x150] sm:$0xff]
          %v292 = vld [vmem:[#allocation2 + $0x158] sm:$0xff]
          %v293 = vld [vmem:[#allocation2 + $0x160] sm:$0xff]
          %v294 = vld [vmem:[#allocation2 + $0x168] sm:$0xff]
          %v295 = vld [vmem:[#allocation2 + $0x170] sm:$0xff]
          %v296 = vld [vmem:[#allocation2 + $0x178] sm:$0xff]
          %v297 = vld [vmem:[#allocation2 + $0x180] sm:$0xff]
          %v298 = vld [vmem:[#allocation2 + $0x188] sm:$0xff]
          %v299 = vld [vmem:[#allocation2 + $0x190] sm:$0xff]
          %v300 = vld [vmem:[#allocation2 + $0x198] sm:$0xff]
          %v301 = vld [vmem:[#allocation2 + $0x1a0] sm:$0xff]
          %v302 = vld [vmem:[#allocation2 + $0x1a8] sm:$0xff]
          %v303 = vld [vmem:[#allocation2 + $0x1b0] sm:$0xff]
          %v304 = vld [vmem:[#allocation2 + $0x1b8] sm:$0xff]
          %v305 = vld [vmem:[#allocation2 + $0x1c0] sm:$0xff]
          %v306 = vld [vmem:[#allocation2 + $0x1c8] sm:$0xff]
          %v307 = vld [vmem:[#allocation2 + $0x1d0] sm:$0xff]
          %v308 = vld [vmem:[#allocation2 + $0x1d8] sm:$0xff]
          %v309 = vld [vmem:[#allocation2 + $0x1e0] sm:$0xff]
          %v310 = vld [vmem:[#allocation2 + $0x1e8] sm:$0xff]
          %v311 = vld [vmem:[#allocation2 + $0x1f0] sm:$0xff]
          %v312 = vld [vmem:[#allocation2 + $0x1f8] sm:$0xff]
          %v313 = vpack.c.bf16 %v250, %v249
          %v314 = vpack.c.bf16 %v252, %v251
          %v315 = vpack.c.bf16 %v254, %v253
          %v316 = vpack.c.bf16 %v256, %v255
          %v317 = vpack.c.bf16 %v258, %v257
          %v318 = vpack.c.bf16 %v260, %v259
          %v319 = vpack.c.bf16 %v262, %v261
          %v320 = vpack.c.bf16 %v264, %v263
          %v321 = vpack.c.bf16 %v266, %v265
          %v322 = vpack.c.bf16 %v268, %v267
          %v323 = vpack.c.bf16 %v270, %v269
          %v324 = vpack.c.bf16 %v272, %v271
          %v325 = vpack.c.bf16 %v274, %v273
          %v326 = vpack.c.bf16 %v276, %v275
          %v327 = vpack.c.bf16 %v278, %v277
          %v328 = vpack.c.bf16 %v280, %v279
          %v329 = vpack.c.bf16 %v282, %v281
          %v330 = vpack.c.bf16 %v284, %v283
          %v331 = vpack.c.bf16 %v286, %v285
          %v332 = vpack.c.bf16 %v288, %v287
          %v333 = vpack.c.bf16 %v290, %v289
          %v334 = vpack.c.bf16 %v292, %v291
          %v335 = vpack.c.bf16 %v294, %v293
          %v336 = vpack.c.bf16 %v296, %v295
          %v337 = vpack.c.bf16 %v298, %v297
          %v338 = vpack.c.bf16 %v300, %v299
          %v339 = vpack.c.bf16 %v302, %v301
          %v340 = vpack.c.bf16 %v304, %v303
          %v341 = vpack.c.bf16 %v306, %v305
          %v342 = vpack.c.bf16 %v308, %v307
          %v343 = vpack.c.bf16 %v310, %v309
          %v344 = vpack.c.bf16 %v312, %v311
          %345 = vst [vmem:[#allocation3] sm:$0xff] %v313
          %346 = vst [vmem:[#allocation3 + $0x8] sm:$0xff] %v314
          %347 = vst [vmem:[#allocation3 + $0x10] sm:$0xff] %v315
          %348 = vst [vmem:[#allocation3 + $0x18] sm:$0xff] %v316
          %349 = vst [vmem:[#allocation3 + $0x20] sm:$0xff] %v317
          %350 = vst [vmem:[#allocation3 + $0x28] sm:$0xff] %v318
          %351 = vst [vmem:[#allocation3 + $0x30] sm:$0xff] %v319
          %352 = vst [vmem:[#allocation3 + $0x38] sm:$0xff] %v320
          %353 = vst [vmem:[#allocation3 + $0x40] sm:$0xff] %v321
          %354 = vst [vmem:[#allocation3 + $0x48] sm:$0xff] %v322
          %355 = vst [vmem:[#allocation3 + $0x50] sm:$0xff] %v323
          %356 = vst [vmem:[#allocation3 + $0x58] sm:$0xff] %v324
          %357 = vst [vmem:[#allocation3 + $0x60] sm:$0xff] %v325
          %358 = vst [vmem:[#allocation3 + $0x68] sm:$0xff] %v326
          %359 = vst [vmem:[#allocation3 + $0x70] sm:$0xff] %v327
          %360 = vst [vmem:[#allocation3 + $0x78] sm:$0xff] %v328
          %361 = vst [vmem:[#allocation3 + $0x80] sm:$0xff] %v329
          %362 = vst [vmem:[#allocation3 + $0x88] sm:$0xff] %v330
          %363 = vst [vmem:[#allocation3 + $0x90] sm:$0xff] %v331
          %364 = vst [vmem:[#allocation3 + $0x98] sm:$0xff] %v332
          %365 = vst [vmem:[#allocation3 + $0xa0] sm:$0xff] %v333
          %366 = vst [vmem:[#allocation3 + $0xa8] sm:$0xff] %v334
          %367 = vst [vmem:[#allocation3 + $0xb0] sm:$0xff] %v335
          %368 = vst [vmem:[#allocation3 + $0xb8] sm:$0xff] %v336
          %369 = vst [vmem:[#allocation3 + $0xc0] sm:$0xff] %v337
          %370 = vst [vmem:[#allocation3 + $0xc8] sm:$0xff] %v338
          %371 = vst [vmem:[#allocation3 + $0xd0] sm:$0xff] %v339
          %372 = vst [vmem:[#allocation3 + $0xd8] sm:$0xff] %v340
          %373 = vst [vmem:[#allocation3 + $0xe0] sm:$0xff] %v341
          %374 = vst [vmem:[#allocation3 + $0xe8] sm:$0xff] %v342
          %375 = vst [vmem:[#allocation3 + $0xf0] sm:$0xff] %v343
          %376 = vst [vmem:[#allocation3 + $0xf8] sm:$0xff] %v344
          // Predicated region
          $region53: #{tpu_custom_call.1} parent=47 // pred_check
            _
          $region54: #{tpu_custom_call.1} parent=47 // pred_check_branch
            %378 = sbr.rel target = $region56
          $region55: #{tpu_custom_call.1} parent=47 // pred_region
            %379 = sst [smem:[#allocation17]] [#allocation20]
            %380 = sst [smem:[#allocation18]] [#allocation19]
          $region56: #{tpu_custom_call.1} parent=47 // pred_fallthru
            _
          %382 = shalt.err (0)
          %s384 = sshll.u32 [#allocation7], 4
          %s385 = int_to_ptr.vmem [resolvable:$true] %s384
          %387 = dma.hbm_to_vmem [thread:$0]  %s1, 8192, %s385, [#allocation6]
          %s388 = smul.u32 2, 64
          %s389 = smul.u32 %s388, 4
          %s390 = sshll.u32 %s389, 4
          %391 = dma.done [#allocation6], %s390
        $region48: #{tpu_custom_call.1} parent=31 // pred_fallthru
          _
        // Predicated region
        $region57: #{tpu_custom_call.1} parent=31 // pred_check
          %p392 = pneg %p230
        $region58: #{tpu_custom_call.1} parent=31 // pred_check_branch
          %394 = sbr.rel (%p392) target = $region60
        $region59: #{tpu_custom_call.1} parent=31 // pred_region
          %395 = vst [vmem:[#allocation4] sm:$0xff] 0.0
          %396 = vst [vmem:[#allocation4 + $0x8] sm:$0xff] 0.0
          %397 = vst [vmem:[#allocation4 + $0x10] sm:$0xff] 0.0
          %398 = vst [vmem:[#allocation4 + $0x18] sm:$0xff] 0.0
          %399 = vst [vmem:[#allocation4 + $0x20] sm:$0xff] 0.0
          %400 = vst [vmem:[#allocation4 + $0x28] sm:$0xff] 0.0
          %401 = vst [vmem:[#allocation4 + $0x30] sm:$0xff] 0.0
          %402 = vst [vmem:[#allocation4 + $0x38] sm:$0xff] 0.0
          %403 = vst [vmem:[#allocation4 + $0x40] sm:$0xff] 0.0
          %404 = vst [vmem:[#allocation4 + $0x48] sm:$0xff] 0.0
          %405 = vst [vmem:[#allocation4 + $0x50] sm:$0xff] 0.0
          %406 = vst [vmem:[#allocation4 + $0x58] sm:$0xff] 0.0
          %407 = vst [vmem:[#allocation4 + $0x60] sm:$0xff] 0.0
          %408 = vst [vmem:[#allocation4 + $0x68] sm:$0xff] 0.0
          %409 = vst [vmem:[#allocation4 + $0x70] sm:$0xff] 0.0
          %410 = vst [vmem:[#allocation4 + $0x78] sm:$0xff] 0.0
          %411 = vst [vmem:[#allocation4 + $0x80] sm:$0xff] 0.0
          %412 = vst [vmem:[#allocation4 + $0x88] sm:$0xff] 0.0
          %413 = vst [vmem:[#allocation4 + $0x90] sm:$0xff] 0.0
          %414 = vst [vmem:[#allocation4 + $0x98] sm:$0xff] 0.0
          %415 = vst [vmem:[#allocation4 + $0xa0] sm:$0xff] 0.0
          %416 = vst [vmem:[#allocation4 + $0xa8] sm:$0xff] 0.0
          %417 = vst [vmem:[#allocation4 + $0xb0] sm:$0xff] 0.0
          %418 = vst [vmem:[#allocation4 + $0xb8] sm:$0xff] 0.0
          %419 = vst [vmem:[#allocation4 + $0xc0] sm:$0xff] 0.0
          %420 = vst [vmem:[#allocation4 + $0xc8] sm:$0xff] 0.0
          %421 = vst [vmem:[#allocation4 + $0xd0] sm:$0xff] 0.0
          %422 = vst [vmem:[#allocation4 + $0xd8] sm:$0xff] 0.0
          %423 = vst [vmem:[#allocation4 + $0xe0] sm:$0xff] 0.0
          %424 = vst [vmem:[#allocation4 + $0xe8] sm:$0xff] 0.0
          %425 = vst [vmem:[#allocation4 + $0xf0] sm:$0xff] 0.0
          %426 = vst [vmem:[#allocation4 + $0xf8] sm:$0xff] 0.0
        $region60: #{tpu_custom_call.1} parent=31 // pred_fallthru
          _
        %p427 = pnand %p227, %p230
        %p428 = pneg %p427
        // Predicated region
        $region61: #{tpu_custom_call.1} parent=31 // pred_check
          _
        $region62: #{tpu_custom_call.1} parent=31 // pred_check_branch
          %430 = sbr.rel (%p427) target = $region64
        $region63: #{tpu_custom_call.1} parent=31 // pred_region
          %431 = vst [vmem:[#allocation5] sm:$0xff] 0.0
        $region64: #{tpu_custom_call.1} parent=31 // pred_fallthru
          _
        %s432 = smul.u32 %s27, 256
        %s433 = sshra.s32 %s432, 5
        %s434 = sand.u32 %s432, 31
        %s435 = smul.u32 %s433, 4
        %s436 = smul.addr %s435, 8
        %s437 = scalar_lea.vmem [#allocation7], %s436
        %v438 = vld [vmem:[%s437] sm:$0xff]
        %v439 = vld [vmem:[%s437 + $0x8] sm:$0xff]
        %v440 = vld [vmem:[%s437 + $0x10] sm:$0xff]
        %v441 = vld [vmem:[%s437 + $0x18] sm:$0xff]
        %v442 = vld [vmem:[%s437 + $0x20] sm:$0xff]
        %v443 = vld [vmem:[%s437 + $0x28] sm:$0xff]
        %v444 = vld [vmem:[%s437 + $0x30] sm:$0xff]
        %v445 = vld [vmem:[%s437 + $0x38] sm:$0xff]
        %v446 = vld [vmem:[%s437 + $0x40] sm:$0xff]
        %v447 = vld [vmem:[%s437 + $0x48] sm:$0xff]
        %v448 = vld [vmem:[%s437 + $0x50] sm:$0xff]
        %v449 = vld [vmem:[%s437 + $0x58] sm:$0xff]
        %v450 = vld [vmem:[%s437 + $0x60] sm:$0xff]
        %v451 = vld [vmem:[%s437 + $0x68] sm:$0xff]
        %v452 = vld [vmem:[%s437 + $0x70] sm:$0xff]
        %v453 = vld [vmem:[%s437 + $0x78] sm:$0xff]
        %v454 = vld [vmem:[%s437 + $0x80] sm:$0xff]
        %v455 = vld [vmem:[%s437 + $0x88] sm:$0xff]
        %v456 = vld [vmem:[%s437 + $0x90] sm:$0xff]
        %v457 = vld [vmem:[%s437 + $0x98] sm:$0xff]
        %v458 = vld [vmem:[%s437 + $0xa0] sm:$0xff]
        %v459 = vld [vmem:[%s437 + $0xa8] sm:$0xff]
        %v460 = vld [vmem:[%s437 + $0xb0] sm:$0xff]
        %v461 = vld [vmem:[%s437 + $0xb8] sm:$0xff]
        %v462 = vld [vmem:[%s437 + $0xc0] sm:$0xff]
        %v463 = vld [vmem:[%s437 + $0xc8] sm:$0xff]
        %v464 = vld [vmem:[%s437 + $0xd0] sm:$0xff]
        %v465 = vld [vmem:[%s437 + $0xd8] sm:$0xff]
        %v466 = vld [vmem:[%s437 + $0xe0] sm:$0xff]
        %v467 = vld [vmem:[%s437 + $0xe8] sm:$0xff]
        %v468 = vld [vmem:[%s437 + $0xf0] sm:$0xff]
        %v469 = vld [vmem:[%s437 + $0xf8] sm:$0xff]
        %v470 = vunpack.c.l.s8.bf16 %v438
        %v471 = vunpack.c.l.s8.bf16 %v439
        %v472 = vunpack.c.l.s8.bf16 %v440
        %v473 = vunpack.c.l.s8.bf16 %v441
        %v474 = vunpack.c.h.s8.bf16 %v438
        %v475 = vunpack.c.h.s8.bf16 %v439
        %v476 = vunpack.c.h.s8.bf16 %v440
        %v477 = vunpack.c.h.s8.bf16 %v441
        %v478 = vunpack.c.l.s8.bf16 %v442
        %v479 = vunpack.c.l.s8.bf16 %v443
        %v480 = vunpack.c.l.s8.bf16 %v444
        %v481 = vunpack.c.l.s8.bf16 %v445
        %v482 = vunpack.c.h.s8.bf16 %v442
        %v483 = vunpack.c.h.s8.bf16 %v443
        %v484 = vunpack.c.h.s8.bf16 %v444
        %v485 = vunpack.c.h.s8.bf16 %v445
        %v486 = vunpack.c.l.s8.bf16 %v446
        %v487 = vunpack.c.l.s8.bf16 %v447
        %v488 = vunpack.c.l.s8.bf16 %v448
        %v489 = vunpack.c.l.s8.bf16 %v449
        %v490 = vunpack.c.h.s8.bf16 %v446
        %v491 = vunpack.c.h.s8.bf16 %v447
        %v492 = vunpack.c.h.s8.bf16 %v448
        %v493 = vunpack.c.h.s8.bf16 %v449
        %v494 = vunpack.c.l.s8.bf16 %v450
        %v495 = vunpack.c.l.s8.bf16 %v451
        %v496 = vunpack.c.l.s8.bf16 %v452
        %v497 = vunpack.c.l.s8.bf16 %v453
        %v498 = vunpack.c.h.s8.bf16 %v450
        %v499 = vunpack.c.h.s8.bf16 %v451
        %v500 = vunpack.c.h.s8.bf16 %v452
        %v501 = vunpack.c.h.s8.bf16 %v453
        %v502 = vunpack.c.l.s8.bf16 %v454
        %v503 = vunpack.c.l.s8.bf16 %v455
        %v504 = vunpack.c.l.s8.bf16 %v456
        %v505 = vunpack.c.l.s8.bf16 %v457
        %v506 = vunpack.c.h.s8.bf16 %v454
        %v507 = vunpack.c.h.s8.bf16 %v455
        %v508 = vunpack.c.h.s8.bf16 %v456
        %v509 = vunpack.c.h.s8.bf16 %v457
        %v510 = vunpack.c.l.s8.bf16 %v458
        %v511 = vunpack.c.l.s8.bf16 %v459
        %v512 = vunpack.c.l.s8.bf16 %v460
        %v513 = vunpack.c.l.s8.bf16 %v461
        %v514 = vunpack.c.h.s8.bf16 %v458
        %v515 = vunpack.c.h.s8.bf16 %v459
        %v516 = vunpack.c.h.s8.bf16 %v460
        %v517 = vunpack.c.h.s8.bf16 %v461
        %v518 = vunpack.c.l.s8.bf16 %v462
        %v519 = vunpack.c.l.s8.bf16 %v463
        %v520 = vunpack.c.l.s8.bf16 %v464
        %v521 = vunpack.c.l.s8.bf16 %v465
        %v522 = vunpack.c.h.s8.bf16 %v462
        %v523 = vunpack.c.h.s8.bf16 %v463
        %v524 = vunpack.c.h.s8.bf16 %v464
        %v525 = vunpack.c.h.s8.bf16 %v465
        %v526 = vunpack.c.l.s8.bf16 %v466
        %v527 = vunpack.c.l.s8.bf16 %v467
        %v528 = vunpack.c.l.s8.bf16 %v468
        %v529 = vunpack.c.l.s8.bf16 %v469
        %v530 = vunpack.c.h.s8.bf16 %v466
        %v531 = vunpack.c.h.s8.bf16 %v467
        %v532 = vunpack.c.h.s8.bf16 %v468
        %v533 = vunpack.c.h.s8.bf16 %v469
        %v534 = vld [vmem:[#allocation3] sm:$0xff]
        %v535 = vld [vmem:[#allocation3 + $0x8] sm:$0xff]
        %v536 = vld [vmem:[#allocation3 + $0x10] sm:$0xff]
        %v537 = vld [vmem:[#allocation3 + $0x18] sm:$0xff]
        %v538 = vld [vmem:[#allocation3 + $0x20] sm:$0xff]
        %v539 = vld [vmem:[#allocation3 + $0x28] sm:$0xff]
        %v540 = vld [vmem:[#allocation3 + $0x30] sm:$0xff]
        %v541 = vld [vmem:[#allocation3 + $0x38] sm:$0xff]
        %v542 = vld [vmem:[#allocation3 + $0x40] sm:$0xff]
        %v543 = vld [vmem:[#allocation3 + $0x48] sm:$0xff]
        %v544 = vld [vmem:[#allocation3 + $0x50] sm:$0xff]
        %v545 = vld [vmem:[#allocation3 + $0x58] sm:$0xff]
        %v546 = vld [vmem:[#allocation3 + $0x60] sm:$0xff]
        %v547 = vld [vmem:[#allocation3 + $0x68] sm:$0xff]
        %v548 = vld [vmem:[#allocation3 + $0x70] sm:$0xff]
        %v549 = vld [vmem:[#allocation3 + $0x78] sm:$0xff]
        %v550 = vld [vmem:[#allocation3 + $0x80] sm:$0xff]
        %v551 = vld [vmem:[#allocation3 + $0x88] sm:$0xff]
        %v552 = vld [vmem:[#allocation3 + $0x90] sm:$0xff]
        %v553 = vld [vmem:[#allocation3 + $0x98] sm:$0xff]
        %v554 = vld [vmem:[#allocation3 + $0xa0] sm:$0xff]
        %v555 = vld [vmem:[#allocation3 + $0xa8] sm:$0xff]
        %v556 = vld [vmem:[#allocation3 + $0xb0] sm:$0xff]
        %v557 = vld [vmem:[#allocation3 + $0xb8] sm:$0xff]
        %v558 = vld [vmem:[#allocation3 + $0xc0] sm:$0xff]
        %v559 = vld [vmem:[#allocation3 + $0xc8] sm:$0xff]
        %v560 = vld [vmem:[#allocation3 + $0xd0] sm:$0xff]
        %v561 = vld [vmem:[#allocation3 + $0xd8] sm:$0xff]
        %v562 = vld [vmem:[#allocation3 + $0xe0] sm:$0xff]
        %v563 = vld [vmem:[#allocation3 + $0xe8] sm:$0xff]
        %v564 = vld [vmem:[#allocation3 + $0xf0] sm:$0xff]
        %v565 = vld [vmem:[#allocation3 + $0xf8] sm:$0xff]
        %v566 = vld [vmem:[#allocation4] sm:$0xff]
        %v567 = vld [vmem:[#allocation4 + $0x8] sm:$0xff]
        %v568 = vld [vmem:[#allocation4 + $0x10] sm:$0xff]
        %v569 = vld [vmem:[#allocation4 + $0x18] sm:$0xff]
        %v570 = vld [vmem:[#allocation4 + $0x20] sm:$0xff]
        %v571 = vld [vmem:[#allocation4 + $0x28] sm:$0xff]
        %v572 = vld [vmem:[#allocation4 + $0x30] sm:$0xff]
        %v573 = vld [vmem:[#allocation4 + $0x38] sm:$0xff]
        %v574 = vld [vmem:[#allocation4 + $0x40] sm:$0xff]
        %v575 = vld [vmem:[#allocation4 + $0x48] sm:$0xff]
        %v576 = vld [vmem:[#allocation4 + $0x50] sm:$0xff]
        %v577 = vld [vmem:[#allocation4 + $0x58] sm:$0xff]
        %v578 = vld [vmem:[#allocation4 + $0x60] sm:$0xff]
        %v579 = vld [vmem:[#allocation4 + $0x68] sm:$0xff]
        %v580 = vld [vmem:[#allocation4 + $0x70] sm:$0xff]
        %v581 = vld [vmem:[#allocation4 + $0x78] sm:$0xff]
        %v582 = vld [vmem:[#allocation4 + $0x80] sm:$0xff]
        %v583 = vld [vmem:[#allocation4 + $0x88] sm:$0xff]
        %v584 = vld [vmem:[#allocation4 + $0x90] sm:$0xff]
        %v585 = vld [vmem:[#allocation4 + $0x98] sm:$0xff]
        %v586 = vld [vmem:[#allocation4 + $0xa0] sm:$0xff]
        %v587 = vld [vmem:[#allocation4 + $0xa8] sm:$0xff]
        %v588 = vld [vmem:[#allocation4 + $0xb0] sm:$0xff]
        %v589 = vld [vmem:[#allocation4 + $0xb8] sm:$0xff]
        %v590 = vld [vmem:[#allocation4 + $0xc0] sm:$0xff]
        %v591 = vld [vmem:[#allocation4 + $0xc8] sm:$0xff]
        %v592 = vld [vmem:[#allocation4 + $0xd0] sm:$0xff]
        %v593 = vld [vmem:[#allocation4 + $0xd8] sm:$0xff]
        %v594 = vld [vmem:[#allocation4 + $0xe0] sm:$0xff]
        %v595 = vld [vmem:[#allocation4 + $0xe8] sm:$0xff]
        %v596 = vld [vmem:[#allocation4 + $0xf0] sm:$0xff]
        %v597 = vld [vmem:[#allocation4 + $0xf8] sm:$0xff]
        %598 = vmatprep.subr.bf16.mxu0 0
        %599 = vmatpush1.bf16.msra.mxu0 %v534
        %600 = vmatprep.subr.bf16.mxu0 0
        %601 = vmatpush1.bf16.msra.mxu0 %v535
        %602 = vmatprep.subr.bf16.mxu0 0
        %603 = vmatpush1.bf16.msra.mxu0 %v536
        %604 = vmatprep.subr.bf16.mxu0 0
        %605 = vmatpush1.bf16.msra.mxu0 %v537
        %606 = vmatprep.subr.bf16.mxu0 0
        %607 = vmatpush1.bf16.msra.mxu0 %v538
        %608 = vmatprep.subr.bf16.mxu0 0
        %609 = vmatpush1.bf16.msra.mxu0 %v539
        %610 = vmatprep.subr.bf16.mxu0 0
        %611 = vmatpush1.bf16.msra.mxu0 %v540
        %612 = vmatprep.subr.bf16.mxu0 0
        %613 = vmatpush1.bf16.msra.mxu0 %v541
        %614 = vmatprep.subr.bf16.mxu0 0
        %615 = vmatpush1.bf16.msra.mxu0 %v542
        %616 = vmatprep.subr.bf16.mxu0 0
        %617 = vmatpush1.bf16.msra.mxu0 %v543
        %618 = vmatprep.subr.bf16.mxu0 0
        %619 = vmatpush1.bf16.msra.mxu0 %v544
        %620 = vmatprep.subr.bf16.mxu0 0
        %621 = vmatpush1.bf16.msra.mxu0 %v545
        %622 = vmatprep.subr.bf16.mxu0 0
        %623 = vmatpush1.bf16.msra.mxu0 %v546
        %624 = vmatprep.subr.bf16.mxu0 0
        %625 = vmatpush1.bf16.msra.mxu0 %v547
        %626 = vmatprep.subr.bf16.mxu0 0
        %627 = vmatpush1.bf16.msra.mxu0 %v548
        %628 = vmatprep.subr.bf16.mxu0 0
        %629 = vmatpush1.bf16.msra.mxu0 %v549
        %630 = vmatprep.mubr.bf16.mxu0 %v471
        %631 = vmatmul.mubr.bf16.gmra.mrb[0].mxu0 %v470
        %v632 = vpop.f32.mrb[0].mxu0
        %v633 = vadd.f32 0.0, %v632
        %v634 = vpop.f32.mrb[0].mxu0
        %v635 = vpop.f32.mrb[0].mxu0
        %v636 = vadd.f32 0.0, %v635
        %v637 = vpop.f32.mrb[0].mxu0
        %638 = vmatprep.mubr.bf16.mxu0 %v475
        %639 = vmatmul.mubr.bf16.gmra.mrb[0].mxu0 %v474
        %v640 = vpop.f32.mrb[0].mxu0
        %v641 = vadd.f32 0.0, %v640
        %v642 = vpop.f32.mrb[0].mxu0
        %v643 = vpop.f32.mrb[0].mxu0
        %v644 = vadd.f32 0.0, %v643
        %v645 = vpop.f32.mrb[0].mxu0
        %646 = vmatprep.mubr.bf16.mxu0 %v479
        %647 = vmatmul.mubr.bf16.gmra.mrb[0].mxu0 %v478
        %v648 = vpop.f32.mrb[0].mxu0
        %v649 = vadd.f32 0.0, %v648
        %v650 = vpop.f32.mrb[0].mxu0
        %v651 = vpop.f32.mrb[0].mxu0
        %v652 = vadd.f32 0.0, %v651
        %v653 = vpop.f32.mrb[0].mxu0
        %654 = vmatprep.mubr.bf16.mxu0 %v483
        %655 = vmatmul.mubr.bf16.gmra.mrb[0].mxu0 %v482
        %v656 = vpop.f32.mrb[0].mxu0
        %v657 = vadd.f32 0.0, %v656
        %v658 = vpop.f32.mrb[0].mxu0
        %v659 = vpop.f32.mrb[0].mxu0
        %v660 = vadd.f32 0.0, %v659
        %v661 = vpop.f32.mrb[0].mxu0
        %662 = vmatprep.mubr.bf16.mxu0 %v487
        %663 = vmatmul.mubr.bf16.gmra.mrb[0].mxu0 %v486
        %v664 = vpop.f32.mrb[0].mxu0
        %v665 = vadd.f32 0.0, %v664
        %v666 = vpop.f32.mrb[0].mxu0
        %v667 = vpop.f32.mrb[0].mxu0
        %v668 = vadd.f32 0.0, %v667
        %v669 = vpop.f32.mrb[0].mxu0
        %670 = vmatprep.mubr.bf16.mxu0 %v491
        %671 = vmatmul.mubr.bf16.gmra.mrb[0].mxu0 %v490
        %v672 = vpop.f32.mrb[0].mxu0
        %v673 = vadd.f32 0.0, %v672
        %v674 = vpop.f32.mrb[0].mxu0
        %v675 = vpop.f32.mrb[0].mxu0
        %v676 = vadd.f32 0.0, %v675
        %v677 = vpop.f32.mrb[0].mxu0
        %678 = vmatprep.mubr.bf16.mxu0 %v495
        %679 = vmatmul.mubr.bf16.gmra.mrb[0].mxu0 %v494
        %v680 = vpop.f32.mrb[0].mxu0
        %v681 = vadd.f32 0.0, %v680
        %v682 = vpop.f32.mrb[0].mxu0
        %v683 = vpop.f32.mrb[0].mxu0
        %v684 = vadd.f32 0.0, %v683
        %v685 = vpop.f32.mrb[0].mxu0
        %686 = vmatprep.mubr.bf16.mxu0 %v499
        %687 = vmatmul.mubr.bf16.gmra.mrb[0].mxu0 %v498
        %v688 = vpop.f32.mrb[0].mxu0
        %v689 = vadd.f32 0.0, %v688
        %v690 = vpop.f32.mrb[0].mxu0
        %v691 = vpop.f32.mrb[0].mxu0
        %v692 = vadd.f32 0.0, %v691
        %v693 = vpop.f32.mrb[0].mxu0
        %694 = vmatprep.mubr.bf16.mxu0 %v503
        %695 = vmatmul.mubr.bf16.gmra.mrb[0].mxu0 %v502
        %v696 = vpop.f32.mrb[0].mxu0
        %v697 = vadd.f32 0.0, %v696
        %v698 = vpop.f32.mrb[0].mxu0
        %v699 = vpop.f32.mrb[0].mxu0
        %v700 = vadd.f32 0.0, %v699
        %v701 = vpop.f32.mrb[0].mxu0
        %702 = vmatprep.mubr.bf16.mxu0 %v507
        %703 = vmatmul.mubr.bf16.gmra.mrb[0].mxu0 %v506
        %v704 = vpop.f32.mrb[0].mxu0
        %v705 = vadd.f32 0.0, %v704
        %v706 = vpop.f32.mrb[0].mxu0
        %v707 = vpop.f32.mrb[0].mxu0
        %v708 = vadd.f32 0.0, %v707
        %v709 = vpop.f32.mrb[0].mxu0
        %710 = vmatprep.mubr.bf16.mxu0 %v511
        %711 = vmatmul.mubr.bf16.gmra.mrb[0].mxu0 %v510
        %v712 = vpop.f32.mrb[0].mxu0
        %v713 = vadd.f32 0.0, %v712
        %v714 = vpop.f32.mrb[0].mxu0
        %v715 = vpop.f32.mrb[0].mxu0
        %v716 = vadd.f32 0.0, %v715
        %v717 = vpop.f32.mrb[0].mxu0
        %718 = vmatprep.mubr.bf16.mxu0 %v515
        %719 = vmatmul.mubr.bf16.gmra.mrb[0].mxu0 %v514
        %v720 = vpop.f32.mrb[0].mxu0
        %v721 = vadd.f32 0.0, %v720
        %v722 = vpop.f32.mrb[0].mxu0
        %v723 = vpop.f32.mrb[0].mxu0
        %v724 = vadd.f32 0.0, %v723
        %v725 = vpop.f32.mrb[0].mxu0
        %726 = vmatprep.mubr.bf16.mxu0 %v519
        %727 = vmatmul.mubr.bf16.gmra.mrb[0].mxu0 %v518
        %v728 = vpop.f32.mrb[0].mxu0
        %v729 = vadd.f32 0.0, %v728
        %v730 = vpop.f32.mrb[0].mxu0
        %v731 = vpop.f32.mrb[0].mxu0
        %v732 = vadd.f32 0.0, %v731
        %v733 = vpop.f32.mrb[0].mxu0
        %734 = vmatprep.mubr.bf16.mxu0 %v523
        %735 = vmatmul.mubr.bf16.gmra.mrb[0].mxu0 %v522
        %v736 = vpop.f32.mrb[0].mxu0
        %v737 = vadd.f32 0.0, %v736
        %v738 = vpop.f32.mrb[0].mxu0
        %v739 = vpop.f32.mrb[0].mxu0
        %v740 = vadd.f32 0.0, %v739
        %v741 = vpop.f32.mrb[0].mxu0
        %742 = vmatprep.mubr.bf16.mxu0 %v527
        %743 = vmatmul.mubr.bf16.gmra.mrb[0].mxu0 %v526
        %v744 = vpop.f32.mrb[0].mxu0
        %v745 = vadd.f32 0.0, %v744
        %v746 = vpop.f32.mrb[0].mxu0
        %v747 = vpop.f32.mrb[0].mxu0
        %v748 = vadd.f32 0.0, %v747
        %v749 = vpop.f32.mrb[0].mxu0
        %750 = vmatprep.mubr.bf16.mxu0 %v531
        %751 = vmatmul.mubr.bf16.gmra.mrb[0].mxu0 %v530
        %v752 = vpop.f32.mrb[0].mxu0
        %v753 = vadd.f32 0.0, %v752
        %v754 = vpop.f32.mrb[0].mxu0
        %v755 = vpop.f32.mrb[0].mxu0
        %v756 = vadd.f32 0.0, %v755
        %v757 = vpop.f32.mrb[0].mxu0
        %758 = vdwg.mxu0
        %759 = vmatprep.subr.bf16.mxu0 0
        %760 = vmatpush1.bf16.msra.mxu0 %v550
        %761 = vmatprep.subr.bf16.mxu0 0
        %762 = vmatpush1.bf16.msra.mxu0 %v551
        %763 = vmatprep.subr.bf16.mxu0 0
        %764 = vmatpush1.bf16.msra.mxu0 %v552
        %765 = vmatprep.subr.bf16.mxu0 0
        %766 = vmatpush1.bf16.msra.mxu0 %v553
        %767 = vmatprep.subr.bf16.mxu0 0
        %768 = vmatpush1.bf16.msra.mxu0 %v554
        %769 = vmatprep.subr.bf16.mxu0 0
        %770 = vmatpush1.bf16.msra.mxu0 %v555
        %771 = vmatprep.subr.bf16.mxu0 0
        %772 = vmatpush1.bf16.msra.mxu0 %v556
        %773 = vmatprep.subr.bf16.mxu0 0
        %774 = vmatpush1.bf16.msra.mxu0 %v557
        %775 = vmatprep.subr.bf16.mxu0 0
        %776 = vmatpush1.bf16.msra.mxu0 %v558
        %777 = vmatprep.subr.bf16.mxu0 0
        %778 = vmatpush1.bf16.msra.mxu0 %v559
        %779 = vmatprep.subr.bf16.mxu0 0
        %780 = vmatpush1.bf16.msra.mxu0 %v560
        %781 = vmatprep.subr.bf16.mxu0 0
        %782 = vmatpush1.bf16.msra.mxu0 %v561
        %783 = vmatprep.subr.bf16.mxu0 0
        %784 = vmatpush1.bf16.msra.mxu0 %v562
        %785 = vmatprep.subr.bf16.mxu0 0
        %786 = vmatpush1.bf16.msra.mxu0 %v563
        %787 = vmatprep.subr.bf16.mxu0 0
        %788 = vmatpush1.bf16.msra.mxu0 %v564
        %789 = vmatprep.subr.bf16.mxu0 0
        %790 = vmatpush1.bf16.msra.mxu0 %v565
        %791 = vmatprep.mubr.bf16.mxu0 %v473
        %792 = vmatmul.mubr.bf16.gmra.mrb[0].mxu0 %v472
        %v793 = vpop.f32.mrb[0].mxu0
        %v794 = vadd.f32 %v633, %v793
        %v795 = vpop.f32.mrb[0].mxu0
        %v796 = vpop.f32.mrb[0].mxu0
        %v797 = vadd.f32 %v636, %v796
        %v798 = vpop.f32.mrb[0].mxu0
        %799 = vmatprep.mubr.bf16.mxu0 %v477
        %800 = vmatmul.mubr.bf16.gmra.mrb[0].mxu0 %v476
        %v801 = vpop.f32.mrb[0].mxu0
        %v802 = vadd.f32 %v641, %v801
        %v803 = vpop.f32.mrb[0].mxu0
        %v804 = vpop.f32.mrb[0].mxu0
        %v805 = vadd.f32 %v644, %v804
        %v806 = vpop.f32.mrb[0].mxu0
        %807 = vmatprep.mubr.bf16.mxu0 %v481
        %808 = vmatmul.mubr.bf16.gmra.mrb[0].mxu0 %v480
        %v809 = vpop.f32.mrb[0].mxu0
        %v810 = vadd.f32 %v649, %v809
        %v811 = vpop.f32.mrb[0].mxu0
        %v812 = vpop.f32.mrb[0].mxu0
        %v813 = vadd.f32 %v652, %v812
        %v814 = vpop.f32.mrb[0].mxu0
        %815 = vmatprep.mubr.bf16.mxu0 %v485
        %816 = vmatmul.mubr.bf16.gmra.mrb[0].mxu0 %v484
        %v817 = vpop.f32.mrb[0].mxu0
        %v818 = vadd.f32 %v657, %v817
        %v819 = vpop.f32.mrb[0].mxu0
        %v820 = vpop.f32.mrb[0].mxu0
        %v821 = vadd.f32 %v660, %v820
        %v822 = vpop.f32.mrb[0].mxu0
        %823 = vmatprep.mubr.bf16.mxu0 %v489
        %824 = vmatmul.mubr.bf16.gmra.mrb[0].mxu0 %v488
        %v825 = vpop.f32.mrb[0].mxu0
        %v826 = vadd.f32 %v665, %v825
        %v827 = vpop.f32.mrb[0].mxu0
        %v828 = vpop.f32.mrb[0].mxu0
        %v829 = vadd.f32 %v668, %v828
        %v830 = vpop.f32.mrb[0].mxu0
        %831 = vmatprep.mubr.bf16.mxu0 %v493
        %832 = vmatmul.mubr.bf16.gmra.mrb[0].mxu0 %v492
        %v833 = vpop.f32.mrb[0].mxu0
        %v834 = vadd.f32 %v673, %v833
        %v835 = vpop.f32.mrb[0].mxu0
        %v836 = vpop.f32.mrb[0].mxu0
        %v837 = vadd.f32 %v676, %v836
        %v838 = vpop.f32.mrb[0].mxu0
        %839 = vmatprep.mubr.bf16.mxu0 %v497
        %840 = vmatmul.mubr.bf16.gmra.mrb[0].mxu0 %v496
        %v841 = vpop.f32.mrb[0].mxu0
        %v842 = vadd.f32 %v681, %v841
        %v843 = vpop.f32.mrb[0].mxu0
        %v844 = vpop.f32.mrb[0].mxu0
        %v845 = vadd.f32 %v684, %v844
        %v846 = vpop.f32.mrb[0].mxu0
        %847 = vmatprep.mubr.bf16.mxu0 %v501
        %848 = vmatmul.mubr.bf16.gmra.mrb[0].mxu0 %v500
        %v849 = vpop.f32.mrb[0].mxu0
        %v850 = vadd.f32 %v689, %v849
        %v851 = vpop.f32.mrb[0].mxu0
        %v852 = vpop.f32.mrb[0].mxu0
        %v853 = vadd.f32 %v692, %v852
        %v854 = vpop.f32.mrb[0].mxu0
        %855 = vmatprep.mubr.bf16.mxu0 %v505
        %856 = vmatmul.mubr.bf16.gmra.mrb[0].mxu0 %v504
        %v857 = vpop.f32.mrb[0].mxu0
        %v858 = vadd.f32 %v697, %v857
        %v859 = vpop.f32.mrb[0].mxu0
        %v860 = vpop.f32.mrb[0].mxu0
        %v861 = vadd.f32 %v700, %v860
        %v862 = vpop.f32.mrb[0].mxu0
        %863 = vmatprep.mubr.bf16.mxu0 %v509
        %864 = vmatmul.mubr.bf16.gmra.mrb[0].mxu0 %v508
        %v865 = vpop.f32.mrb[0].mxu0
        %v866 = vadd.f32 %v705, %v865
        %v867 = vpop.f32.mrb[0].mxu0
        %v868 = vpop.f32.mrb[0].mxu0
        %v869 = vadd.f32 %v708, %v868
        %v870 = vpop.f32.mrb[0].mxu0
        %871 = vmatprep.mubr.bf16.mxu0 %v513
        %872 = vmatmul.mubr.bf16.gmra.mrb[0].mxu0 %v512
        %v873 = vpop.f32.mrb[0].mxu0
        %v874 = vadd.f32 %v713, %v873
        %v875 = vpop.f32.mrb[0].mxu0
        %v876 = vpop.f32.mrb[0].mxu0
        %v877 = vadd.f32 %v716, %v876
        %v878 = vpop.f32.mrb[0].mxu0
        %879 = vmatprep.mubr.bf16.mxu0 %v517
        %880 = vmatmul.mubr.bf16.gmra.mrb[0].mxu0 %v516
        %v881 = vpop.f32.mrb[0].mxu0
        %v882 = vadd.f32 %v721, %v881
        %v883 = vpop.f32.mrb[0].mxu0
        %v884 = vpop.f32.mrb[0].mxu0
        %v885 = vadd.f32 %v724, %v884
        %v886 = vpop.f32.mrb[0].mxu0
        %887 = vmatprep.mubr.bf16.mxu0 %v521
        %888 = vmatmul.mubr.bf16.gmra.mrb[0].mxu0 %v520
        %v889 = vpop.f32.mrb[0].mxu0
        %v890 = vadd.f32 %v729, %v889
        %v891 = vpop.f32.mrb[0].mxu0
        %v892 = vpop.f32.mrb[0].mxu0
        %v893 = vadd.f32 %v732, %v892
        %v894 = vpop.f32.mrb[0].mxu0
        %895 = vmatprep.mubr.bf16.mxu0 %v525
        %896 = vmatmul.mubr.bf16.gmra.mrb[0].mxu0 %v524
        %v897 = vpop.f32.mrb[0].mxu0
        %v898 = vadd.f32 %v737, %v897
        %v899 = vpop.f32.mrb[0].mxu0
        %v900 = vpop.f32.mrb[0].mxu0
        %v901 = vadd.f32 %v740, %v900
        %v902 = vpop.f32.mrb[0].mxu0
        %903 = vmatprep.mubr.bf16.mxu0 %v529
        %904 = vmatmul.mubr.bf16.gmra.mrb[0].mxu0 %v528
        %v905 = vpop.f32.mrb[0].mxu0
        %v906 = vadd.f32 %v745, %v905
        %v907 = vpop.f32.mrb[0].mxu0
        %v908 = vpop.f32.mrb[0].mxu0
        %v909 = vadd.f32 %v748, %v908
        %v910 = vpop.f32.mrb[0].mxu0
        %911 = vmatprep.mubr.bf16.mxu0 %v533
        %912 = vmatmul.mubr.bf16.gmra.mrb[0].mxu0 %v532
        %v913 = vpop.f32.mrb[0].mxu0
        %v914 = vadd.f32 %v753, %v913
        %v915 = vpop.f32.mrb[0].mxu0
        %v916 = vpop.f32.mrb[0].mxu0
        %v917 = vadd.f32 %v756, %v916
        %v918 = vpop.f32.mrb[0].mxu0
        %919 = vdwg.mxu0
        %v920 = vadd.f32 %v566, %v794
        %v921 = vadd.f32 %v567, %v797
        %v922 = vadd.f32 %v568, %v802
        %v923 = vadd.f32 %v569, %v805
        %v924 = vadd.f32 %v570, %v810
        %v925 = vadd.f32 %v571, %v813
        %v926 = vadd.f32 %v572, %v818
        %v927 = vadd.f32 %v573, %v821
        %v928 = vadd.f32 %v574, %v826
        %v929 = vadd.f32 %v575, %v829
        %v930 = vadd.f32 %v576, %v834
        %v931 = vadd.f32 %v577, %v837
        %v932 = vadd.f32 %v578, %v842
        %v933 = vadd.f32 %v579, %v845
        %v934 = vadd.f32 %v580, %v850
        %v935 = vadd.f32 %v581, %v853
        %v936 = vadd.f32 %v582, %v858
        %v937 = vadd.f32 %v583, %v861
        %v938 = vadd.f32 %v584, %v866
        %v939 = vadd.f32 %v585, %v869
        %v940 = vadd.f32 %v586, %v874
        %v941 = vadd.f32 %v587, %v877
        %v942 = vadd.f32 %v588, %v882
        %v943 = vadd.f32 %v589, %v885
        %v944 = vadd.f32 %v590, %v890
        %v945 = vadd.f32 %v591, %v893
        %v946 = vadd.f32 %v592, %v898
        %v947 = vadd.f32 %v593, %v901
        %v948 = vadd.f32 %v594, %v906
        %v949 = vadd.f32 %v595, %v909
        %v950 = vadd.f32 %v596, %v914
        %v951 = vadd.f32 %v597, %v917
        %952 = vst [vmem:[#allocation4] sm:$0xff] %v920
        %953 = vst [vmem:[#allocation4 + $0x8] sm:$0xff] %v921
        %954 = vst [vmem:[#allocation4 + $0x10] sm:$0xff] %v922
        %955 = vst [vmem:[#allocation4 + $0x18] sm:$0xff] %v923
        %956 = vst [vmem:[#allocation4 + $0x20] sm:$0xff] %v924
        %957 = vst [vmem:[#allocation4 + $0x28] sm:$0xff] %v925
        %958 = vst [vmem:[#allocation4 + $0x30] sm:$0xff] %v926
        %959 = vst [vmem:[#allocation4 + $0x38] sm:$0xff] %v927
        %960 = vst [vmem:[#allocation4 + $0x40] sm:$0xff] %v928
        %961 = vst [vmem:[#allocation4 + $0x48] sm:$0xff] %v929
        %962 = vst [vmem:[#allocation4 + $0x50] sm:$0xff] %v930
        %963 = vst [vmem:[#allocation4 + $0x58] sm:$0xff] %v931
        %964 = vst [vmem:[#allocation4 + $0x60] sm:$0xff] %v932
        %965 = vst [vmem:[#allocation4 + $0x68] sm:$0xff] %v933
        %966 = vst [vmem:[#allocation4 + $0x70] sm:$0xff] %v934
        %967 = vst [vmem:[#allocation4 + $0x78] sm:$0xff] %v935
        %968 = vst [vmem:[#allocation4 + $0x80] sm:$0xff] %v936
        %969 = vst [vmem:[#allocation4 + $0x88] sm:$0xff] %v937
        %970 = vst [vmem:[#allocation4 + $0x90] sm:$0xff] %v938
        %971 = vst [vmem:[#allocation4 + $0x98] sm:$0xff] %v939
        %972 = vst [vmem:[#allocation4 + $0xa0] sm:$0xff] %v940
        %973 = vst [vmem:[#allocation4 + $0xa8] sm:$0xff] %v941
        %974 = vst [vmem:[#allocation4 + $0xb0] sm:$0xff] %v942
        %975 = vst [vmem:[#allocation4 + $0xb8] sm:$0xff] %v943
        %976 = vst [vmem:[#allocation4 + $0xc0] sm:$0xff] %v944
        %977 = vst [vmem:[#allocation4 + $0xc8] sm:$0xff] %v945
        %978 = vst [vmem:[#allocation4 + $0xd0] sm:$0xff] %v946
        %979 = vst [vmem:[#allocation4 + $0xd8] sm:$0xff] %v947
        %980 = vst [vmem:[#allocation4 + $0xe0] sm:$0xff] %v948
        %981 = vst [vmem:[#allocation4 + $0xe8] sm:$0xff] %v949
        %982 = vst [vmem:[#allocation4 + $0xf0] sm:$0xff] %v950
        %983 = vst [vmem:[#allocation4 + $0xf8] sm:$0xff] %v951
        // Predicated region
        $region65: #{tpu_custom_call.1} parent=31 // pred_check
          %p984 = pneg %p230
        $region66: #{tpu_custom_call.1} parent=31 // pred_check_branch
          %986 = sbr.rel (%p984) target = $region68
        $region67: #{tpu_custom_call.1} parent=31 // pred_region
          %s987 = scalar_lea.vmem [#allocation2], %s432
          %v988 = vld [vmem:[%s987] sm:$0xff]
          %v989 = vld [vmem:[%s987 + $0x8] sm:$0xff]
          %v990 = vld [vmem:[%s987 + $0x10] sm:$0xff]
          %v991 = vld [vmem:[%s987 + $0x18] sm:$0xff]
          %v992 = vld [vmem:[%s987 + $0x20] sm:$0xff]
          %v993 = vld [vmem:[%s987 + $0x28] sm:$0xff]
          %v994 = vld [vmem:[%s987 + $0x30] sm:$0xff]
          %v995 = vld [vmem:[%s987 + $0x38] sm:$0xff]
          %v996 = vld [vmem:[%s987 + $0x40] sm:$0xff]
          %v997 = vld [vmem:[%s987 + $0x48] sm:$0xff]
          %v998 = vld [vmem:[%s987 + $0x50] sm:$0xff]
          %v999 = vld [vmem:[%s987 + $0x58] sm:$0xff]
          %v1000 = vld [vmem:[%s987 + $0x60] sm:$0xff]
          %v1001 = vld [vmem:[%s987 + $0x68] sm:$0xff]
          %v1002 = vld [vmem:[%s987 + $0x70] sm:$0xff]
          %v1003 = vld [vmem:[%s987 + $0x78] sm:$0xff]
          %v1004 = vld [vmem:[%s987 + $0x80] sm:$0xff]
          %v1005 = vld [vmem:[%s987 + $0x88] sm:$0xff]
          %v1006 = vld [vmem:[%s987 + $0x90] sm:$0xff]
          %v1007 = vld [vmem:[%s987 + $0x98] sm:$0xff]
          %v1008 = vld [vmem:[%s987 + $0xa0] sm:$0xff]
          %v1009 = vld [vmem:[%s987 + $0xa8] sm:$0xff]
          %v1010 = vld [vmem:[%s987 + $0xb0] sm:$0xff]
          %v1011 = vld [vmem:[%s987 + $0xb8] sm:$0xff]
          %v1012 = vld [vmem:[%s987 + $0xc0] sm:$0xff]
          %v1013 = vld [vmem:[%s987 + $0xc8] sm:$0xff]
          %v1014 = vld [vmem:[%s987 + $0xd0] sm:$0xff]
          %v1015 = vld [vmem:[%s987 + $0xd8] sm:$0xff]
          %v1016 = vld [vmem:[%s987 + $0xe0] sm:$0xff]
          %v1017 = vld [vmem:[%s987 + $0xe8] sm:$0xff]
          %v1018 = vld [vmem:[%s987 + $0xf0] sm:$0xff]
          %v1019 = vld [vmem:[%s987 + $0xf8] sm:$0xff]
          %v1020 = vld [vmem:[%s203 + $0x104] sm:$0x1]
          %v1021 = vlaneseq
          %v1022 = vshrl.u32 %v1021, 7
          %v1023 = vsub.s32 0, %v1022
          %v1024 = vrot.slane %v1020, %v1023
          %v1025 = vmul.f32 %v1024, %v988
          %v1026 = vmul.f32 %v1024, %v989
          %v1027 = vmul.f32 %v1024, %v990
          %v1028 = vmul.f32 %v1024, %v991
          %v1029 = vmul.f32 %v1024, %v992
          %v1030 = vmul.f32 %v1024, %v993
          %v1031 = vmul.f32 %v1024, %v994
          %v1032 = vmul.f32 %v1024, %v995
          %v1033 = vmul.f32 %v1024, %v996
          %v1034 = vmul.f32 %v1024, %v997
          %v1035 = vmul.f32 %v1024, %v998
          %v1036 = vmul.f32 %v1024, %v999
          %v1037 = vmul.f32 %v1024, %v1000
          %v1038 = vmul.f32 %v1024, %v1001
          %v1039 = vmul.f32 %v1024, %v1002
          %v1040 = vmul.f32 %v1024, %v1003
          %v1041 = vmul.f32 %v1024, %v1004
          %v1042 = vmul.f32 %v1024, %v1005
          %v1043 = vmul.f32 %v1024, %v1006
          %v1044 = vmul.f32 %v1024, %v1007
          %v1045 = vmul.f32 %v1024, %v1008
          %v1046 = vmul.f32 %v1024, %v1009
          %v1047 = vmul.f32 %v1024, %v1010
          %v1048 = vmul.f32 %v1024, %v1011
          %v1049 = vmul.f32 %v1024, %v1012
          %v1050 = vmul.f32 %v1024, %v1013
          %v1051 = vmul.f32 %v1024, %v1014
          %v1052 = vmul.f32 %v1024, %v1015
          %v1053 = vmul.f32 %v1024, %v1016
          %v1054 = vmul.f32 %v1024, %v1017
          %v1055 = vmul.f32 %v1024, %v1018
          %v1056 = vmul.f32 %v1024, %v1019
          %v1057 = vld [vmem:[#allocation4] sm:$0xff]
          %v1058 = vld [vmem:[#allocation4 + $0x8] sm:$0xff]
          %v1059 = vld [vmem:[#allocation4 + $0x10] sm:$0xff]
          %v1060 = vld [vmem:[#allocation4 + $0x18] sm:$0xff]
          %v1061 = vld [vmem:[#allocation4 + $0x20] sm:$0xff]
          %v1062 = vld [vmem:[#allocation4 + $0x28] sm:$0xff]
          %v1063 = vld [vmem:[#allocation4 + $0x30] sm:$0xff]
          %v1064 = vld [vmem:[#allocation4 + $0x38] sm:$0xff]
          %v1065 = vld [vmem:[#allocation4 + $0x40] sm:$0xff]
          %v1066 = vld [vmem:[#allocation4 + $0x48] sm:$0xff]
          %v1067 = vld [vmem:[#allocation4 + $0x50] sm:$0xff]
          %v1068 = vld [vmem:[#allocation4 + $0x58] sm:$0xff]
          %v1069 = vld [vmem:[#allocation4 + $0x60] sm:$0xff]
          %v1070 = vld [vmem:[#allocation4 + $0x68] sm:$0xff]
          %v1071 = vld [vmem:[#allocation4 + $0x70] sm:$0xff]
          %v1072 = vld [vmem:[#allocation4 + $0x78] sm:$0xff]
          %v1073 = vld [vmem:[#allocation4 + $0x80] sm:$0xff]
          %v1074 = vld [vmem:[#allocation4 + $0x88] sm:$0xff]
          %v1075 = vld [vmem:[#allocation4 + $0x90] sm:$0xff]
          %v1076 = vld [vmem:[#allocation4 + $0x98] sm:$0xff]
          %v1077 = vld [vmem:[#allocation4 + $0xa0] sm:$0xff]
          %v1078 = vld [vmem:[#allocation4 + $0xa8] sm:$0xff]
          %v1079 = vld [vmem:[#allocation4 + $0xb0] sm:$0xff]
          %v1080 = vld [vmem:[#allocation4 + $0xb8] sm:$0xff]
          %v1081 = vld [vmem:[#allocation4 + $0xc0] sm:$0xff]
          %v1082 = vld [vmem:[#allocation4 + $0xc8] sm:$0xff]
          %v1083 = vld [vmem:[#allocation4 + $0xd0] sm:$0xff]
          %v1084 = vld [vmem:[#allocation4 + $0xd8] sm:$0xff]
          %v1085 = vld [vmem:[#allocation4 + $0xe0] sm:$0xff]
          %v1086 = vld [vmem:[#allocation4 + $0xe8] sm:$0xff]
          %v1087 = vld [vmem:[#allocation4 + $0xf0] sm:$0xff]
          %v1088 = vld [vmem:[#allocation4 + $0xf8] sm:$0xff]
          %v1089 = vadd.f32 %v1025, %v1057
          %v1090 = vadd.f32 %v1026, %v1058
          %v1091 = vadd.f32 %v1027, %v1059
          %v1092 = vadd.f32 %v1028, %v1060
          %v1093 = vadd.f32 %v1029, %v1061
          %v1094 = vadd.f32 %v1030, %v1062
          %v1095 = vadd.f32 %v1031, %v1063
          %v1096 = vadd.f32 %v1032, %v1064
          %v1097 = vadd.f32 %v1033, %v1065
          %v1098 = vadd.f32 %v1034, %v1066
          %v1099 = vadd.f32 %v1035, %v1067
          %v1100 = vadd.f32 %v1036, %v1068
          %v1101 = vadd.f32 %v1037, %v1069
          %v1102 = vadd.f32 %v1038, %v1070
          %v1103 = vadd.f32 %v1039, %v1071
          %v1104 = vadd.f32 %v1040, %v1072
          %v1105 = vadd.f32 %v1041, %v1073
          %v1106 = vadd.f32 %v1042, %v1074
          %v1107 = vadd.f32 %v1043, %v1075
          %v1108 = vadd.f32 %v1044, %v1076
          %v1109 = vadd.f32 %v1045, %v1077
          %v1110 = vadd.f32 %v1046, %v1078
          %v1111 = vadd.f32 %v1047, %v1079
          %v1112 = vadd.f32 %v1048, %v1080
          %v1113 = vadd.f32 %v1049, %v1081
          %v1114 = vadd.f32 %v1050, %v1082
          %v1115 = vadd.f32 %v1051, %v1083
          %v1116 = vadd.f32 %v1052, %v1084
          %v1117 = vadd.f32 %v1053, %v1085
          %v1118 = vadd.f32 %v1054, %v1086
          %v1119 = vadd.f32 %v1055, %v1087
          %v1120 = vadd.f32 %v1056, %v1088
          %v1121 = vld [vmem:[%s203] sm:$0xff]
          %v1122 = vld [vmem:[%s203 + $0x8] sm:$0xff]
          %v1123 = vld [vmem:[%s203 + $0x10] sm:$0xff]
          %v1124 = vld [vmem:[%s203 + $0x18] sm:$0xff]
          %v1125 = vld [vmem:[%s203 + $0x20] sm:$0xff]
          %v1126 = vld [vmem:[%s203 + $0x28] sm:$0xff]
          %v1127 = vld [vmem:[%s203 + $0x30] sm:$0xff]
          %v1128 = vld [vmem:[%s203 + $0x38] sm:$0xff]
          %v1129 = vld [vmem:[%s203 + $0x40] sm:$0xff]
          %v1130 = vld [vmem:[%s203 + $0x48] sm:$0xff]
          %v1131 = vld [vmem:[%s203 + $0x50] sm:$0xff]
          %v1132 = vld [vmem:[%s203 + $0x58] sm:$0xff]
          %v1133 = vld [vmem:[%s203 + $0x60] sm:$0xff]
          %v1134 = vld [vmem:[%s203 + $0x68] sm:$0xff]
          %v1135 = vld [vmem:[%s203 + $0x70] sm:$0xff]
          %v1136 = vld [vmem:[%s203 + $0x78] sm:$0xff]
          %v1137 = vld [vmem:[%s203 + $0x100] sm:$0x1]
          %v1138 = vld [vmem:[%s203 + $0x80] sm:$0xff]
          %v1139 = vld [vmem:[%s203 + $0x88] sm:$0xff]
          %v1140 = vld [vmem:[%s203 + $0x90] sm:$0xff]
          %v1141 = vld [vmem:[%s203 + $0x98] sm:$0xff]
          %v1142 = vld [vmem:[%s203 + $0xa0] sm:$0xff]
          %v1143 = vld [vmem:[%s203 + $0xa8] sm:$0xff]
          %v1144 = vld [vmem:[%s203 + $0xb0] sm:$0xff]
          %v1145 = vld [vmem:[%s203 + $0xb8] sm:$0xff]
          %v1146 = vld [vmem:[%s203 + $0xc0] sm:$0xff]
          %v1147 = vld [vmem:[%s203 + $0xc8] sm:$0xff]
          %v1148 = vld [vmem:[%s203 + $0xd0] sm:$0xff]
          %v1149 = vld [vmem:[%s203 + $0xd8] sm:$0xff]
          %v1150 = vld [vmem:[%s203 + $0xe0] sm:$0xff]
          %v1151 = vld [vmem:[%s203 + $0xe8] sm:$0xff]
          %v1152 = vld [vmem:[%s203 + $0xf0] sm:$0xff]
          %v1153 = vld [vmem:[%s203 + $0xf8] sm:$0xff]
          %v1154 = vld [vmem:[%s203 + $0x101] sm:$0x1]
          %v1155 = vlaneseq
          %v1156 = vshrl.u32 %v1155, 7
          %v1157 = vsub.s32 0, %v1156
          %v1158 = vrot.slane %v1137, %v1157
          %1159 = vmatprep.subr.mxu0 0.0
          %1160 = vmatpush1.msra.mxu0 %v1121
          %1161 = vmatprep.subr.mxu0 0.0
          %1162 = vmatpush1.msra.mxu0 %v1122
          %1163 = vmatprep.subr.mxu0 0.0
          %1164 = vmatpush1.msra.mxu0 %v1123
          %1165 = vmatprep.subr.mxu0 0.0
          %1166 = vmatpush1.msra.mxu0 %v1124
          %1167 = vmatprep.subr.mxu0 0.0
          %1168 = vmatpush1.msra.mxu0 %v1125
          %1169 = vmatprep.subr.mxu0 0.0
          %1170 = vmatpush1.msra.mxu0 %v1126
          %1171 = vmatprep.subr.mxu0 0.0
          %1172 = vmatpush1.msra.mxu0 %v1127
          %1173 = vmatprep.subr.mxu0 0.0
          %1174 = vmatpush1.msra.mxu0 %v1128
          %1175 = vmatprep.subr.mxu0 0.0
          %1176 = vmatpush1.msra.mxu0 %v1129
          %1177 = vmatprep.subr.mxu0 0.0
          %1178 = vmatpush1.msra.mxu0 %v1130
          %1179 = vmatprep.subr.mxu0 0.0
          %1180 = vmatpush1.msra.mxu0 %v1131
          %1181 = vmatprep.subr.mxu0 0.0
          %1182 = vmatpush1.msra.mxu0 %v1132
          %1183 = vmatprep.subr.mxu0 0.0
          %1184 = vmatpush1.msra.mxu0 %v1133
          %1185 = vmatprep.subr.mxu0 0.0
          %1186 = vmatpush1.msra.mxu0 %v1134
          %1187 = vmatprep.subr.mxu0 0.0
          %1188 = vmatpush1.msra.mxu0 %v1135
          %1189 = vmatprep.subr.mxu0 0.0
          %1190 = vmatpush1.msra.mxu0 %v1136
          %1191 = vmatprep.subr.mxu0 0.0
          %1192 = vmatpush1.msra.mxu0 0.0
          %1193 = vmatprep.subr.mxu0 0.0
          %1194 = vmatpush1.msra.mxu0 0.0
          %1195 = vmatprep.subr.mxu0 0.0
          %1196 = vmatpush1.msra.mxu0 0.0
          %1197 = vmatprep.subr.mxu0 0.0
          %1198 = vmatpush1.msra.mxu0 0.0
          %1199 = vmatprep.subr.mxu0 0.0
          %1200 = vmatpush1.msra.mxu0 0.0
          %1201 = vmatprep.subr.mxu0 0.0
          %1202 = vmatpush1.msra.mxu0 0.0
          %1203 = vmatprep.subr.mxu0 0.0
          %1204 = vmatpush1.msra.mxu0 0.0
          %1205 = vmatprep.subr.mxu0 0.0
          %1206 = vmatpush1.msra.mxu0 0.0
          %1207 = vmatprep.subr.mxu0 0.0
          %1208 = vmatpush1.msra.mxu0 0.0
          %1209 = vmatprep.subr.mxu0 0.0
          %1210 = vmatpush1.msra.mxu0 0.0
          %1211 = vmatprep.subr.mxu0 0.0
          %1212 = vmatpush1.msra.mxu0 0.0
          %1213 = vmatprep.subr.mxu0 0.0
          %1214 = vmatpush1.msra.mxu0 0.0
          %1215 = vmatprep.subr.mxu0 0.0
          %1216 = vmatpush1.msra.mxu0 0.0
          %1217 = vmatprep.subr.mxu0 0.0
          %1218 = vmatpush1.msra.mxu0 0.0
          %1219 = vmatprep.subr.mxu0 0.0
          %1220 = vmatpush1.msra.mxu0 0.0
          %1221 = vmatprep.subr.mxu0 0.0
          %1222 = vmatpush1.msra.mxu0 0.0
          %1223 = vmatprep.mubr.f32.mxu0 0.0
          %1224 = vmatmul.mubr.f32.gmra.mrb[0].mxu0 %v1089
          %v1225 = vpop.f32.mrb[0].mxu0
          %v1226 = vadd.f32 %v1158, %v1225
          %v1227 = vpop.f32.mrb[0].mxu0
          %1228 = vmatprep.mubr.f32.mxu0 0.0
          %1229 = vmatmul.mubr.f32.gmra.mrb[0].mxu0 %v1090
          %v1230 = vpop.f32.mrb[0].mxu0
          %v1231 = vadd.f32 %v1158, %v1230
          %v1232 = vpop.f32.mrb[0].mxu0
          %1233 = vmatprep.mubr.f32.mxu0 0.0
          %1234 = vmatmul.mubr.f32.gmra.mrb[0].mxu0 %v1091
          %v1235 = vpop.f32.mrb[0].mxu0
          %v1236 = vadd.f32 %v1158, %v1235
          %v1237 = vpop.f32.mrb[0].mxu0
          %1238 = vmatprep.mubr.f32.mxu0 0.0
          %1239 = vmatmul.mubr.f32.gmra.mrb[0].mxu0 %v1092
          %v1240 = vpop.f32.mrb[0].mxu0
          %v1241 = vadd.f32 %v1158, %v1240
          %v1242 = vpop.f32.mrb[0].mxu0
          %1243 = vmatprep.mubr.f32.mxu0 0.0
          %1244 = vmatmul.mubr.f32.gmra.mrb[0].mxu0 %v1093
          %v1245 = vpop.f32.mrb[0].mxu0
          %v1246 = vadd.f32 %v1158, %v1245
          %v1247 = vpop.f32.mrb[0].mxu0
          %1248 = vmatprep.mubr.f32.mxu0 0.0
          %1249 = vmatmul.mubr.f32.gmra.mrb[0].mxu0 %v1094
          %v1250 = vpop.f32.mrb[0].mxu0
          %v1251 = vadd.f32 %v1158, %v1250
          %v1252 = vpop.f32.mrb[0].mxu0
          %1253 = vmatprep.mubr.f32.mxu0 0.0
          %1254 = vmatmul.mubr.f32.gmra.mrb[0].mxu0 %v1095
          %v1255 = vpop.f32.mrb[0].mxu0
          %v1256 = vadd.f32 %v1158, %v1255
          %v1257 = vpop.f32.mrb[0].mxu0
          %1258 = vmatprep.mubr.f32.mxu0 0.0
          %1259 = vmatmul.mubr.f32.gmra.mrb[0].mxu0 %v1096
          %v1260 = vpop.f32.mrb[0].mxu0
          %v1261 = vadd.f32 %v1158, %v1260
          %v1262 = vpop.f32.mrb[0].mxu0
          %1263 = vmatprep.mubr.f32.mxu0 0.0
          %1264 = vmatmul.mubr.f32.gmra.mrb[0].mxu0 %v1097
          %v1265 = vpop.f32.mrb[0].mxu0
          %v1266 = vadd.f32 %v1158, %v1265
          %v1267 = vpop.f32.mrb[0].mxu0
          %1268 = vmatprep.mubr.f32.mxu0 0.0
          %1269 = vmatmul.mubr.f32.gmra.mrb[0].mxu0 %v1098
          %v1270 = vpop.f32.mrb[0].mxu0
          %v1271 = vadd.f32 %v1158, %v1270
          %v1272 = vpop.f32.mrb[0].mxu0
          %1273 = vmatprep.mubr.f32.mxu0 0.0
          %1274 = vmatmul.mubr.f32.gmra.mrb[0].mxu0 %v1099
          %v1275 = vpop.f32.mrb[0].mxu0
          %v1276 = vadd.f32 %v1158, %v1275
          %v1277 = vpop.f32.mrb[0].mxu0
          %1278 = vmatprep.mubr.f32.mxu0 0.0
          %1279 = vmatmul.mubr.f32.gmra.mrb[0].mxu0 %v1100
          %v1280 = vpop.f32.mrb[0].mxu0
          %v1281 = vadd.f32 %v1158, %v1280
          %v1282 = vpop.f32.mrb[0].mxu0
          %1283 = vmatprep.mubr.f32.mxu0 0.0
          %1284 = vmatmul.mubr.f32.gmra.mrb[0].mxu0 %v1101
          %v1285 = vpop.f32.mrb[0].mxu0
          %v1286 = vadd.f32 %v1158, %v1285
          %v1287 = vpop.f32.mrb[0].mxu0
          %1288 = vmatprep.mubr.f32.mxu0 0.0
          %1289 = vmatmul.mubr.f32.gmra.mrb[0].mxu0 %v1102
          %v1290 = vpop.f32.mrb[0].mxu0
          %v1291 = vadd.f32 %v1158, %v1290
          %v1292 = vpop.f32.mrb[0].mxu0
          %1293 = vmatprep.mubr.f32.mxu0 0.0
          %1294 = vmatmul.mubr.f32.gmra.mrb[0].mxu0 %v1103
          %v1295 = vpop.f32.mrb[0].mxu0
          %v1296 = vadd.f32 %v1158, %v1295
          %v1297 = vpop.f32.mrb[0].mxu0
          %1298 = vmatprep.mubr.f32.mxu0 0.0
          %1299 = vmatmul.mubr.f32.gmra.mrb[0].mxu0 %v1104
          %v1300 = vpop.f32.mrb[0].mxu0
          %v1301 = vadd.f32 %v1158, %v1300
          %v1302 = vpop.f32.mrb[0].mxu0
          %1303 = vmatprep.mubr.f32.mxu0 0.0
          %1304 = vmatmul.mubr.f32.gmra.mrb[0].mxu0 %v1105
          %v1305 = vpop.f32.mrb[0].mxu0
          %v1306 = vadd.f32 %v1158, %v1305
          %v1307 = vpop.f32.mrb[0].mxu0
          %1308 = vmatprep.mubr.f32.mxu0 0.0
          %1309 = vmatmul.mubr.f32.gmra.mrb[0].mxu0 %v1106
          %v1310 = vpop.f32.mrb[0].mxu0
          %v1311 = vadd.f32 %v1158, %v1310
          %v1312 = vpop.f32.mrb[0].mxu0
          %1313 = vmatprep.mubr.f32.mxu0 0.0
          %1314 = vmatmul.mubr.f32.gmra.mrb[0].mxu0 %v1107
          %v1315 = vpop.f32.mrb[0].mxu0
          %v1316 = vadd.f32 %v1158, %v1315
          %v1317 = vpop.f32.mrb[0].mxu0
          %1318 = vmatprep.mubr.f32.mxu0 0.0
          %1319 = vmatmul.mubr.f32.gmra.mrb[0].mxu0 %v1108
          %v1320 = vpop.f32.mrb[0].mxu0
          %v1321 = vadd.f32 %v1158, %v1320
          %v1322 = vpop.f32.mrb[0].mxu0
          %1323 = vmatprep.mubr.f32.mxu0 0.0
          %1324 = vmatmul.mubr.f32.gmra.mrb[0].mxu0 %v1109
          %v1325 = vpop.f32.mrb[0].mxu0
          %v1326 = vadd.f32 %v1158, %v1325
          %v1327 = vpop.f32.mrb[0].mxu0
          %1328 = vmatprep.mubr.f32.mxu0 0.0
          %1329 = vmatmul.mubr.f32.gmra.mrb[0].mxu0 %v1110
          %v1330 = vpop.f32.mrb[0].mxu0
          %v1331 = vadd.f32 %v1158, %v1330
          %v1332 = vpop.f32.mrb[0].mxu0
          %1333 = vmatprep.mubr.f32.mxu0 0.0
          %1334 = vmatmul.mubr.f32.gmra.mrb[0].mxu0 %v1111
          %v1335 = vpop.f32.mrb[0].mxu0
          %v1336 = vadd.f32 %v1158, %v1335
          %v1337 = vpop.f32.mrb[0].mxu0
          %1338 = vmatprep.mubr.f32.mxu0 0.0
          %1339 = vmatmul.mubr.f32.gmra.mrb[0].mxu0 %v1112
          %v1340 = vpop.f32.mrb[0].mxu0
          %v1341 = vadd.f32 %v1158, %v1340
          %v1342 = vpop.f32.mrb[0].mxu0
          %1343 = vmatprep.mubr.f32.mxu0 0.0
          %1344 = vmatmul.mubr.f32.gmra.mrb[0].mxu0 %v1113
          %v1345 = vpop.f32.mrb[0].mxu0
          %v1346 = vadd.f32 %v1158, %v1345
          %v1347 = vpop.f32.mrb[0].mxu0
          %1348 = vmatprep.mubr.f32.mxu0 0.0
          %1349 = vmatmul.mubr.f32.gmra.mrb[0].mxu0 %v1114
          %v1350 = vpop.f32.mrb[0].mxu0
          %v1351 = vadd.f32 %v1158, %v1350
          %v1352 = vpop.f32.mrb[0].mxu0
          %1353 = vmatprep.mubr.f32.mxu0 0.0
          %1354 = vmatmul.mubr.f32.gmra.mrb[0].mxu0 %v1115
          %v1355 = vpop.f32.mrb[0].mxu0
          %v1356 = vadd.f32 %v1158, %v1355
          %v1357 = vpop.f32.mrb[0].mxu0
          %1358 = vmatprep.mubr.f32.mxu0 0.0
          %1359 = vmatmul.mubr.f32.gmra.mrb[0].mxu0 %v1116
          %v1360 = vpop.f32.mrb[0].mxu0
          %v1361 = vadd.f32 %v1158, %v1360
          %v1362 = vpop.f32.mrb[0].mxu0
          %1363 = vmatprep.mubr.f32.mxu0 0.0
          %1364 = vmatmul.mubr.f32.gmra.mrb[0].mxu0 %v1117
          %v1365 = vpop.f32.mrb[0].mxu0
          %v1366 = vadd.f32 %v1158, %v1365
          %v1367 = vpop.f32.mrb[0].mxu0
          %1368 = vmatprep.mubr.f32.mxu0 0.0
          %1369 = vmatmul.mubr.f32.gmra.mrb[0].mxu0 %v1118
          %v1370 = vpop.f32.mrb[0].mxu0
          %v1371 = vadd.f32 %v1158, %v1370
          %v1372 = vpop.f32.mrb[0].mxu0
          %1373 = vmatprep.mubr.f32.mxu0 0.0
          %1374 = vmatmul.mubr.f32.gmra.mrb[0].mxu0 %v1119
          %v1375 = vpop.f32.mrb[0].mxu0
          %v1376 = vadd.f32 %v1158, %v1375
          %v1377 = vpop.f32.mrb[0].mxu0
          %1378 = vmatprep.mubr.f32.mxu0 0.0
          %1379 = vmatmul.mubr.f32.gmra.mrb[0].mxu0 %v1120
          %v1380 = vpop.f32.mrb[0].mxu0
          %v1381 = vadd.f32 %v1158, %v1380
          %v1382 = vpop.f32.mrb[0].mxu0
          %1383 = vdwg.mxu0
          %vm1384 = vcmp.gt.f32.partialorder %v1226, 0.0
          %vm1385 = vcmp.gt.f32.partialorder %v1231, 0.0
          %vm1386 = vcmp.gt.f32.partialorder %v1236, 0.0
          %vm1387 = vcmp.gt.f32.partialorder %v1241, 0.0
          %vm1388 = vcmp.gt.f32.partialorder %v1246, 0.0
          %vm1389 = vcmp.gt.f32.partialorder %v1251, 0.0
          %vm1390 = vcmp.gt.f32.partialorder %v1256, 0.0
          %vm1391 = vcmp.gt.f32.partialorder %v1261, 0.0
          %vm1392 = vcmp.gt.f32.partialorder %v1266, 0.0
          %vm1393 = vcmp.gt.f32.partialorder %v1271, 0.0
          %vm1394 = vcmp.gt.f32.partialorder %v1276, 0.0
          %vm1395 = vcmp.gt.f32.partialorder %v1281, 0.0
          %vm1396 = vcmp.gt.f32.partialorder %v1286, 0.0
          %vm1397 = vcmp.gt.f32.partialorder %v1291, 0.0
          %vm1398 = vcmp.gt.f32.partialorder %v1296, 0.0
          %vm1399 = vcmp.gt.f32.partialorder %v1301, 0.0
          %vm1400 = vcmp.gt.f32.partialorder %v1306, 0.0
          %vm1401 = vcmp.gt.f32.partialorder %v1311, 0.0
          %vm1402 = vcmp.gt.f32.partialorder %v1316, 0.0
          %vm1403 = vcmp.gt.f32.partialorder %v1321, 0.0
          %vm1404 = vcmp.gt.f32.partialorder %v1326, 0.0
          %vm1405 = vcmp.gt.f32.partialorder %v1331, 0.0
          %vm1406 = vcmp.gt.f32.partialorder %v1336, 0.0
          %vm1407 = vcmp.gt.f32.partialorder %v1341, 0.0
          %vm1408 = vcmp.gt.f32.partialorder %v1346, 0.0
          %vm1409 = vcmp.gt.f32.partialorder %v1351, 0.0
          %vm1410 = vcmp.gt.f32.partialorder %v1356, 0.0
          %vm1411 = vcmp.gt.f32.partialorder %v1361, 0.0
          %vm1412 = vcmp.gt.f32.partialorder %v1366, 0.0
          %vm1413 = vcmp.gt.f32.partialorder %v1371, 0.0
          %vm1414 = vcmp.gt.f32.partialorder %v1376, 0.0
          %vm1415 = vcmp.gt.f32.partialorder %v1381, 0.0
          %v1416 = vmul.f32 %v1226, 0.01
          %v1417 = vmul.f32 %v1231, 0.01
          %v1418 = vmul.f32 %v1236, 0.01
          %v1419 = vmul.f32 %v1241, 0.01
          %v1420 = vmul.f32 %v1246, 0.01
          %v1421 = vmul.f32 %v1251, 0.01
          %v1422 = vmul.f32 %v1256, 0.01
          %v1423 = vmul.f32 %v1261, 0.01
          %v1424 = vmul.f32 %v1266, 0.01
          %v1425 = vmul.f32 %v1271, 0.01
          %v1426 = vmul.f32 %v1276, 0.01
          %v1427 = vmul.f32 %v1281, 0.01
          %v1428 = vmul.f32 %v1286, 0.01
          %v1429 = vmul.f32 %v1291, 0.01
          %v1430 = vmul.f32 %v1296, 0.01
          %v1431 = vmul.f32 %v1301, 0.01
          %v1432 = vmul.f32 %v1306, 0.01
          %v1433 = vmul.f32 %v1311, 0.01
          %v1434 = vmul.f32 %v1316, 0.01
          %v1435 = vmul.f32 %v1321, 0.01
          %v1436 = vmul.f32 %v1326, 0.01
          %v1437 = vmul.f32 %v1331, 0.01
          %v1438 = vmul.f32 %v1336, 0.01
          %v1439 = vmul.f32 %v1341, 0.01
          %v1440 = vmul.f32 %v1346, 0.01
          %v1441 = vmul.f32 %v1351, 0.01
          %v1442 = vmul.f32 %v1356, 0.01
          %v1443 = vmul.f32 %v1361, 0.01
          %v1444 = vmul.f32 %v1366, 0.01
          %v1445 = vmul.f32 %v1371, 0.01
          %v1446 = vmul.f32 %v1376, 0.01
          %v1447 = vmul.f32 %v1381, 0.01
          %v1448 = vsel %vm1384, %v1226, %v1416
          %v1449 = vsel %vm1385, %v1231, %v1417
          %v1450 = vsel %vm1386, %v1236, %v1418
          %v1451 = vsel %vm1387, %v1241, %v1419
          %v1452 = vsel %vm1388, %v1246, %v1420
          %v1453 = vsel %vm1389, %v1251, %v1421
          %v1454 = vsel %vm1390, %v1256, %v1422
          %v1455 = vsel %vm1391, %v1261, %v1423
          %v1456 = vsel %vm1392, %v1266, %v1424
          %v1457 = vsel %vm1393, %v1271, %v1425
          %v1458 = vsel %vm1394, %v1276, %v1426
          %v1459 = vsel %vm1395, %v1281, %v1427
          %v1460 = vsel %vm1396, %v1286, %v1428
          %v1461 = vsel %vm1397, %v1291, %v1429
          %v1462 = vsel %vm1398, %v1296, %v1430
          %v1463 = vsel %vm1399, %v1301, %v1431
          %v1464 = vsel %vm1400, %v1306, %v1432
          %v1465 = vsel %vm1401, %v1311, %v1433
          %v1466 = vsel %vm1402, %v1316, %v1434
          %v1467 = vsel %vm1403, %v1321, %v1435
          %v1468 = vsel %vm1404, %v1326, %v1436
          %v1469 = vsel %vm1405, %v1331, %v1437
          %v1470 = vsel %vm1406, %v1336, %v1438
          %v1471 = vsel %vm1407, %v1341, %v1439
          %v1472 = vsel %vm1408, %v1346, %v1440
          %v1473 = vsel %vm1409, %v1351, %v1441
          %v1474 = vsel %vm1410, %v1356, %v1442
          %v1475 = vsel %vm1411, %v1361, %v1443
          %v1476 = vsel %vm1412, %v1366, %v1444
          %v1477 = vsel %vm1413, %v1371, %v1445
          %v1478 = vsel %vm1414, %v1376, %v1446
          %v1479 = vsel %vm1415, %v1381, %v1447
          %v1480 = vlaneseq
          %v1481 = vshrl.u32 %v1480, 7
          %v1482 = vsub.s32 0, %v1481
          %v1483 = vrot.slane %v1154, %v1482
          %1484 = vmatprep.subr.mxu0 0.0
          %1485 = vmatpush1.msra.mxu0 %v1138
          %1486 = vmatprep.subr.mxu0 0.0
          %1487 = vmatpush1.msra.mxu0 %v1139
          %1488 = vmatprep.subr.mxu0 0.0
          %1489 = vmatpush1.msra.mxu0 %v1140
          %1490 = vmatprep.subr.mxu0 0.0
          %1491 = vmatpush1.msra.mxu0 %v1141
          %1492 = vmatprep.subr.mxu0 0.0
          %1493 = vmatpush1.msra.mxu0 %v1142
          %1494 = vmatprep.subr.mxu0 0.0
          %1495 = vmatpush1.msra.mxu0 %v1143
          %1496 = vmatprep.subr.mxu0 0.0
          %1497 = vmatpush1.msra.mxu0 %v1144
          %1498 = vmatprep.subr.mxu0 0.0
          %1499 = vmatpush1.msra.mxu0 %v1145
          %1500 = vmatprep.subr.mxu0 0.0
          %1501 = vmatpush1.msra.mxu0 %v1146
          %1502 = vmatprep.subr.mxu0 0.0
          %1503 = vmatpush1.msra.mxu0 %v1147
          %1504 = vmatprep.subr.mxu0 0.0
          %1505 = vmatpush1.msra.mxu0 %v1148
          %1506 = vmatprep.subr.mxu0 0.0
          %1507 = vmatpush1.msra.mxu0 %v1149
          %1508 = vmatprep.subr.mxu0 0.0
          %1509 = vmatpush1.msra.mxu0 %v1150
          %1510 = vmatprep.subr.mxu0 0.0
          %1511 = vmatpush1.msra.mxu0 %v1151
          %1512 = vmatprep.subr.mxu0 0.0
          %1513 = vmatpush1.msra.mxu0 %v1152
          %1514 = vmatprep.subr.mxu0 0.0
          %1515 = vmatpush1.msra.mxu0 %v1153
          %1516 = vmatprep.subr.mxu0 0.0
          %1517 = vmatpush1.msra.mxu0 0.0
          %1518 = vmatprep.subr.mxu0 0.0
          %1519 = vmatpush1.msra.mxu0 0.0
          %1520 = vmatprep.subr.mxu0 0.0
          %1521 = vmatpush1.msra.mxu0 0.0
          %1522 = vmatprep.subr.mxu0 0.0
          %1523 = vmatpush1.msra.mxu0 0.0
          %1524 = vmatprep.subr.mxu0 0.0
          %1525 = vmatpush1.msra.mxu0 0.0
          %1526 = vmatprep.subr.mxu0 0.0
          %1527 = vmatpush1.msra.mxu0 0.0
          %1528 = vmatprep.subr.mxu0 0.0
          %1529 = vmatpush1.msra.mxu0 0.0
          %1530 = vmatprep.subr.mxu0 0.0
          %1531 = vmatpush1.msra.mxu0 0.0
          %1532 = vmatprep.subr.mxu0 0.0
          %1533 = vmatpush1.msra.mxu0 0.0
          %1534 = vmatprep.subr.mxu0 0.0
          %1535 = vmatpush1.msra.mxu0 0.0
          %1536 = vmatprep.subr.mxu0 0.0
          %1537 = vmatpush1.msra.mxu0 0.0
          %1538 = vmatprep.subr.mxu0 0.0
          %1539 = vmatpush1.msra.mxu0 0.0
          %1540 = vmatprep.subr.mxu0 0.0
          %1541 = vmatpush1.msra.mxu0 0.0
          %1542 = vmatprep.subr.mxu0 0.0
          %1543 = vmatpush1.msra.mxu0 0.0
          %1544 = vmatprep.subr.mxu0 0.0
          %1545 = vmatpush1.msra.mxu0 0.0
          %1546 = vmatprep.subr.mxu0 0.0
          %1547 = vmatpush1.msra.mxu0 0.0
          %1548 = vmatprep.mubr.f32.mxu0 0.0
          %1549 = vmatmul.mubr.f32.gmra.mrb[0].mxu0 %v1448
          %v1550 = vpop.f32.mrb[0].mxu0
          %v1551 = vadd.f32 %v1483, %v1550
          %v1552 = vpop.f32.mrb[0].mxu0
          %1553 = vmatprep.mubr.f32.mxu0 0.0
          %1554 = vmatmul.mubr.f32.gmra.mrb[0].mxu0 %v1449
          %v1555 = vpop.f32.mrb[0].mxu0
          %v1556 = vadd.f32 %v1483, %v1555
          %v1557 = vpop.f32.mrb[0].mxu0
          %1558 = vmatprep.mubr.f32.mxu0 0.0
          %1559 = vmatmul.mubr.f32.gmra.mrb[0].mxu0 %v1450
          %v1560 = vpop.f32.mrb[0].mxu0
          %v1561 = vadd.f32 %v1483, %v1560
          %v1562 = vpop.f32.mrb[0].mxu0
          %1563 = vmatprep.mubr.f32.mxu0 0.0
          %1564 = vmatmul.mubr.f32.gmra.mrb[0].mxu0 %v1451
          %v1565 = vpop.f32.mrb[0].mxu0
          %v1566 = vadd.f32 %v1483, %v1565
          %v1567 = vpop.f32.mrb[0].mxu0
          %1568 = vmatprep.mubr.f32.mxu0 0.0
          %1569 = vmatmul.mubr.f32.gmra.mrb[0].mxu0 %v1452
          %v1570 = vpop.f32.mrb[0].mxu0
          %v1571 = vadd.f32 %v1483, %v1570
          %v1572 = vpop.f32.mrb[0].mxu0
          %1573 = vmatprep.mubr.f32.mxu0 0.0
          %1574 = vmatmul.mubr.f32.gmra.mrb[0].mxu0 %v1453
          %v1575 = vpop.f32.mrb[0].mxu0
          %v1576 = vadd.f32 %v1483, %v1575
          %v1577 = vpop.f32.mrb[0].mxu0
          %1578 = vmatprep.mubr.f32.mxu0 0.0
          %1579 = vmatmul.mubr.f32.gmra.mrb[0].mxu0 %v1454
          %v1580 = vpop.f32.mrb[0].mxu0
          %v1581 = vadd.f32 %v1483, %v1580
          %v1582 = vpop.f32.mrb[0].mxu0
          %1583 = vmatprep.mubr.f32.mxu0 0.0
          %1584 = vmatmul.mubr.f32.gmra.mrb[0].mxu0 %v1455
          %v1585 = vpop.f32.mrb[0].mxu0
          %v1586 = vadd.f32 %v1483, %v1585
          %v1587 = vpop.f32.mrb[0].mxu0
          %1588 = vmatprep.mubr.f32.mxu0 0.0
          %1589 = vmatmul.mubr.f32.gmra.mrb[0].mxu0 %v1456
          %v1590 = vpop.f32.mrb[0].mxu0
          %v1591 = vadd.f32 %v1483, %v1590
          %v1592 = vpop.f32.mrb[0].mxu0
          %1593 = vmatprep.mubr.f32.mxu0 0.0
          %1594 = vmatmul.mubr.f32.gmra.mrb[0].mxu0 %v1457
          %v1595 = vpop.f32.mrb[0].mxu0
          %v1596 = vadd.f32 %v1483, %v1595
          %v1597 = vpop.f32.mrb[0].mxu0
          %1598 = vmatprep.mubr.f32.mxu0 0.0
          %1599 = vmatmul.mubr.f32.gmra.mrb[0].mxu0 %v1458
          %v1600 = vpop.f32.mrb[0].mxu0
          %v1601 = vadd.f32 %v1483, %v1600
          %v1602 = vpop.f32.mrb[0].mxu0
          %1603 = vmatprep.mubr.f32.mxu0 0.0
          %1604 = vmatmul.mubr.f32.gmra.mrb[0].mxu0 %v1459
          %v1605 = vpop.f32.mrb[0].mxu0
          %v1606 = vadd.f32 %v1483, %v1605
          %v1607 = vpop.f32.mrb[0].mxu0
          %1608 = vmatprep.mubr.f32.mxu0 0.0
          %1609 = vmatmul.mubr.f32.gmra.mrb[0].mxu0 %v1460
          %v1610 = vpop.f32.mrb[0].mxu0
          %v1611 = vadd.f32 %v1483, %v1610
          %v1612 = vpop.f32.mrb[0].mxu0
          %1613 = vmatprep.mubr.f32.mxu0 0.0
          %1614 = vmatmul.mubr.f32.gmra.mrb[0].mxu0 %v1461
          %v1615 = vpop.f32.mrb[0].mxu0
          %v1616 = vadd.f32 %v1483, %v1615
          %v1617 = vpop.f32.mrb[0].mxu0
          %1618 = vmatprep.mubr.f32.mxu0 0.0
          %1619 = vmatmul.mubr.f32.gmra.mrb[0].mxu0 %v1462
          %v1620 = vpop.f32.mrb[0].mxu0
          %v1621 = vadd.f32 %v1483, %v1620
          %v1622 = vpop.f32.mrb[0].mxu0
          %1623 = vmatprep.mubr.f32.mxu0 0.0
          %1624 = vmatmul.mubr.f32.gmra.mrb[0].mxu0 %v1463
          %v1625 = vpop.f32.mrb[0].mxu0
          %v1626 = vadd.f32 %v1483, %v1625
          %v1627 = vpop.f32.mrb[0].mxu0
          %1628 = vmatprep.mubr.f32.mxu0 0.0
          %1629 = vmatmul.mubr.f32.gmra.mrb[0].mxu0 %v1464
          %v1630 = vpop.f32.mrb[0].mxu0
          %v1631 = vadd.f32 %v1483, %v1630
          %v1632 = vpop.f32.mrb[0].mxu0
          %1633 = vmatprep.mubr.f32.mxu0 0.0
          %1634 = vmatmul.mubr.f32.gmra.mrb[0].mxu0 %v1465
          %v1635 = vpop.f32.mrb[0].mxu0
          %v1636 = vadd.f32 %v1483, %v1635
          %v1637 = vpop.f32.mrb[0].mxu0
          %1638 = vmatprep.mubr.f32.mxu0 0.0
          %1639 = vmatmul.mubr.f32.gmra.mrb[0].mxu0 %v1466
          %v1640 = vpop.f32.mrb[0].mxu0
          %v1641 = vadd.f32 %v1483, %v1640
          %v1642 = vpop.f32.mrb[0].mxu0
          %1643 = vmatprep.mubr.f32.mxu0 0.0
          %1644 = vmatmul.mubr.f32.gmra.mrb[0].mxu0 %v1467
          %v1645 = vpop.f32.mrb[0].mxu0
          %v1646 = vadd.f32 %v1483, %v1645
          %v1647 = vpop.f32.mrb[0].mxu0
          %1648 = vmatprep.mubr.f32.mxu0 0.0
          %1649 = vmatmul.mubr.f32.gmra.mrb[0].mxu0 %v1468
          %v1650 = vpop.f32.mrb[0].mxu0
          %v1651 = vadd.f32 %v1483, %v1650
          %v1652 = vpop.f32.mrb[0].mxu0
          %1653 = vmatprep.mubr.f32.mxu0 0.0
          %1654 = vmatmul.mubr.f32.gmra.mrb[0].mxu0 %v1469
          %v1655 = vpop.f32.mrb[0].mxu0
          %v1656 = vadd.f32 %v1483, %v1655
          %v1657 = vpop.f32.mrb[0].mxu0
          %1658 = vmatprep.mubr.f32.mxu0 0.0
          %1659 = vmatmul.mubr.f32.gmra.mrb[0].mxu0 %v1470
          %v1660 = vpop.f32.mrb[0].mxu0
          %v1661 = vadd.f32 %v1483, %v1660
          %v1662 = vpop.f32.mrb[0].mxu0
          %1663 = vmatprep.mubr.f32.mxu0 0.0
          %1664 = vmatmul.mubr.f32.gmra.mrb[0].mxu0 %v1471
          %v1665 = vpop.f32.mrb[0].mxu0
          %v1666 = vadd.f32 %v1483, %v1665
          %v1667 = vpop.f32.mrb[0].mxu0
          %1668 = vmatprep.mubr.f32.mxu0 0.0
          %1669 = vmatmul.mubr.f32.gmra.mrb[0].mxu0 %v1472
          %v1670 = vpop.f32.mrb[0].mxu0
          %v1671 = vadd.f32 %v1483, %v1670
          %v1672 = vpop.f32.mrb[0].mxu0
          %1673 = vmatprep.mubr.f32.mxu0 0.0
          %1674 = vmatmul.mubr.f32.gmra.mrb[0].mxu0 %v1473
          %v1675 = vpop.f32.mrb[0].mxu0
          %v1676 = vadd.f32 %v1483, %v1675
          %v1677 = vpop.f32.mrb[0].mxu0
          %1678 = vmatprep.mubr.f32.mxu0 0.0
          %1679 = vmatmul.mubr.f32.gmra.mrb[0].mxu0 %v1474
          %v1680 = vpop.f32.mrb[0].mxu0
          %v1681 = vadd.f32 %v1483, %v1680
          %v1682 = vpop.f32.mrb[0].mxu0
          %1683 = vmatprep.mubr.f32.mxu0 0.0
          %1684 = vmatmul.mubr.f32.gmra.mrb[0].mxu0 %v1475
          %v1685 = vpop.f32.mrb[0].mxu0
          %v1686 = vadd.f32 %v1483, %v1685
          %v1687 = vpop.f32.mrb[0].mxu0
          %1688 = vmatprep.mubr.f32.mxu0 0.0
          %1689 = vmatmul.mubr.f32.gmra.mrb[0].mxu0 %v1476
          %v1690 = vpop.f32.mrb[0].mxu0
          %v1691 = vadd.f32 %v1483, %v1690
          %v1692 = vpop.f32.mrb[0].mxu0
          %1693 = vmatprep.mubr.f32.mxu0 0.0
          %1694 = vmatmul.mubr.f32.gmra.mrb[0].mxu0 %v1477
          %v1695 = vpop.f32.mrb[0].mxu0
          %v1696 = vadd.f32 %v1483, %v1695
          %v1697 = vpop.f32.mrb[0].mxu0
          %1698 = vmatprep.mubr.f32.mxu0 0.0
          %1699 = vmatmul.mubr.f32.gmra.mrb[0].mxu0 %v1478
          %v1700 = vpop.f32.mrb[0].mxu0
          %v1701 = vadd.f32 %v1483, %v1700
          %v1702 = vpop.f32.mrb[0].mxu0
          %1703 = vmatprep.mubr.f32.mxu0 0.0
          %1704 = vmatmul.mubr.f32.gmra.mrb[0].mxu0 %v1479
          %v1705 = vpop.f32.mrb[0].mxu0
          %v1706 = vadd.f32 %v1483, %v1705
          %v1707 = vpop.f32.mrb[0].mxu0
          %1708 = vdwg.mxu0
          %1709 = vst [vmem:[%s987] sm:$0xff] %v1551
          %1710 = vst [vmem:[%s987 + $0x8] sm:$0xff] %v1556
          %1711 = vst [vmem:[%s987 + $0x10] sm:$0xff] %v1561
          %1712 = vst [vmem:[%s987 + $0x18] sm:$0xff] %v1566
          %1713 = vst [vmem:[%s987 + $0x20] sm:$0xff] %v1571
          %1714 = vst [vmem:[%s987 + $0x28] sm:$0xff] %v1576
          %1715 = vst [vmem:[%s987 + $0x30] sm:$0xff] %v1581
          %1716 = vst [vmem:[%s987 + $0x38] sm:$0xff] %v1586
          %1717 = vst [vmem:[%s987 + $0x40] sm:$0xff] %v1591
          %1718 = vst [vmem:[%s987 + $0x48] sm:$0xff] %v1596
          %1719 = vst [vmem:[%s987 + $0x50] sm:$0xff] %v1601
          %1720 = vst [vmem:[%s987 + $0x58] sm:$0xff] %v1606
          %1721 = vst [vmem:[%s987 + $0x60] sm:$0xff] %v1611
          %1722 = vst [vmem:[%s987 + $0x68] sm:$0xff] %v1616
          %1723 = vst [vmem:[%s987 + $0x70] sm:$0xff] %v1621
          %1724 = vst [vmem:[%s987 + $0x78] sm:$0xff] %v1626
          %1725 = vst [vmem:[%s987 + $0x80] sm:$0xff] %v1631
          %1726 = vst [vmem:[%s987 + $0x88] sm:$0xff] %v1636
          %1727 = vst [vmem:[%s987 + $0x90] sm:$0xff] %v1641
          %1728 = vst [vmem:[%s987 + $0x98] sm:$0xff] %v1646
          %1729 = vst [vmem:[%s987 + $0xa0] sm:$0xff] %v1651
          %1730 = vst [vmem:[%s987 + $0xa8] sm:$0xff] %v1656
          %1731 = vst [vmem:[%s987 + $0xb0] sm:$0xff] %v1661
          %1732 = vst [vmem:[%s987 + $0xb8] sm:$0xff] %v1666
          %1733 = vst [vmem:[%s987 + $0xc0] sm:$0xff] %v1671
          %1734 = vst [vmem:[%s987 + $0xc8] sm:$0xff] %v1676
          %1735 = vst [vmem:[%s987 + $0xd0] sm:$0xff] %v1681
          %1736 = vst [vmem:[%s987 + $0xd8] sm:$0xff] %v1686
          %1737 = vst [vmem:[%s987 + $0xe0] sm:$0xff] %v1691
          %1738 = vst [vmem:[%s987 + $0xe8] sm:$0xff] %v1696
          %1739 = vst [vmem:[%s987 + $0xf0] sm:$0xff] %v1701
          %1740 = vst [vmem:[%s987 + $0xf8] sm:$0xff] %v1706
          %v1741 = vlaneseq
          %v1742 = vshrl.u32 %v1741, 7
          %v1743 = vadd.s32 %v1742, 8
          %v1744 = vadd.s32 %v1742, 16
          %v1745 = vadd.s32 %v1742, 24
          %v1746 = vadd.s32 %v1742, 32
          %v1747 = vadd.s32 %v1742, 40
          %v1748 = vadd.s32 %v1742, 48
          %v1749 = vadd.s32 %v1742, 56
          %v1750 = vadd.s32 %v1742, 64
          %v1751 = vadd.s32 %v1742, 72
          %v1752 = vadd.s32 %v1742, 80
          %v1753 = vadd.s32 %v1742, 88
          %v1754 = vadd.s32 %v1742, 96
          %v1755 = vadd.s32 %v1742, 104
          %v1756 = vadd.s32 %v1742, 112
          %v1757 = vadd.s32 %v1742, 120
          %v1758 = vadd.s32 %v1742, 128
          %v1759 = vadd.s32 %v1742, 136
          %v1760 = vadd.s32 %v1742, 144
          %v1761 = vadd.s32 %v1742, 152
          %v1762 = vadd.s32 %v1742, 160
          %v1763 = vadd.s32 %v1742, 168
          %v1764 = vadd.s32 %v1742, 176
          %v1765 = vadd.s32 %v1742, 184
          %v1766 = vadd.s32 %v1742, 192
          %v1767 = vadd.s32 %v1742, 200
          %v1768 = vadd.s32 %v1742, 208
          %v1769 = vadd.s32 %v1742, 216
          %v1770 = vadd.s32 %v1742, 224
          %v1771 = vadd.s32 %v1742, 232
          %v1772 = vadd.s32 %v1742, 240
          %v1773 = vadd.s32 %v1742, 248
          %v1774 = vstv %s432
          %v1775 = vadd.s32 %v1742, %v1774
          %v1776 = vadd.s32 %v1743, %v1774
          %v1777 = vadd.s32 %v1744, %v1774
          %v1778 = vadd.s32 %v1745, %v1774
          %v1779 = vadd.s32 %v1746, %v1774
          %v1780 = vadd.s32 %v1747, %v1774
          %v1781 = vadd.s32 %v1748, %v1774
          %v1782 = vadd.s32 %v1749, %v1774
          %v1783 = vadd.s32 %v1750, %v1774
          %v1784 = vadd.s32 %v1751, %v1774
          %v1785 = vadd.s32 %v1752, %v1774
          %v1786 = vadd.s32 %v1753, %v1774
          %v1787 = vadd.s32 %v1754, %v1774
          %v1788 = vadd.s32 %v1755, %v1774
          %v1789 = vadd.s32 %v1756, %v1774
          %v1790 = vadd.s32 %v1757, %v1774
          %v1791 = vadd.s32 %v1758, %v1774
          %v1792 = vadd.s32 %v1759, %v1774
          %v1793 = vadd.s32 %v1760, %v1774
          %v1794 = vadd.s32 %v1761, %v1774
          %v1795 = vadd.s32 %v1762, %v1774
          %v1796 = vadd.s32 %v1763, %v1774
          %v1797 = vadd.s32 %v1764, %v1774
          %v1798 = vadd.s32 %v1765, %v1774
          %v1799 = vadd.s32 %v1766, %v1774
          %v1800 = vadd.s32 %v1767, %v1774
          %v1801 = vadd.s32 %v1768, %v1774
          %v1802 = vadd.s32 %v1769, %v1774
          %v1803 = vadd.s32 %v1770, %v1774
          %v1804 = vadd.s32 %v1771, %v1774
          %v1805 = vadd.s32 %v1772, %v1774
          %v1806 = vadd.s32 %v1773, %v1774
          %vm1807 = vcmp.lt.s32.totalorder %v1775, 300
          %vm1808 = vcmp.lt.s32.totalorder %v1776, 300
          %vm1809 = vcmp.lt.s32.totalorder %v1777, 300
          %vm1810 = vcmp.lt.s32.totalorder %v1778, 300
          %vm1811 = vcmp.lt.s32.totalorder %v1779, 300
          %vm1812 = vcmp.lt.s32.totalorder %v1780, 300
          %vm1813 = vcmp.lt.s32.totalorder %v1781, 300
          %vm1814 = vcmp.lt.s32.totalorder %v1782, 300
          %vm1815 = vcmp.lt.s32.totalorder %v1783, 300
          %vm1816 = vcmp.lt.s32.totalorder %v1784, 300
          %vm1817 = vcmp.lt.s32.totalorder %v1785, 300
          %vm1818 = vcmp.lt.s32.totalorder %v1786, 300
          %vm1819 = vcmp.lt.s32.totalorder %v1787, 300
          %vm1820 = vcmp.lt.s32.totalorder %v1788, 300
          %vm1821 = vcmp.lt.s32.totalorder %v1789, 300
          %vm1822 = vcmp.lt.s32.totalorder %v1790, 300
          %vm1823 = vcmp.lt.s32.totalorder %v1791, 300
          %vm1824 = vcmp.lt.s32.totalorder %v1792, 300
          %vm1825 = vcmp.lt.s32.totalorder %v1793, 300
          %vm1826 = vcmp.lt.s32.totalorder %v1794, 300
          %vm1827 = vcmp.lt.s32.totalorder %v1795, 300
          %vm1828 = vcmp.lt.s32.totalorder %v1796, 300
          %vm1829 = vcmp.lt.s32.totalorder %v1797, 300
          %vm1830 = vcmp.lt.s32.totalorder %v1798, 300
          %vm1831 = vcmp.lt.s32.totalorder %v1799, 300
          %vm1832 = vcmp.lt.s32.totalorder %v1800, 300
          %vm1833 = vcmp.lt.s32.totalorder %v1801, 300
          %vm1834 = vcmp.lt.s32.totalorder %v1802, 300
          %vm1835 = vcmp.lt.s32.totalorder %v1803, 300
          %vm1836 = vcmp.lt.s32.totalorder %v1804, 300
          %vm1837 = vcmp.lt.s32.totalorder %v1805, 300
          %vm1838 = vcmp.lt.s32.totalorder %v1806, 300
          %v1839 = vsel %vm1807, %v1551, 0.0
          %v1840 = vsel %vm1808, %v1556, 0.0
          %v1841 = vsel %vm1809, %v1561, 0.0
          %v1842 = vsel %vm1810, %v1566, 0.0
          %v1843 = vsel %vm1811, %v1571, 0.0
          %v1844 = vsel %vm1812, %v1576, 0.0
          %v1845 = vsel %vm1813, %v1581, 0.0
          %v1846 = vsel %vm1814, %v1586, 0.0
          %v1847 = vsel %vm1815, %v1591, 0.0
          %v1848 = vsel %vm1816, %v1596, 0.0
          %v1849 = vsel %vm1817, %v1601, 0.0
          %v1850 = vsel %vm1818, %v1606, 0.0
          %v1851 = vsel %vm1819, %v1611, 0.0
          %v1852 = vsel %vm1820, %v1616, 0.0
          %v1853 = vsel %vm1821, %v1621, 0.0
          %v1854 = vsel %vm1822, %v1626, 0.0
          %v1855 = vsel %vm1823, %v1631, 0.0
          %v1856 = vsel %vm1824, %v1636, 0.0
          %v1857 = vsel %vm1825, %v1641, 0.0
          %v1858 = vsel %vm1826, %v1646, 0.0
          %v1859 = vsel %vm1827, %v1651, 0.0
          %v1860 = vsel %vm1828, %v1656, 0.0
          %v1861 = vsel %vm1829, %v1661, 0.0
          %v1862 = vsel %vm1830, %v1666, 0.0
          %v1863 = vsel %vm1831, %v1671, 0.0
          %v1864 = vsel %vm1832, %v1676, 0.0
          %v1865 = vsel %vm1833, %v1681, 0.0
          %v1866 = vsel %vm1834, %v1686, 0.0
          %v1867 = vsel %vm1835, %v1691, 0.0
          %v1868 = vsel %vm1836, %v1696, 0.0
          %v1869 = vsel %vm1837, %v1701, 0.0
          %v1870 = vsel %vm1838, %v1706, 0.0
          %v1871 = vld [vmem:[#allocation5] sm:$0x1]
          %v1872 = vadd.f32 %v1839, %v1840
          %v1873 = vadd.f32 %v1872, %v1841
          %v1874 = vadd.f32 %v1873, %v1842
          %v1875 = vadd.f32 %v1874, %v1843
          %v1876 = vadd.f32 %v1875, %v1844
          %v1877 = vadd.f32 %v1876, %v1845
          %v1878 = vadd.f32 %v1877, %v1846
          %v1879 = vadd.f32 %v1878, %v1847
          %v1880 = vadd.f32 %v1879, %v1848
          %v1881 = vadd.f32 %v1880, %v1849
          %v1882 = vadd.f32 %v1881, %v1850
          %v1883 = vadd.f32 %v1882, %v1851
          %v1884 = vadd.f32 %v1883, %v1852
          %v1885 = vadd.f32 %v1884, %v1853
          %v1886 = vadd.f32 %v1885, %v1854
          %v1887 = vadd.f32 %v1886, %v1855
          %v1888 = vadd.f32 %v1887, %v1856
          %v1889 = vadd.f32 %v1888, %v1857
          %v1890 = vadd.f32 %v1889, %v1858
          %v1891 = vadd.f32 %v1890, %v1859
          %v1892 = vadd.f32 %v1891, %v1860
          %v1893 = vadd.f32 %v1892, %v1861
          %v1894 = vadd.f32 %v1893, %v1862
          %v1895 = vadd.f32 %v1894, %v1863
          %v1896 = vadd.f32 %v1895, %v1864
          %v1897 = vadd.f32 %v1896, %v1865
          %v1898 = vadd.f32 %v1897, %v1866
          %v1899 = vadd.f32 %v1898, %v1867
          %v1900 = vadd.f32 %v1899, %v1868
          %v1901 = vadd.f32 %v1900, %v1869
          %v1902 = vadd.f32 %v1901, %v1870
          %v1903 = vrot.slane %v1902, 4
          %v1904 = vadd.f32 %v1902, %v1903
          %v1905 = vrot.slane %v1904, 2
          %v1906 = vadd.f32 %v1904, %v1905
          %v1907 = vrot.slane %v1906, 1
          %v1908 = vadd.f32 %v1906, %v1907
          %v1909 = vadd.f32 %v1871, %v1908
          %1910 = vst [vmem:[#allocation5] sm:$0x1] %v1909
          %v1911 = vld [vmem:[#allocation5 + $0x1] sm:$0x1]
          %v1912 = vmul.f32 %v1839, %v1839
          %v1913 = vmul.f32 %v1840, %v1840
          %v1914 = vmul.f32 %v1841, %v1841
          %v1915 = vmul.f32 %v1842, %v1842
          %v1916 = vmul.f32 %v1843, %v1843
          %v1917 = vmul.f32 %v1844, %v1844
          %v1918 = vmul.f32 %v1845, %v1845
          %v1919 = vmul.f32 %v1846, %v1846
          %v1920 = vmul.f32 %v1847, %v1847
          %v1921 = vmul.f32 %v1848, %v1848
          %v1922 = vmul.f32 %v1849, %v1849
          %v1923 = vmul.f32 %v1850, %v1850
          %v1924 = vmul.f32 %v1851, %v1851
          %v1925 = vmul.f32 %v1852, %v1852
          %v1926 = vmul.f32 %v1853, %v1853
          %v1927 = vmul.f32 %v1854, %v1854
          %v1928 = vmul.f32 %v1855, %v1855
          %v1929 = vmul.f32 %v1856, %v1856
          %v1930 = vmul.f32 %v1857, %v1857
          %v1931 = vmul.f32 %v1858, %v1858
          %v1932 = vmul.f32 %v1859, %v1859
          %v1933 = vmul.f32 %v1860, %v1860
          %v1934 = vmul.f32 %v1861, %v1861
          %v1935 = vmul.f32 %v1862, %v1862
          %v1936 = vmul.f32 %v1863, %v1863
          %v1937 = vmul.f32 %v1864, %v1864
          %v1938 = vmul.f32 %v1865, %v1865
          %v1939 = vmul.f32 %v1866, %v1866
          %v1940 = vmul.f32 %v1867, %v1867
          %v1941 = vmul.f32 %v1868, %v1868
          %v1942 = vmul.f32 %v1869, %v1869
          %v1943 = vmul.f32 %v1870, %v1870
          %v1944 = vadd.f32 %v1912, %v1913
          %v1945 = vadd.f32 %v1944, %v1914
          %v1946 = vadd.f32 %v1945, %v1915
          %v1947 = vadd.f32 %v1946, %v1916
          %v1948 = vadd.f32 %v1947, %v1917
          %v1949 = vadd.f32 %v1948, %v1918
          %v1950 = vadd.f32 %v1949, %v1919
          %v1951 = vadd.f32 %v1950, %v1920
          %v1952 = vadd.f32 %v1951, %v1921
          %v1953 = vadd.f32 %v1952, %v1922
          %v1954 = vadd.f32 %v1953, %v1923
          %v1955 = vadd.f32 %v1954, %v1924
          %v1956 = vadd.f32 %v1955, %v1925
          %v1957 = vadd.f32 %v1956, %v1926
          %v1958 = vadd.f32 %v1957, %v1927
          %v1959 = vadd.f32 %v1958, %v1928
          %v1960 = vadd.f32 %v1959, %v1929
          %v1961 = vadd.f32 %v1960, %v1930
          %v1962 = vadd.f32 %v1961, %v1931
          %v1963 = vadd.f32 %v1962, %v1932
          %v1964 = vadd.f32 %v1963, %v1933
          %v1965 = vadd.f32 %v1964, %v1934
          %v1966 = vadd.f32 %v1965, %v1935
          %v1967 = vadd.f32 %v1966, %v1936
          %v1968 = vadd.f32 %v1967, %v1937
          %v1969 = vadd.f32 %v1968, %v1938
          %v1970 = vadd.f32 %v1969, %v1939
          %v1971 = vadd.f32 %v1970, %v1940
          %v1972 = vadd.f32 %v1971, %v1941
          %v1973 = vadd.f32 %v1972, %v1942
          %v1974 = vadd.f32 %v1973, %v1943
          %v1975 = vrot.slane %v1974, 4
          %v1976 = vadd.f32 %v1974, %v1975
          %v1977 = vrot.slane %v1976, 2
          %v1978 = vadd.f32 %v1976, %v1977
          %v1979 = vrot.slane %v1978, 1
          %v1980 = vadd.f32 %v1978, %v1979
          %v1981 = vadd.f32 %v1911, %v1980
          %1982 = vst [vmem:[#allocation5 + $0x1] sm:$0x1] %v1981
        $region68: #{tpu_custom_call.1} parent=31 // pred_fallthru
          _
        %p1983 = scmp.eq.s32.totalorder %s27, 1
        %p1984 = pnand %p1983, %p230
        %p1985 = pneg %p1984
        // Predicated region
        $region69: #{tpu_custom_call.1} parent=31 // pred_check
          _
        $region70: #{tpu_custom_call.1} parent=31 // pred_check_branch
          %1987 = sbr.rel (%p1984) target = $region72
        $region71: #{tpu_custom_call.1} parent=31 // pred_region
          %v1988 = vld [vmem:[#allocation5] sm:$0x1]
          %v1989 = vmul.f32 %v1988, 0.0033333334
          %v1990 = vld [vmem:[#allocation5 + $0x1] sm:$0x1]
          %v1991 = vmul.f32 %v1990, 0.0033333334
          %v1992 = vmul.f32 %v1989, %v1989
          %v1993 = vsub.f32 %v1991, %v1992
          %v1994 = vld [vmem:[%s203 + $0x102] sm:$0x1]
          %v1995 = vld [vmem:[%s203 + $0x103] sm:$0x1]
          %v1996 = vadd.f32 %v1993, 1e-05
          %v1997 = vrsqrt.pop %v1996
          %v1998 = vmul.f32 %v1994, %v1997
          %v1999 = vmul.f32 %v1989, %v1998
          %v2000 = vsub.f32 %v1995, %v1999
          %v2001 = vld [vmem:[#allocation2] sm:$0xff]
          %v2002 = vld [vmem:[#allocation2 + $0x8] sm:$0xff]
          %v2003 = vld [vmem:[#allocation2 + $0x10] sm:$0xff]
          %v2004 = vld [vmem:[#allocation2 + $0x18] sm:$0xff]
          %v2005 = vld [vmem:[#allocation2 + $0x20] sm:$0xff]
          %v2006 = vld [vmem:[#allocation2 + $0x28] sm:$0xff]
          %v2007 = vld [vmem:[#allocation2 + $0x30] sm:$0xff]
          %v2008 = vld [vmem:[#allocation2 + $0x38] sm:$0xff]
          %v2009 = vld [vmem:[#allocation2 + $0x40] sm:$0xff]
          %v2010 = vld [vmem:[#allocation2 + $0x48] sm:$0xff]
          %v2011 = vld [vmem:[#allocation2 + $0x50] sm:$0xff]
          %v2012 = vld [vmem:[#allocation2 + $0x58] sm:$0xff]
          %v2013 = vld [vmem:[#allocation2 + $0x60] sm:$0xff]
          %v2014 = vld [vmem:[#allocation2 + $0x68] sm:$0xff]
          %v2015 = vld [vmem:[#allocation2 + $0x70] sm:$0xff]
          %v2016 = vld [vmem:[#allocation2 + $0x78] sm:$0xff]
          %v2017 = vld [vmem:[#allocation2 + $0x80] sm:$0xff]
          %v2018 = vld [vmem:[#allocation2 + $0x88] sm:$0xff]
          %v2019 = vld [vmem:[#allocation2 + $0x90] sm:$0xff]
          %v2020 = vld [vmem:[#allocation2 + $0x98] sm:$0xff]
          %v2021 = vld [vmem:[#allocation2 + $0xa0] sm:$0xff]
          %v2022 = vld [vmem:[#allocation2 + $0xa8] sm:$0xff]
          %v2023 = vld [vmem:[#allocation2 + $0xb0] sm:$0xff]
          %v2024 = vld [vmem:[#allocation2 + $0xb8] sm:$0xff]
          %v2025 = vld [vmem:[#allocation2 + $0xc0] sm:$0xff]
          %v2026 = vld [vmem:[#allocation2 + $0xc8] sm:$0xff]
          %v2027 = vld [vmem:[#allocation2 + $0xd0] sm:$0xff]
          %v2028 = vld [vmem:[#allocation2 + $0xd8] sm:$0xff]
          %v2029 = vld [vmem:[#allocation2 + $0xe0] sm:$0xff]
          %v2030 = vld [vmem:[#allocation2 + $0xe8] sm:$0xff]
          %v2031 = vld [vmem:[#allocation2 + $0xf0] sm:$0xff]
          %v2032 = vld [vmem:[#allocation2 + $0xf8] sm:$0xff]
          %v2033 = vld [vmem:[#allocation2 + $0x100] sm:$0xff]
          %v2034 = vld [vmem:[#allocation2 + $0x108] sm:$0xff]
          %v2035 = vld [vmem:[#allocation2 + $0x110] sm:$0xff]
          %v2036 = vld [vmem:[#allocation2 + $0x118] sm:$0xff]
          %v2037 = vld [vmem:[#allocation2 + $0x120] sm:$0xff]
          %v2038 = vld [vmem:[#allocation2 + $0x128] sm:$0xff]
          %v2039 = vld [vmem:[#allocation2 + $0x130] sm:$0xff]
          %v2040 = vld [vmem:[#allocation2 + $0x138] sm:$0xff]
          %v2041 = vld [vmem:[#allocation2 + $0x140] sm:$0xff]
          %v2042 = vld [vmem:[#allocation2 + $0x148] sm:$0xff]
          %v2043 = vld [vmem:[#allocation2 + $0x150] sm:$0xff]
          %v2044 = vld [vmem:[#allocation2 + $0x158] sm:$0xff]
          %v2045 = vld [vmem:[#allocation2 + $0x160] sm:$0xff]
          %v2046 = vld [vmem:[#allocation2 + $0x168] sm:$0xff]
          %v2047 = vld [vmem:[#allocation2 + $0x170] sm:$0xff]
          %v2048 = vld [vmem:[#allocation2 + $0x178] sm:$0xff]
          %v2049 = vld [vmem:[#allocation2 + $0x180] sm:$0xff]
          %v2050 = vld [vmem:[#allocation2 + $0x188] sm:$0xff]
          %v2051 = vld [vmem:[#allocation2 + $0x190] sm:$0xff]
          %v2052 = vld [vmem:[#allocation2 + $0x198] sm:$0xff]
          %v2053 = vld [vmem:[#allocation2 + $0x1a0] sm:$0xff]
          %v2054 = vld [vmem:[#allocation2 + $0x1a8] sm:$0xff]
          %v2055 = vld [vmem:[#allocation2 + $0x1b0] sm:$0xff]
          %v2056 = vld [vmem:[#allocation2 + $0x1b8] sm:$0xff]
          %v2057 = vld [vmem:[#allocation2 + $0x1c0] sm:$0xff]
          %v2058 = vld [vmem:[#allocation2 + $0x1c8] sm:$0xff]
          %v2059 = vld [vmem:[#allocation2 + $0x1d0] sm:$0xff]
          %v2060 = vld [vmem:[#allocation2 + $0x1d8] sm:$0xff]
          %v2061 = vld [vmem:[#allocation2 + $0x1e0] sm:$0xff]
          %v2062 = vld [vmem:[#allocation2 + $0x1e8] sm:$0xff]
          %v2063 = vld [vmem:[#allocation2 + $0x1f0] sm:$0xff]
          %v2064 = vld [vmem:[#allocation2 + $0x1f8] sm:$0xff]
          %v2065 = vlaneseq
          %v2066 = vshrl.u32 %v2065, 7
          %v2067 = vsub.s32 0, %v2066
          %v2068 = vrot.slane %v1998, %v2067
          %v2069 = vmul.f32 %v2001, %v2068
          %v2070 = vmul.f32 %v2002, %v2068
          %v2071 = vmul.f32 %v2003, %v2068
          %v2072 = vmul.f32 %v2004, %v2068
          %v2073 = vmul.f32 %v2005, %v2068
          %v2074 = vmul.f32 %v2006, %v2068
          %v2075 = vmul.f32 %v2007, %v2068
          %v2076 = vmul.f32 %v2008, %v2068
          %v2077 = vmul.f32 %v2009, %v2068
          %v2078 = vmul.f32 %v2010, %v2068
          %v2079 = vmul.f32 %v2011, %v2068
          %v2080 = vmul.f32 %v2012, %v2068
          %v2081 = vmul.f32 %v2013, %v2068
          %v2082 = vmul.f32 %v2014, %v2068
          %v2083 = vmul.f32 %v2015, %v2068
          %v2084 = vmul.f32 %v2016, %v2068
          %v2085 = vmul.f32 %v2017, %v2068
          %v2086 = vmul.f32 %v2018, %v2068
          %v2087 = vmul.f32 %v2019, %v2068
          %v2088 = vmul.f32 %v2020, %v2068
          %v2089 = vmul.f32 %v2021, %v2068
          %v2090 = vmul.f32 %v2022, %v2068
          %v2091 = vmul.f32 %v2023, %v2068
          %v2092 = vmul.f32 %v2024, %v2068
          %v2093 = vmul.f32 %v2025, %v2068
          %v2094 = vmul.f32 %v2026, %v2068
          %v2095 = vmul.f32 %v2027, %v2068
          %v2096 = vmul.f32 %v2028, %v2068
          %v2097 = vmul.f32 %v2029, %v2068
          %v2098 = vmul.f32 %v2030, %v2068
          %v2099 = vmul.f32 %v2031, %v2068
          %v2100 = vmul.f32 %v2032, %v2068
          %v2101 = vmul.f32 %v2033, %v2068
          %v2102 = vmul.f32 %v2034, %v2068
          %v2103 = vmul.f32 %v2035, %v2068
          %v2104 = vmul.f32 %v2036, %v2068
          %v2105 = vmul.f32 %v2037, %v2068
          %v2106 = vmul.f32 %v2038, %v2068
          %v2107 = vmul.f32 %v2039, %v2068
          %v2108 = vmul.f32 %v2040, %v2068
          %v2109 = vmul.f32 %v2041, %v2068
          %v2110 = vmul.f32 %v2042, %v2068
          %v2111 = vmul.f32 %v2043, %v2068
          %v2112 = vmul.f32 %v2044, %v2068
          %v2113 = vmul.f32 %v2045, %v2068
          %v2114 = vmul.f32 %v2046, %v2068
          %v2115 = vmul.f32 %v2047, %v2068
          %v2116 = vmul.f32 %v2048, %v2068
          %v2117 = vmul.f32 %v2049, %v2068
          %v2118 = vmul.f32 %v2050, %v2068
          %v2119 = vmul.f32 %v2051, %v2068
          %v2120 = vmul.f32 %v2052, %v2068
          %v2121 = vmul.f32 %v2053, %v2068
          %v2122 = vmul.f32 %v2054, %v2068
          %v2123 = vmul.f32 %v2055, %v2068
          %v2124 = vmul.f32 %v2056, %v2068
          %v2125 = vmul.f32 %v2057, %v2068
          %v2126 = vmul.f32 %v2058, %v2068
          %v2127 = vmul.f32 %v2059, %v2068
          %v2128 = vmul.f32 %v2060, %v2068
          %v2129 = vmul.f32 %v2061, %v2068
          %v2130 = vmul.f32 %v2062, %v2068
          %v2131 = vmul.f32 %v2063, %v2068
          %v2132 = vmul.f32 %v2064, %v2068
          %v2133 = vlaneseq
          %v2134 = vshrl.u32 %v2133, 7
          %v2135 = vsub.s32 0, %v2134
          %v2136 = vrot.slane %v2000, %v2135
          %v2137 = vadd.f32 %v2069, %v2136
          %v2138 = vadd.f32 %v2070, %v2136
          %v2139 = vadd.f32 %v2071, %v2136
          %v2140 = vadd.f32 %v2072, %v2136
          %v2141 = vadd.f32 %v2073, %v2136
          %v2142 = vadd.f32 %v2074, %v2136
          %v2143 = vadd.f32 %v2075, %v2136
          %v2144 = vadd.f32 %v2076, %v2136
          %v2145 = vadd.f32 %v2077, %v2136
          %v2146 = vadd.f32 %v2078, %v2136
          %v2147 = vadd.f32 %v2079, %v2136
          %v2148 = vadd.f32 %v2080, %v2136
          %v2149 = vadd.f32 %v2081, %v2136
          %v2150 = vadd.f32 %v2082, %v2136
          %v2151 = vadd.f32 %v2083, %v2136
          %v2152 = vadd.f32 %v2084, %v2136
          %v2153 = vadd.f32 %v2085, %v2136
          %v2154 = vadd.f32 %v2086, %v2136
          %v2155 = vadd.f32 %v2087, %v2136
          %v2156 = vadd.f32 %v2088, %v2136
          %v2157 = vadd.f32 %v2089, %v2136
          %v2158 = vadd.f32 %v2090, %v2136
          %v2159 = vadd.f32 %v2091, %v2136
          %v2160 = vadd.f32 %v2092, %v2136
          %v2161 = vadd.f32 %v2093, %v2136
          %v2162 = vadd.f32 %v2094, %v2136
          %v2163 = vadd.f32 %v2095, %v2136
          %v2164 = vadd.f32 %v2096, %v2136
          %v2165 = vadd.f32 %v2097, %v2136
          %v2166 = vadd.f32 %v2098, %v2136
          %v2167 = vadd.f32 %v2099, %v2136
          %v2168 = vadd.f32 %v2100, %v2136
          %v2169 = vadd.f32 %v2101, %v2136
          %v2170 = vadd.f32 %v2102, %v2136
          %v2171 = vadd.f32 %v2103, %v2136
          %v2172 = vadd.f32 %v2104, %v2136
          %v2173 = vadd.f32 %v2105, %v2136
          %v2174 = vadd.f32 %v2106, %v2136
          %v2175 = vadd.f32 %v2107, %v2136
          %v2176 = vadd.f32 %v2108, %v2136
          %v2177 = vadd.f32 %v2109, %v2136
          %v2178 = vadd.f32 %v2110, %v2136
          %v2179 = vadd.f32 %v2111, %v2136
          %v2180 = vadd.f32 %v2112, %v2136
          %v2181 = vadd.f32 %v2113, %v2136
          %v2182 = vadd.f32 %v2114, %v2136
          %v2183 = vadd.f32 %v2115, %v2136
          %v2184 = vadd.f32 %v2116, %v2136
          %v2185 = vadd.f32 %v2117, %v2136
          %v2186 = vadd.f32 %v2118, %v2136
          %v2187 = vadd.f32 %v2119, %v2136
          %v2188 = vadd.f32 %v2120, %v2136
          %v2189 = vadd.f32 %v2121, %v2136
          %v2190 = vadd.f32 %v2122, %v2136
          %v2191 = vadd.f32 %v2123, %v2136
          %v2192 = vadd.f32 %v2124, %v2136
          %v2193 = vadd.f32 %v2125, %v2136
          %v2194 = vadd.f32 %v2126, %v2136
          %v2195 = vadd.f32 %v2127, %v2136
          %v2196 = vadd.f32 %v2128, %v2136
          %v2197 = vadd.f32 %v2129, %v2136
          %v2198 = vadd.f32 %v2130, %v2136
          %v2199 = vadd.f32 %v2131, %v2136
          %v2200 = vadd.f32 %v2132, %v2136
          %vm2201 = vcmp.gt.f32.partialorder %v2137, 0.0
          %vm2202 = vcmp.gt.f32.partialorder %v2138, 0.0
          %vm2203 = vcmp.gt.f32.partialorder %v2139, 0.0
          %vm2204 = vcmp.gt.f32.partialorder %v2140, 0.0
          %vm2205 = vcmp.gt.f32.partialorder %v2141, 0.0
          %vm2206 = vcmp.gt.f32.partialorder %v2142, 0.0
          %vm2207 = vcmp.gt.f32.partialorder %v2143, 0.0
          %vm2208 = vcmp.gt.f32.partialorder %v2144, 0.0
          %vm2209 = vcmp.gt.f32.partialorder %v2145, 0.0
          %vm2210 = vcmp.gt.f32.partialorder %v2146, 0.0
          %vm2211 = vcmp.gt.f32.partialorder %v2147, 0.0
          %vm2212 = vcmp.gt.f32.partialorder %v2148, 0.0
          %vm2213 = vcmp.gt.f32.partialorder %v2149, 0.0
          %vm2214 = vcmp.gt.f32.partialorder %v2150, 0.0
          %vm2215 = vcmp.gt.f32.partialorder %v2151, 0.0
          %vm2216 = vcmp.gt.f32.partialorder %v2152, 0.0
          %vm2217 = vcmp.gt.f32.partialorder %v2153, 0.0
          %vm2218 = vcmp.gt.f32.partialorder %v2154, 0.0
          %vm2219 = vcmp.gt.f32.partialorder %v2155, 0.0
          %vm2220 = vcmp.gt.f32.partialorder %v2156, 0.0
          %vm2221 = vcmp.gt.f32.partialorder %v2157, 0.0
          %vm2222 = vcmp.gt.f32.partialorder %v2158, 0.0
          %vm2223 = vcmp.gt.f32.partialorder %v2159, 0.0
          %vm2224 = vcmp.gt.f32.partialorder %v2160, 0.0
          %vm2225 = vcmp.gt.f32.partialorder %v2161, 0.0
          %vm2226 = vcmp.gt.f32.partialorder %v2162, 0.0
          %vm2227 = vcmp.gt.f32.partialorder %v2163, 0.0
          %vm2228 = vcmp.gt.f32.partialorder %v2164, 0.0
          %vm2229 = vcmp.gt.f32.partialorder %v2165, 0.0
          %vm2230 = vcmp.gt.f32.partialorder %v2166, 0.0
          %vm2231 = vcmp.gt.f32.partialorder %v2167, 0.0
          %vm2232 = vcmp.gt.f32.partialorder %v2168, 0.0
          %vm2233 = vcmp.gt.f32.partialorder %v2169, 0.0
          %vm2234 = vcmp.gt.f32.partialorder %v2170, 0.0
          %vm2235 = vcmp.gt.f32.partialorder %v2171, 0.0
          %vm2236 = vcmp.gt.f32.partialorder %v2172, 0.0
          %vm2237 = vcmp.gt.f32.partialorder %v2173, 0.0
          %vm2238 = vcmp.gt.f32.partialorder %v2174, 0.0
          %vm2239 = vcmp.gt.f32.partialorder %v2175, 0.0
          %vm2240 = vcmp.gt.f32.partialorder %v2176, 0.0
          %vm2241 = vcmp.gt.f32.partialorder %v2177, 0.0
          %vm2242 = vcmp.gt.f32.partialorder %v2178, 0.0
          %vm2243 = vcmp.gt.f32.partialorder %v2179, 0.0
          %vm2244 = vcmp.gt.f32.partialorder %v2180, 0.0
          %vm2245 = vcmp.gt.f32.partialorder %v2181, 0.0
          %vm2246 = vcmp.gt.f32.partialorder %v2182, 0.0
          %vm2247 = vcmp.gt.f32.partialorder %v2183, 0.0
          %vm2248 = vcmp.gt.f32.partialorder %v2184, 0.0
          %vm2249 = vcmp.gt.f32.partialorder %v2185, 0.0
          %vm2250 = vcmp.gt.f32.partialorder %v2186, 0.0
          %vm2251 = vcmp.gt.f32.partialorder %v2187, 0.0
          %vm2252 = vcmp.gt.f32.partialorder %v2188, 0.0
          %vm2253 = vcmp.gt.f32.partialorder %v2189, 0.0
          %vm2254 = vcmp.gt.f32.partialorder %v2190, 0.0
          %vm2255 = vcmp.gt.f32.partialorder %v2191, 0.0
          %vm2256 = vcmp.gt.f32.partialorder %v2192, 0.0
          %vm2257 = vcmp.gt.f32.partialorder %v2193, 0.0
          %vm2258 = vcmp.gt.f32.partialorder %v2194, 0.0
          %vm2259 = vcmp.gt.f32.partialorder %v2195, 0.0
          %vm2260 = vcmp.gt.f32.partialorder %v2196, 0.0
          %vm2261 = vcmp.gt.f32.partialorder %v2197, 0.0
          %vm2262 = vcmp.gt.f32.partialorder %v2198, 0.0
          %vm2263 = vcmp.gt.f32.partialorder %v2199, 0.0
          %vm2264 = vcmp.gt.f32.partialorder %v2200, 0.0
          %v2265 = vmul.f32 %v2137, 0.01
          %v2266 = vmul.f32 %v2138, 0.01
          %v2267 = vmul.f32 %v2139, 0.01
          %v2268 = vmul.f32 %v2140, 0.01
          %v2269 = vmul.f32 %v2141, 0.01
          %v2270 = vmul.f32 %v2142, 0.01
          %v2271 = vmul.f32 %v2143, 0.01
          %v2272 = vmul.f32 %v2144, 0.01
          %v2273 = vmul.f32 %v2145, 0.01
          %v2274 = vmul.f32 %v2146, 0.01
          %v2275 = vmul.f32 %v2147, 0.01
          %v2276 = vmul.f32 %v2148, 0.01
          %v2277 = vmul.f32 %v2149, 0.01
          %v2278 = vmul.f32 %v2150, 0.01
          %v2279 = vmul.f32 %v2151, 0.01
          %v2280 = vmul.f32 %v2152, 0.01
          %v2281 = vmul.f32 %v2153, 0.01
          %v2282 = vmul.f32 %v2154, 0.01
          %v2283 = vmul.f32 %v2155, 0.01
          %v2284 = vmul.f32 %v2156, 0.01
          %v2285 = vmul.f32 %v2157, 0.01
          %v2286 = vmul.f32 %v2158, 0.01
          %v2287 = vmul.f32 %v2159, 0.01
          %v2288 = vmul.f32 %v2160, 0.01
          %v2289 = vmul.f32 %v2161, 0.01
          %v2290 = vmul.f32 %v2162, 0.01
          %v2291 = vmul.f32 %v2163, 0.01
          %v2292 = vmul.f32 %v2164, 0.01
          %v2293 = vmul.f32 %v2165, 0.01
          %v2294 = vmul.f32 %v2166, 0.01
          %v2295 = vmul.f32 %v2167, 0.01
          %v2296 = vmul.f32 %v2168, 0.01
          %v2297 = vmul.f32 %v2169, 0.01
          %v2298 = vmul.f32 %v2170, 0.01
          %v2299 = vmul.f32 %v2171, 0.01
          %v2300 = vmul.f32 %v2172, 0.01
          %v2301 = vmul.f32 %v2173, 0.01
          %v2302 = vmul.f32 %v2174, 0.01
          %v2303 = vmul.f32 %v2175, 0.01
          %v2304 = vmul.f32 %v2176, 0.01
          %v2305 = vmul.f32 %v2177, 0.01
          %v2306 = vmul.f32 %v2178, 0.01
          %v2307 = vmul.f32 %v2179, 0.01
          %v2308 = vmul.f32 %v2180, 0.01
          %v2309 = vmul.f32 %v2181, 0.01
          %v2310 = vmul.f32 %v2182, 0.01
          %v2311 = vmul.f32 %v2183, 0.01
          %v2312 = vmul.f32 %v2184, 0.01
          %v2313 = vmul.f32 %v2185, 0.01
          %v2314 = vmul.f32 %v2186, 0.01
          %v2315 = vmul.f32 %v2187, 0.01
          %v2316 = vmul.f32 %v2188, 0.01
          %v2317 = vmul.f32 %v2189, 0.01
          %v2318 = vmul.f32 %v2190, 0.01
          %v2319 = vmul.f32 %v2191, 0.01
          %v2320 = vmul.f32 %v2192, 0.01
          %v2321 = vmul.f32 %v2193, 0.01
          %v2322 = vmul.f32 %v2194, 0.01
          %v2323 = vmul.f32 %v2195, 0.01
          %v2324 = vmul.f32 %v2196, 0.01
          %v2325 = vmul.f32 %v2197, 0.01
          %v2326 = vmul.f32 %v2198, 0.01
          %v2327 = vmul.f32 %v2199, 0.01
          %v2328 = vmul.f32 %v2200, 0.01
          %v2329 = vsel %vm2201, %v2137, %v2265
          %v2330 = vsel %vm2202, %v2138, %v2266
          %v2331 = vsel %vm2203, %v2139, %v2267
          %v2332 = vsel %vm2204, %v2140, %v2268
          %v2333 = vsel %vm2205, %v2141, %v2269
          %v2334 = vsel %vm2206, %v2142, %v2270
          %v2335 = vsel %vm2207, %v2143, %v2271
          %v2336 = vsel %vm2208, %v2144, %v2272
          %v2337 = vsel %vm2209, %v2145, %v2273
          %v2338 = vsel %vm2210, %v2146, %v2274
          %v2339 = vsel %vm2211, %v2147, %v2275
          %v2340 = vsel %vm2212, %v2148, %v2276
          %v2341 = vsel %vm2213, %v2149, %v2277
          %v2342 = vsel %vm2214, %v2150, %v2278
          %v2343 = vsel %vm2215, %v2151, %v2279
          %v2344 = vsel %vm2216, %v2152, %v2280
          %v2345 = vsel %vm2217, %v2153, %v2281
          %v2346 = vsel %vm2218, %v2154, %v2282
          %v2347 = vsel %vm2219, %v2155, %v2283
          %v2348 = vsel %vm2220, %v2156, %v2284
          %v2349 = vsel %vm2221, %v2157, %v2285
          %v2350 = vsel %vm2222, %v2158, %v2286
          %v2351 = vsel %vm2223, %v2159, %v2287
          %v2352 = vsel %vm2224, %v2160, %v2288
          %v2353 = vsel %vm2225, %v2161, %v2289
          %v2354 = vsel %vm2226, %v2162, %v2290
          %v2355 = vsel %vm2227, %v2163, %v2291
          %v2356 = vsel %vm2228, %v2164, %v2292
          %v2357 = vsel %vm2229, %v2165, %v2293
          %v2358 = vsel %vm2230, %v2166, %v2294
          %v2359 = vsel %vm2231, %v2167, %v2295
          %v2360 = vsel %vm2232, %v2168, %v2296
          %v2361 = vsel %vm2233, %v2169, %v2297
          %v2362 = vsel %vm2234, %v2170, %v2298
          %v2363 = vsel %vm2235, %v2171, %v2299
          %v2364 = vsel %vm2236, %v2172, %v2300
          %v2365 = vsel %vm2237, %v2173, %v2301
          %v2366 = vsel %vm2238, %v2174, %v2302
          %v2367 = vsel %vm2239, %v2175, %v2303
          %v2368 = vsel %vm2240, %v2176, %v2304
          %v2369 = vsel %vm2241, %v2177, %v2305
          %v2370 = vsel %vm2242, %v2178, %v2306
          %v2371 = vsel %vm2243, %v2179, %v2307
          %v2372 = vsel %vm2244, %v2180, %v2308
          %v2373 = vsel %vm2245, %v2181, %v2309
          %v2374 = vsel %vm2246, %v2182, %v2310
          %v2375 = vsel %vm2247, %v2183, %v2311
          %v2376 = vsel %vm2248, %v2184, %v2312
          %v2377 = vsel %vm2249, %v2185, %v2313
          %v2378 = vsel %vm2250, %v2186, %v2314
          %v2379 = vsel %vm2251, %v2187, %v2315
          %v2380 = vsel %vm2252, %v2188, %v2316
          %v2381 = vsel %vm2253, %v2189, %v2317
          %v2382 = vsel %vm2254, %v2190, %v2318
          %v2383 = vsel %vm2255, %v2191, %v2319
          %v2384 = vsel %vm2256, %v2192, %v2320
          %v2385 = vsel %vm2257, %v2193, %v2321
          %v2386 = vsel %vm2258, %v2194, %v2322
          %v2387 = vsel %vm2259, %v2195, %v2323
          %v2388 = vsel %vm2260, %v2196, %v2324
          %v2389 = vsel %vm2261, %v2197, %v2325
          %v2390 = vsel %vm2262, %v2198, %v2326
          %v2391 = vsel %vm2263, %v2199, %v2327
          %v2392 = vsel %vm2264, %v2200, %v2328
          %2393 = vst [vmem:[#allocation2] sm:$0xff] %v2329
          %2394 = vst [vmem:[#allocation2 + $0x8] sm:$0xff] %v2330
          %2395 = vst [vmem:[#allocation2 + $0x10] sm:$0xff] %v2331
          %2396 = vst [vmem:[#allocation2 + $0x18] sm:$0xff] %v2332
          %2397 = vst [vmem:[#allocation2 + $0x20] sm:$0xff] %v2333
          %2398 = vst [vmem:[#allocation2 + $0x28] sm:$0xff] %v2334
          %2399 = vst [vmem:[#allocation2 + $0x30] sm:$0xff] %v2335
          %2400 = vst [vmem:[#allocation2 + $0x38] sm:$0xff] %v2336
          %2401 = vst [vmem:[#allocation2 + $0x40] sm:$0xff] %v2337
          %2402 = vst [vmem:[#allocation2 + $0x48] sm:$0xff] %v2338
          %2403 = vst [vmem:[#allocation2 + $0x50] sm:$0xff] %v2339
          %2404 = vst [vmem:[#allocation2 + $0x58] sm:$0xff] %v2340
          %2405 = vst [vmem:[#allocation2 + $0x60] sm:$0xff] %v2341
          %2406 = vst [vmem:[#allocation2 + $0x68] sm:$0xff] %v2342
          %2407 = vst [vmem:[#allocation2 + $0x70] sm:$0xff] %v2343
          %2408 = vst [vmem:[#allocation2 + $0x78] sm:$0xff] %v2344
          %2409 = vst [vmem:[#allocation2 + $0x80] sm:$0xff] %v2345
          %2410 = vst [vmem:[#allocation2 + $0x88] sm:$0xff] %v2346
          %2411 = vst [vmem:[#allocation2 + $0x90] sm:$0xff] %v2347
          %2412 = vst [vmem:[#allocation2 + $0x98] sm:$0xff] %v2348
          %2413 = vst [vmem:[#allocation2 + $0xa0] sm:$0xff] %v2349
          %2414 = vst [vmem:[#allocation2 + $0xa8] sm:$0xff] %v2350
          %2415 = vst [vmem:[#allocation2 + $0xb0] sm:$0xff] %v2351
          %2416 = vst [vmem:[#allocation2 + $0xb8] sm:$0xff] %v2352
          %2417 = vst [vmem:[#allocation2 + $0xc0] sm:$0xff] %v2353
          %2418 = vst [vmem:[#allocation2 + $0xc8] sm:$0xff] %v2354
          %2419 = vst [vmem:[#allocation2 + $0xd0] sm:$0xff] %v2355
          %2420 = vst [vmem:[#allocation2 + $0xd8] sm:$0xff] %v2356
          %2421 = vst [vmem:[#allocation2 + $0xe0] sm:$0xff] %v2357
          %2422 = vst [vmem:[#allocation2 + $0xe8] sm:$0xff] %v2358
          %2423 = vst [vmem:[#allocation2 + $0xf0] sm:$0xff] %v2359
          %2424 = vst [vmem:[#allocation2 + $0xf8] sm:$0xff] %v2360
          %2425 = vst [vmem:[#allocation2 + $0x100] sm:$0xff] %v2361
          %2426 = vst [vmem:[#allocation2 + $0x108] sm:$0xff] %v2362
          %2427 = vst [vmem:[#allocation2 + $0x110] sm:$0xff] %v2363
          %2428 = vst [vmem:[#allocation2 + $0x118] sm:$0xff] %v2364
          %2429 = vst [vmem:[#allocation2 + $0x120] sm:$0xff] %v2365
          %2430 = vst [vmem:[#allocation2 + $0x128] sm:$0xff] %v2366
          %2431 = vst [vmem:[#allocation2 + $0x130] sm:$0xff] %v2367
          %2432 = vst [vmem:[#allocation2 + $0x138] sm:$0xff] %v2368
          %2433 = vst [vmem:[#allocation2 + $0x140] sm:$0xff] %v2369
          %2434 = vst [vmem:[#allocation2 + $0x148] sm:$0xff] %v2370
          %2435 = vst [vmem:[#allocation2 + $0x150] sm:$0xff] %v2371
          %2436 = vst [vmem:[#allocation2 + $0x158] sm:$0xff] %v2372
          %2437 = vst [vmem:[#allocation2 + $0x160] sm:$0xff] %v2373
          %2438 = vst [vmem:[#allocation2 + $0x168] sm:$0xff] %v2374
          %2439 = vst [vmem:[#allocation2 + $0x170] sm:$0xff] %v2375
          %2440 = vst [vmem:[#allocation2 + $0x178] sm:$0xff] %v2376
          %2441 = vst [vmem:[#allocation2 + $0x180] sm:$0xff] %v2377
          %2442 = vst [vmem:[#allocation2 + $0x188] sm:$0xff] %v2378
          %2443 = vst [vmem:[#allocation2 + $0x190] sm:$0xff] %v2379
          %2444 = vst [vmem:[#allocation2 + $0x198] sm:$0xff] %v2380
          %2445 = vst [vmem:[#allocation2 + $0x1a0] sm:$0xff] %v2381
          %2446 = vst [vmem:[#allocation2 + $0x1a8] sm:$0xff] %v2382
          %2447 = vst [vmem:[#allocation2 + $0x1b0] sm:$0xff] %v2383
          %2448 = vst [vmem:[#allocation2 + $0x1b8] sm:$0xff] %v2384
          %2449 = vst [vmem:[#allocation2 + $0x1c0] sm:$0xff] %v2385
          %2450 = vst [vmem:[#allocation2 + $0x1c8] sm:$0xff] %v2386
          %2451 = vst [vmem:[#allocation2 + $0x1d0] sm:$0xff] %v2387
          %2452 = vst [vmem:[#allocation2 + $0x1d8] sm:$0xff] %v2388
          %2453 = vst [vmem:[#allocation2 + $0x1e0] sm:$0xff] %v2389
          %2454 = vst [vmem:[#allocation2 + $0x1e8] sm:$0xff] %v2390
          %2455 = vst [vmem:[#allocation2 + $0x1f0] sm:$0xff] %v2391
          %2456 = vst [vmem:[#allocation2 + $0x1f8] sm:$0xff] %v2392
          %v2457 = vpack.c.bf16 %v2330, %v2329
          %v2458 = vpack.c.bf16 %v2332, %v2331
          %v2459 = vpack.c.bf16 %v2334, %v2333
          %v2460 = vpack.c.bf16 %v2336, %v2335
          %v2461 = vpack.c.bf16 %v2338, %v2337
          %v2462 = vpack.c.bf16 %v2340, %v2339
          %v2463 = vpack.c.bf16 %v2342, %v2341
          %v2464 = vpack.c.bf16 %v2344, %v2343
          %v2465 = vpack.c.bf16 %v2346, %v2345
          %v2466 = vpack.c.bf16 %v2348, %v2347
          %v2467 = vpack.c.bf16 %v2350, %v2349
          %v2468 = vpack.c.bf16 %v2352, %v2351
          %v2469 = vpack.c.bf16 %v2354, %v2353
          %v2470 = vpack.c.bf16 %v2356, %v2355
          %v2471 = vpack.c.bf16 %v2358, %v2357
          %v2472 = vpack.c.bf16 %v2360, %v2359
          %v2473 = vpack.c.bf16 %v2362, %v2361
          %v2474 = vpack.c.bf16 %v2364, %v2363
          %v2475 = vpack.c.bf16 %v2366, %v2365
          %v2476 = vpack.c.bf16 %v2368, %v2367
          %v2477 = vpack.c.bf16 %v2370, %v2369
          %v2478 = vpack.c.bf16 %v2372, %v2371
          %v2479 = vpack.c.bf16 %v2374, %v2373
          %v2480 = vpack.c.bf16 %v2376, %v2375
          %v2481 = vpack.c.bf16 %v2378, %v2377
          %v2482 = vpack.c.bf16 %v2380, %v2379
          %v2483 = vpack.c.bf16 %v2382, %v2381
          %v2484 = vpack.c.bf16 %v2384, %v2383
          %v2485 = vpack.c.bf16 %v2386, %v2385
          %v2486 = vpack.c.bf16 %v2388, %v2387
          %v2487 = vpack.c.bf16 %v2390, %v2389
          %v2488 = vpack.c.bf16 %v2392, %v2391
          %2489 = vst [vmem:[#allocation3] sm:$0xff] %v2457
          %2490 = vst [vmem:[#allocation3 + $0x8] sm:$0xff] %v2458
          %2491 = vst [vmem:[#allocation3 + $0x10] sm:$0xff] %v2459
          %2492 = vst [vmem:[#allocation3 + $0x18] sm:$0xff] %v2460
          %2493 = vst [vmem:[#allocation3 + $0x20] sm:$0xff] %v2461
          %2494 = vst [vmem:[#allocation3 + $0x28] sm:$0xff] %v2462
          %2495 = vst [vmem:[#allocation3 + $0x30] sm:$0xff] %v2463
          %2496 = vst [vmem:[#allocation3 + $0x38] sm:$0xff] %v2464
          %2497 = vst [vmem:[#allocation3 + $0x40] sm:$0xff] %v2465
          %2498 = vst [vmem:[#allocation3 + $0x48] sm:$0xff] %v2466
          %2499 = vst [vmem:[#allocation3 + $0x50] sm:$0xff] %v2467
          %2500 = vst [vmem:[#allocation3 + $0x58] sm:$0xff] %v2468
          %2501 = vst [vmem:[#allocation3 + $0x60] sm:$0xff] %v2469
          %2502 = vst [vmem:[#allocation3 + $0x68] sm:$0xff] %v2470
          %2503 = vst [vmem:[#allocation3 + $0x70] sm:$0xff] %v2471
          %2504 = vst [vmem:[#allocation3 + $0x78] sm:$0xff] %v2472
          %2505 = vst [vmem:[#allocation3 + $0x80] sm:$0xff] %v2473
          %2506 = vst [vmem:[#allocation3 + $0x88] sm:$0xff] %v2474
          %2507 = vst [vmem:[#allocation3 + $0x90] sm:$0xff] %v2475
          %2508 = vst [vmem:[#allocation3 + $0x98] sm:$0xff] %v2476
          %2509 = vst [vmem:[#allocation3 + $0xa0] sm:$0xff] %v2477
          %2510 = vst [vmem:[#allocation3 + $0xa8] sm:$0xff] %v2478
          %2511 = vst [vmem:[#allocation3 + $0xb0] sm:$0xff] %v2479
          %2512 = vst [vmem:[#allocation3 + $0xb8] sm:$0xff] %v2480
          %2513 = vst [vmem:[#allocation3 + $0xc0] sm:$0xff] %v2481
          %2514 = vst [vmem:[#allocation3 + $0xc8] sm:$0xff] %v2482
          %2515 = vst [vmem:[#allocation3 + $0xd0] sm:$0xff] %v2483
          %2516 = vst [vmem:[#allocation3 + $0xd8] sm:$0xff] %v2484
          %2517 = vst [vmem:[#allocation3 + $0xe0] sm:$0xff] %v2485
          %2518 = vst [vmem:[#allocation3 + $0xe8] sm:$0xff] %v2486
          %2519 = vst [vmem:[#allocation3 + $0xf0] sm:$0xff] %v2487
          %2520 = vst [vmem:[#allocation3 + $0xf8] sm:$0xff] %v2488
        $region72: #{tpu_custom_call.1} parent=31 // pred_fallthru
          _
        %p2521 = scmp.eq.s32.totalorder %s26, 1
        %p2522 = pnand %p2521, %p1983
        %p2523 = pneg %p2522
        %p2524 = pnand %p2523, %p230
        %p2525 = pneg %p2524
        // Predicated region
        $region73: #{tpu_custom_call.1} parent=31 // pred_check
          _
        $region74: #{tpu_custom_call.1} parent=31 // pred_check_branch
          %2527 = sbr.rel (%p2524) target = $region76
        $region75: #{tpu_custom_call.1} parent=31 // pred_region
          %v2528 = vld [vmem:[#allocation8] sm:$0xff]
          %v2529 = vld [vmem:[#allocation8 + $0x8] sm:$0xff]
          %v2530 = vld [vmem:[#allocation3] sm:$0xff]
          %v2531 = vld [vmem:[#allocation3 + $0x8] sm:$0xff]
          %v2532 = vld [vmem:[#allocation3 + $0x10] sm:$0xff]
          %v2533 = vld [vmem:[#allocation3 + $0x18] sm:$0xff]
          %v2534 = vld [vmem:[#allocation3 + $0x20] sm:$0xff]
          %v2535 = vld [vmem:[#allocation3 + $0x28] sm:$0xff]
          %v2536 = vld [vmem:[#allocation3 + $0x30] sm:$0xff]
          %v2537 = vld [vmem:[#allocation3 + $0x38] sm:$0xff]
          %v2538 = vld [vmem:[#allocation3 + $0x40] sm:$0xff]
          %v2539 = vld [vmem:[#allocation3 + $0x48] sm:$0xff]
          %v2540 = vld [vmem:[#allocation3 + $0x50] sm:$0xff]
          %v2541 = vld [vmem:[#allocation3 + $0x58] sm:$0xff]
          %v2542 = vld [vmem:[#allocation3 + $0x60] sm:$0xff]
          %v2543 = vld [vmem:[#allocation3 + $0x68] sm:$0xff]
          %v2544 = vld [vmem:[#allocation3 + $0x70] sm:$0xff]
          %v2545 = vld [vmem:[#allocation3 + $0x78] sm:$0xff]
          %v2546 = vld [vmem:[#allocation3 + $0x80] sm:$0xff]
          %v2547 = vld [vmem:[#allocation3 + $0x88] sm:$0xff]
          %v2548 = vld [vmem:[#allocation3 + $0x90] sm:$0xff]
          %v2549 = vld [vmem:[#allocation3 + $0x98] sm:$0xff]
          %v2550 = vld [vmem:[#allocation3 + $0xa0] sm:$0xff]
          %v2551 = vld [vmem:[#allocation3 + $0xa8] sm:$0xff]
          %v2552 = vld [vmem:[#allocation3 + $0xb0] sm:$0xff]
          %v2553 = vld [vmem:[#allocation3 + $0xb8] sm:$0xff]
          %v2554 = vld [vmem:[#allocation3 + $0xc0] sm:$0xff]
          %v2555 = vld [vmem:[#allocation3 + $0xc8] sm:$0xff]
          %v2556 = vld [vmem:[#allocation3 + $0xd0] sm:$0xff]
          %v2557 = vld [vmem:[#allocation3 + $0xd8] sm:$0xff]
          %v2558 = vld [vmem:[#allocation3 + $0xe0] sm:$0xff]
          %v2559 = vld [vmem:[#allocation3 + $0xe8] sm:$0xff]
          %v2560 = vld [vmem:[#allocation3 + $0xf0] sm:$0xff]
          %v2561 = vld [vmem:[#allocation3 + $0xf8] sm:$0xff]
          %v2564 = vunpack.c.l.b16 %v2528
          %v2565 = vunpack.c.h.b16 %v2528
          %v2566 = vunpack.c.l.b16 %v2529
          %v2567 = vunpack.c.h.b16 %v2529
          %v2568 = vpack.c.b16 %v2564, %v2564
          %v2569 = vpack.c.b16 %v2565, %v2565
          %v2570 = vpack.c.b16 %v2566, %v2566
          %v2571 = vpack.c.b16 %v2567, %v2567
          %2576 = vmatprep.subr.bf16.mxu0 0
          %2577 = vmatpush1.bf16.msra.mxu0 %v2530
          %2578 = vmatprep.subr.bf16.mxu0 0
          %2579 = vmatpush1.bf16.msra.mxu0 %v2531
          %2580 = vmatprep.subr.bf16.mxu0 0
          %2581 = vmatpush1.bf16.msra.mxu0 %v2532
          %2582 = vmatprep.subr.bf16.mxu0 0
          %2583 = vmatpush1.bf16.msra.mxu0 %v2533
          %2584 = vmatprep.subr.bf16.mxu0 0
          %2585 = vmatpush1.bf16.msra.mxu0 %v2534
          %2586 = vmatprep.subr.bf16.mxu0 0
          %2587 = vmatpush1.bf16.msra.mxu0 %v2535
          %2588 = vmatprep.subr.bf16.mxu0 0
          %2589 = vmatpush1.bf16.msra.mxu0 %v2536
          %2590 = vmatprep.subr.bf16.mxu0 0
          %2591 = vmatpush1.bf16.msra.mxu0 %v2537
          %2592 = vmatprep.subr.bf16.mxu0 0
          %2593 = vmatpush1.bf16.msra.mxu0 %v2538
          %2594 = vmatprep.subr.bf16.mxu0 0
          %2595 = vmatpush1.bf16.msra.mxu0 %v2539
          %2596 = vmatprep.subr.bf16.mxu0 0
          %2597 = vmatpush1.bf16.msra.mxu0 %v2540
          %2598 = vmatprep.subr.bf16.mxu0 0
          %2599 = vmatpush1.bf16.msra.mxu0 %v2541
          %2600 = vmatprep.subr.bf16.mxu0 0
          %2601 = vmatpush1.bf16.msra.mxu0 %v2542
          %2602 = vmatprep.subr.bf16.mxu0 0
          %2603 = vmatpush1.bf16.msra.mxu0 %v2543
          %2604 = vmatprep.subr.bf16.mxu0 0
          %2605 = vmatpush1.bf16.msra.mxu0 %v2544
          %2606 = vmatprep.subr.bf16.mxu0 0
          %2607 = vmatpush1.bf16.msra.mxu0 %v2545
          %2608 = vmatprep.mubr.bf16.mxu0 %v2569
          %2609 = vmatmul.mubr.bf16.gmra.mrb[0].mxu0 %v2568
          %v2610 = vpop.f32.mrb[0].mxu0
          %v2611 = vadd.f32 0.0, %v2610
          %v2612 = vpop.f32.mrb[0].mxu0
          %v2613 = vpop.f32.mrb[0].mxu0
          %v2614 = vpop.f32.mrb[0].mxu0
          %2615 = vdwg.mxu0
          %2616 = vmatprep.subr.bf16.mxu0 0
          %2617 = vmatpush1.bf16.msra.mxu0 %v2546
          %2618 = vmatprep.subr.bf16.mxu0 0
          %2619 = vmatpush1.bf16.msra.mxu0 %v2547
          %2620 = vmatprep.subr.bf16.mxu0 0
          %2621 = vmatpush1.bf16.msra.mxu0 %v2548
          %2622 = vmatprep.subr.bf16.mxu0 0
          %2623 = vmatpush1.bf16.msra.mxu0 %v2549
          %2624 = vmatprep.subr.bf16.mxu0 0
          %2625 = vmatpush1.bf16.msra.mxu0 %v2550
          %2626 = vmatprep.subr.bf16.mxu0 0
          %2627 = vmatpush1.bf16.msra.mxu0 %v2551
          %2628 = vmatprep.subr.bf16.mxu0 0
          %2629 = vmatpush1.bf16.msra.mxu0 %v2552
          %2630 = vmatprep.subr.bf16.mxu0 0
          %2631 = vmatpush1.bf16.msra.mxu0 %v2553
          %2632 = vmatprep.subr.bf16.mxu0 0
          %2633 = vmatpush1.bf16.msra.mxu0 %v2554
          %2634 = vmatprep.subr.bf16.mxu0 0
          %2635 = vmatpush1.bf16.msra.mxu0 %v2555
          %2636 = vmatprep.subr.bf16.mxu0 0
          %2637 = vmatpush1.bf16.msra.mxu0 %v2556
          %2638 = vmatprep.subr.bf16.mxu0 0
          %2639 = vmatpush1.bf16.msra.mxu0 %v2557
          %2640 = vmatprep.subr.bf16.mxu0 0
          %2641 = vmatpush1.bf16.msra.mxu0 %v2558
          %2642 = vmatprep.subr.bf16.mxu0 0
          %2643 = vmatpush1.bf16.msra.mxu0 %v2559
          %2644 = vmatprep.subr.bf16.mxu0 0
          %2645 = vmatpush1.bf16.msra.mxu0 %v2560
          %2646 = vmatprep.subr.bf16.mxu0 0
          %2647 = vmatpush1.bf16.msra.mxu0 %v2561
          %2648 = vmatprep.mubr.bf16.mxu0 %v2571
          %2649 = vmatmul.mubr.bf16.gmra.mrb[0].mxu0 %v2570
          %v2650 = vpop.f32.mrb[0].mxu0
          %v2651 = vadd.f32 %v2611, %v2650
          %v2652 = vpop.f32.mrb[0].mxu0
          %v2653 = vpop.f32.mrb[0].mxu0
          %v2654 = vpop.f32.mrb[0].mxu0
          %2655 = vdwg.mxu0
          %v2656 = vld [vmem:[#allocation13] sm:$0xff]
          %v2657 = vld [vmem:[#allocation13 + $0x8] sm:$0xff]
          %v2658 = vld [vmem:[#allocation13 + $0x10] sm:$0xff]
          %v2659 = vld [vmem:[#allocation13 + $0x18] sm:$0xff]
          %v2660 = vld [vmem:[#allocation13 + $0x20] sm:$0xff]
          %v2661 = vld [vmem:[#allocation13 + $0x28] sm:$0xff]
          %v2662 = vld [vmem:[#allocation13 + $0x30] sm:$0xff]
          %v2663 = vld [vmem:[#allocation13 + $0x38] sm:$0xff]
          %v2664 = vld [vmem:[#allocation13 + $0x40] sm:$0xff]
          %v2665 = vld [vmem:[#allocation13 + $0x48] sm:$0xff]
          %v2666 = vld [vmem:[#allocation13 + $0x50] sm:$0xff]
          %v2667 = vld [vmem:[#allocation13 + $0x58] sm:$0xff]
          %v2668 = vld [vmem:[#allocation13 + $0x60] sm:$0xff]
          %v2669 = vld [vmem:[#allocation13 + $0x68] sm:$0xff]
          %v2670 = vld [vmem:[#allocation13 + $0x70] sm:$0xff]
          %v2671 = vld [vmem:[#allocation13 + $0x78] sm:$0xff]
          %v2672 = vld [vmem:[#allocation13 + $0x80] sm:$0xff]
          %v2673 = vld [vmem:[#allocation13 + $0x88] sm:$0xff]
          %v2674 = vld [vmem:[#allocation13 + $0x90] sm:$0xff]
          %v2675 = vld [vmem:[#allocation13 + $0x98] sm:$0xff]
          %v2676 = vld [vmem:[#allocation13 + $0xa0] sm:$0xff]
          %v2677 = vld [vmem:[#allocation13 + $0xa8] sm:$0xff]
          %v2678 = vld [vmem:[#allocation13 + $0xb0] sm:$0xff]
          %v2679 = vld [vmem:[#allocation13 + $0xb8] sm:$0xff]
          %v2680 = vld [vmem:[#allocation13 + $0xc0] sm:$0xff]
          %v2681 = vld [vmem:[#allocation13 + $0xc8] sm:$0xff]
          %v2682 = vld [vmem:[#allocation13 + $0xd0] sm:$0xff]
          %v2683 = vld [vmem:[#allocation13 + $0xd8] sm:$0xff]
          %v2684 = vld [vmem:[#allocation13 + $0xe0] sm:$0xff]
          %v2685 = vld [vmem:[#allocation13 + $0xe8] sm:$0xff]
          %v2686 = vld [vmem:[#allocation13 + $0xf0] sm:$0xff]
          %v2687 = vld [vmem:[#allocation13 + $0xf8] sm:$0xff]
          %v2688 = vld [vmem:[#allocation13 + $0x100] sm:$0x1]
          %v2689 = vld [vmem:[#allocation13 + $0x101] sm:$0x1]
          %v2690 = vlaneseq
          %v2691 = vshrl.u32 %v2690, 7
          %v2692 = vsub.s32 0, %v2691
          %v2693 = vrot.slane %v2688, %v2692
          %2694 = vmatprep.subr.mxu0 0.0
          %2695 = vmatpush1.msra.mxu0 %v2656
          %2696 = vmatprep.subr.mxu0 0.0
          %2697 = vmatpush1.msra.mxu0 %v2657
          %2698 = vmatprep.subr.mxu0 0.0
          %2699 = vmatpush1.msra.mxu0 %v2658
          %2700 = vmatprep.subr.mxu0 0.0
          %2701 = vmatpush1.msra.mxu0 %v2659
          %2702 = vmatprep.subr.mxu0 0.0
          %2703 = vmatpush1.msra.mxu0 %v2660
          %2704 = vmatprep.subr.mxu0 0.0
          %2705 = vmatpush1.msra.mxu0 %v2661
          %2706 = vmatprep.subr.mxu0 0.0
          %2707 = vmatpush1.msra.mxu0 %v2662
          %2708 = vmatprep.subr.mxu0 0.0
          %2709 = vmatpush1.msra.mxu0 %v2663
          %2710 = vmatprep.subr.mxu0 0.0
          %2711 = vmatpush1.msra.mxu0 %v2664
          %2712 = vmatprep.subr.mxu0 0.0
          %2713 = vmatpush1.msra.mxu0 %v2665
          %2714 = vmatprep.subr.mxu0 0.0
          %2715 = vmatpush1.msra.mxu0 %v2666
          %2716 = vmatprep.subr.mxu0 0.0
          %2717 = vmatpush1.msra.mxu0 %v2667
          %2718 = vmatprep.subr.mxu0 0.0
          %2719 = vmatpush1.msra.mxu0 %v2668
          %2720 = vmatprep.subr.mxu0 0.0
          %2721 = vmatpush1.msra.mxu0 %v2669
          %2722 = vmatprep.subr.mxu0 0.0
          %2723 = vmatpush1.msra.mxu0 %v2670
          %2724 = vmatprep.subr.mxu0 0.0
          %2725 = vmatpush1.msra.mxu0 %v2671
          %2726 = vmatprep.subr.mxu0 0.0
          %2727 = vmatpush1.msra.mxu0 0.0
          %2728 = vmatprep.subr.mxu0 0.0
          %2729 = vmatpush1.msra.mxu0 0.0
          %2730 = vmatprep.subr.mxu0 0.0
          %2731 = vmatpush1.msra.mxu0 0.0
          %2732 = vmatprep.subr.mxu0 0.0
          %2733 = vmatpush1.msra.mxu0 0.0
          %2734 = vmatprep.subr.mxu0 0.0
          %2735 = vmatpush1.msra.mxu0 0.0
          %2736 = vmatprep.subr.mxu0 0.0
          %2737 = vmatpush1.msra.mxu0 0.0
          %2738 = vmatprep.subr.mxu0 0.0
          %2739 = vmatpush1.msra.mxu0 0.0
          %2740 = vmatprep.subr.mxu0 0.0
          %2741 = vmatpush1.msra.mxu0 0.0
          %2742 = vmatprep.subr.mxu0 0.0
          %2743 = vmatpush1.msra.mxu0 0.0
          %2744 = vmatprep.subr.mxu0 0.0
          %2745 = vmatpush1.msra.mxu0 0.0
          %2746 = vmatprep.subr.mxu0 0.0
          %2747 = vmatpush1.msra.mxu0 0.0
          %2748 = vmatprep.subr.mxu0 0.0
          %2749 = vmatpush1.msra.mxu0 0.0
          %2750 = vmatprep.subr.mxu0 0.0
          %2751 = vmatpush1.msra.mxu0 0.0
          %2752 = vmatprep.subr.mxu0 0.0
          %2753 = vmatpush1.msra.mxu0 0.0
          %2754 = vmatprep.subr.mxu0 0.0
          %2755 = vmatpush1.msra.mxu0 0.0
          %2756 = vmatprep.subr.mxu0 0.0
          %2757 = vmatpush1.msra.mxu0 0.0
          %2758 = vmatprep.mubr.f32.mxu0 0.0
          %2759 = vmatmul.mubr.f32.gmra.mrb[0].mxu0 %v2651
          %v2760 = vpop.f32.mrb[0].mxu0
          %v2761 = vadd.f32 %v2693, %v2760
          %v2762 = vpop.f32.mrb[0].mxu0
          %2763 = vdwg.mxu0
          %vm2764 = vcmp.gt.f32.partialorder %v2761, 0.0
          %v2765 = vmul.f32 %v2761, 0.01
          %v2766 = vsel %vm2764, %v2761, %v2765
          %v2767 = vlaneseq
          %v2768 = vshrl.u32 %v2767, 7
          %v2769 = vsub.s32 0, %v2768
          %v2770 = vrot.slane %v2689, %v2769
          %2771 = vmatprep.subr.mxu0 0.0
          %2772 = vmatpush1.msra.mxu0 %v2672
          %2773 = vmatprep.subr.mxu0 0.0
          %2774 = vmatpush1.msra.mxu0 %v2673
          %2775 = vmatprep.subr.mxu0 0.0
          %2776 = vmatpush1.msra.mxu0 %v2674
          %2777 = vmatprep.subr.mxu0 0.0
          %2778 = vmatpush1.msra.mxu0 %v2675
          %2779 = vmatprep.subr.mxu0 0.0
          %2780 = vmatpush1.msra.mxu0 %v2676
          %2781 = vmatprep.subr.mxu0 0.0
          %2782 = vmatpush1.msra.mxu0 %v2677
          %2783 = vmatprep.subr.mxu0 0.0
          %2784 = vmatpush1.msra.mxu0 %v2678
          %2785 = vmatprep.subr.mxu0 0.0
          %2786 = vmatpush1.msra.mxu0 %v2679
          %2787 = vmatprep.subr.mxu0 0.0
          %2788 = vmatpush1.msra.mxu0 %v2680
          %2789 = vmatprep.subr.mxu0 0.0
          %2790 = vmatpush1.msra.mxu0 %v2681
          %2791 = vmatprep.subr.mxu0 0.0
          %2792 = vmatpush1.msra.mxu0 %v2682
          %2793 = vmatprep.subr.mxu0 0.0
          %2794 = vmatpush1.msra.mxu0 %v2683
          %2795 = vmatprep.subr.mxu0 0.0
          %2796 = vmatpush1.msra.mxu0 %v2684
          %2797 = vmatprep.subr.mxu0 0.0
          %2798 = vmatpush1.msra.mxu0 %v2685
          %2799 = vmatprep.subr.mxu0 0.0
          %2800 = vmatpush1.msra.mxu0 %v2686
          %2801 = vmatprep.subr.mxu0 0.0
          %2802 = vmatpush1.msra.mxu0 %v2687
          %2803 = vmatprep.subr.mxu0 0.0
          %2804 = vmatpush1.msra.mxu0 0.0
          %2805 = vmatprep.subr.mxu0 0.0
          %2806 = vmatpush1.msra.mxu0 0.0
          %2807 = vmatprep.subr.mxu0 0.0
          %2808 = vmatpush1.msra.mxu0 0.0
          %2809 = vmatprep.subr.mxu0 0.0
          %2810 = vmatpush1.msra.mxu0 0.0
          %2811 = vmatprep.subr.mxu0 0.0
          %2812 = vmatpush1.msra.mxu0 0.0
          %2813 = vmatprep.subr.mxu0 0.0
          %2814 = vmatpush1.msra.mxu0 0.0
          %2815 = vmatprep.subr.mxu0 0.0
          %2816 = vmatpush1.msra.mxu0 0.0
          %2817 = vmatprep.subr.mxu0 0.0
          %2818 = vmatpush1.msra.mxu0 0.0
          %2819 = vmatprep.subr.mxu0 0.0
          %2820 = vmatpush1.msra.mxu0 0.0
          %2821 = vmatprep.subr.mxu0 0.0
          %2822 = vmatpush1.msra.mxu0 0.0
          %2823 = vmatprep.subr.mxu0 0.0
          %2824 = vmatpush1.msra.mxu0 0.0
          %2825 = vmatprep.subr.mxu0 0.0
          %2826 = vmatpush1.msra.mxu0 0.0
          %2827 = vmatprep.subr.mxu0 0.0
          %2828 = vmatpush1.msra.mxu0 0.0
          %2829 = vmatprep.subr.mxu0 0.0
          %2830 = vmatpush1.msra.mxu0 0.0
          %2831 = vmatprep.subr.mxu0 0.0
          %2832 = vmatpush1.msra.mxu0 0.0
          %2833 = vmatprep.subr.mxu0 0.0
          %2834 = vmatpush1.msra.mxu0 0.0
          %2835 = vmatprep.mubr.f32.mxu0 0.0
          %2836 = vmatmul.mubr.f32.gmra.mrb[0].mxu0 %v2766
          %v2837 = vpop.f32.mrb[0].mxu0
          %v2838 = vadd.f32 %v2770, %v2837
          %v2839 = vpop.f32.mrb[0].mxu0
          %2840 = vdwg.mxu0
          %2841 = vst [vmem:[#allocation14] sm:$0xff] %v2838
        $region76: #{tpu_custom_call.1} parent=31 // pred_fallthru
          _
        // Predicated region
        $region77: #{tpu_custom_call.1} parent=31 // pred_check
          %p2842 = pneg %p121
        $region78: #{tpu_custom_call.1} parent=31 // pred_check_branch
          %2844 = sbr.rel (%p2842) target = $region80
        $region79: #{tpu_custom_call.1} parent=31 // pred_region
          %s2846 = ssub.s32 128, 128
          %2847 = vsyncadd [#allocation10], %s2846
          %s2849 = sshll.u32 [#allocation14], 4
          %s2850 = int_to_ptr.vmem [resolvable:$true] %s2849
          %2852 = dma.vmem_to_hbm [thread:$0]  %s2850, 128, %s5, [#allocation10]
        $region80: #{tpu_custom_call.1} parent=31 // pred_fallthru
          _
        // Predicated region
        $region81: #{tpu_custom_call.1} parent=31 // pred_check
          %p2853 = pneg %p121
        $region82: #{tpu_custom_call.1} parent=31 // pred_check_branch
          %2855 = sbr.rel (%p2853) target = $region84
        $region83: #{tpu_custom_call.1} parent=31 // pred_region
          %2856 = dma.done [#allocation10], 128
        $region84: #{tpu_custom_call.1} parent=31 // pred_fallthru
          _
      $region32: #{tpu_custom_call.1} parent=5 // pred_fallthru
        _
      %p2857 = scmp.le.s32.totalorder 2, %s16
      // Predicated region
      $region85: #{tpu_custom_call.1} parent=5 // pred_check
        %p2858 = pneg %p2857
      $region86: #{tpu_custom_call.1} parent=5 // pred_check_branch
        %2860 = sbr.rel (%p2858) target = $region88
      $region87: #{tpu_custom_call.1} parent=5 // pred_region
        %s2861 = ssub.s32 %s16, 2
      $region88: #{tpu_custom_call.1} parent=5 // pred_fallthru
        _
    $region6: #{tpu_custom_call.1} parent=1 // loop_footer
      %s20 = sadd.s32 1, %s16
    $region7: #{tpu_custom_call.1} parent=1 // loop_footer_branch
      %15 = sbr.rel target = $region3
    $region8: #{tpu_custom_call.1} parent=1 // loop_exit
      _
    %2862 = vsyncpa [#allocation9], 1
    %s2863 = scalar_lea.sflag [#allocation9], 1
    %2864 = vsyncpa %s2863, 1
    %2865 = vsyncpa [#allocation12], 1
    %s2866 = scalar_lea.sflag [#allocation12], 1
    %2867 = vsyncpa %s2866, 1
    %2868 = vsyncpa [#allocation10], 1
    %s2869 = scalar_lea.sflag [#allocation10], 1
    %2870 = vsyncpa %s2869, 1
  %2871 = vsyncmov [#allocation6]
  %s2872 = vpop.sfrf %2871
  %p2873 = scmp.eq.s32.totalorder %s2872, 0
  %p2874 = pneg %p2873
  %2876 = shalt.err (%p2874)

</llo_original>
